<compile_context>
chip_gen: v7x
topology: tpu7x:2x2x1
jax: 0.10.0
libtpu: 0.0.40
codegen_flags: <defaults>
</compile_context>

<pallas_src>
import jax
import jax.numpy as jnp
from jax.experimental import pallas as pl
from jax.experimental.pallas import tpu as pltpu

_COMPUTE_DTYPE = jnp.bfloat16   # MXU operand dtype; accumulation is always f32
_LANE = 128


def _round_up(x, m):
    return (x + m - 1) // m * m


# ---------------------------------------------------------------------------
# Pallas kernel: one (tm, Kp) x (Kp, Cp) matmul per grid step + fused bias/ReLU.
#   x_ref : (tm, Kp)  im2col patch rows     (bf16)
#   w_ref : (Kp, Cp)  packed weight matrix  (bf16)
#   b_ref : (1,  Cp)  bias                  (f32)
#   o_ref : (tm, Cp)  output rows           (bf16)
# A single unbroken jnp.dot keeps the accumulation in the MXU result path
# (MRB in-place accumulate on v7x), with no per-tap vreg adds.
# ---------------------------------------------------------------------------
def _matmul_bias_relu_kernel(x_ref, w_ref, b_ref, o_ref):
    acc = jnp.dot(x_ref[...], w_ref[...], preferred_element_type=jnp.float32)
    o_ref[...] = jnp.maximum(acc + b_ref[...], 0.0).astype(o_ref.dtype)


def _matmul_bias_relu_call(lhs, rhs, b_pad, *, k_real, cout_real):
    """lhs: (N, M, Kp) bf16; rhs: (Kp, Cp) bf16; b_pad: (1, Cp) f32.
       Returns (N, M, Cp) bf16 of relu(lhs @ rhs + b)."""
    N, M, Kp = lhs.shape
    Kp_w, Cp = rhs.shape
    assert Kp_w == Kp

    # 128-row M tiles when possible: keeps the per-step f32 result small and
    # guarantees >= 2 parallel grid steps per image for v7x megacore.
    tm = 128 if (M % 128 == 0) else M
    grid = (N, M // tm)

    flops = 2 * N * M * k_real * cout_real               # real (unpadded) work
    bytes_accessed = (lhs.size * lhs.dtype.itemsize
                      + rhs.size * rhs.dtype.itemsize
                      + b_pad.size * b_pad.dtype.itemsize
                      + N * M * cout_real * 2)

    return pl.pallas_call(
        _matmul_bias_relu_kernel,
        out_shape=jax.ShapeDtypeStruct((N, M, Cp), _COMPUTE_DTYPE),
        grid_spec=pltpu.PrefetchScalarGridSpec(
            num_scalar_prefetch=0,
            grid=grid,
            in_specs=[
                pl.BlockSpec((None, tm, Kp), lambda n, m: (n, m, 0)),
                pl.BlockSpec((Kp, Cp), lambda n, m: (0, 0)),
                pl.BlockSpec((1, Cp), lambda n, m: (0, 0)),
            ],
            out_specs=pl.BlockSpec((None, tm, Cp), lambda n, m: (n, m, 0)),
        ),
        compiler_params=pltpu.CompilerParams(
            dimension_semantics=("parallel", "parallel"),
            vmem_limit_bytes=32 * 1024 * 1024,
        ),
        cost_estimate=pl.CostEstimate(flops=flops, transcendentals=0,
                                      bytes_accessed=bytes_accessed),
    )(lhs, rhs, b_pad)


# ---------------------------------------------------------------------------
# Layer wrapper: conv(KHxKW, stride, pad) + ReLU on NHWC bf16 input.
# Patch extraction / weight packing is layout-only glue; all FLOPs run in the
# Pallas kernel above.
# ---------------------------------------------------------------------------
def _conv2d_relu(x_nhwc, weight, bias, *, stride, padding):
    N, H, W, Cin = x_nhwc.shape
    Cout, Cin_w, KH, KW = weight.shape
    assert Cin_w == Cin
    Ho = (H + 2 * padding - KH) // stride + 1
    Wo = (W + 2 * padding - KW) // stride + 1
    M = Ho * Wo
    K = KH * KW * Cin
    Kp = _round_up(K, _LANE)
    Cp = _round_up(Cout, _LANE)

    # im2col with tap-major (kh, kw, cin) channel ordering.
    xp = jnp.pad(x_nhwc, ((0, 0), (padding, padding), (padding, padding), (0, 0)))
    cols = []
    for r in range(KH):
        for c in range(KW):
            cols.append(xp[:, r:r + stride * (Ho - 1) + 1:stride,
                              c:c + stride * (Wo - 1) + 1:stride, :])
    patches = jnp.concatenate(cols, axis=-1).reshape(N, M, K)
    lhs = jnp.pad(patches, ((0, 0), (0, 0), (0, Kp - K))).astype(_COMPUTE_DTYPE)

    # (Cout, Cin, KH, KW) -> (KH*KW*Cin, Cout), matching the patch channel order.
    w_mat = jnp.transpose(weight, (2, 3, 1, 0)).reshape(K, Cout)
    rhs = jnp.pad(w_mat, ((0, Kp - K), (0, Cp - Cout))).astype(_COMPUTE_DTYPE)
    b_pad = jnp.pad(bias, (0, Cp - Cout)).reshape(1, Cp).astype(jnp.float32)

    out = _matmul_bias_relu_call(lhs, rhs, b_pad, k_real=K, cout_real=Cout)
    return out[:, :, :Cout].reshape(N, Ho, Wo, Cout)


# ---------------------------------------------------------------------------
# SemanticEncoder parameters (kaiming_normal_ fan_out / relu, zero bias).
# ---------------------------------------------------------------------------
def init_semantic_encoder_params(key, in_channels=19, num_hidden_layers=4,
                                 base_feature_size=32):
    params = []
    cin = in_channels
    for idx in range(num_hidden_layers):
        if idx == 0:
            cout, k = base_feature_size, 7
        else:
            cout, k = cin * 2, 3
        key, wk = jax.random.split(key)
        fan_out = cout * k * k
        std = (2.0 / fan_out) ** 0.5
        weight = std * jax.random.normal(wk, (cout, cin, k, k), dtype=jnp.float32)
        bias = jnp.zeros((cout,), dtype=jnp.float32)
        params.append(dict(weight=weight, bias=bias))
        cin = cout
    return params


def semantic_encoder_forward(params, x_nchw):
    """Returns the list of 4 feature maps in NCHW float32, like the PyTorch module.
       Note: operands are intentionally bf16 (MXU-native); accumulation is f32."""
    x = jnp.transpose(x_nchw, (0, 2, 3, 1)).astype(_COMPUTE_DTYPE)  # NHWC bf16
    feats = []
    for idx, layer in enumerate(params):
        if idx == 0:
            x = _conv2d_relu(x, layer["weight"], layer["bias"], stride=1, padding=3)
        else:
            x = _conv2d_relu(x, layer["weight"], layer["bias"], stride=2, padding=1)
        feats.append(jnp.transpose(x, (0, 3, 1, 2)).astype(jnp.float32))
    return feats


# ---------------------------------------------------------------------------
# Pure-XLA reference (f32, HIGHEST precision) for numeric validation.
# ---------------------------------------------------------------------------
def _conv_relu_reference(x_nchw, weight, bias, stride, padding):
    out = jax.lax.conv_general_dilated(
        x_nchw, weight, window_strides=(stride, stride),
        padding=((padding, padding), (padding, padding)),
        dimension_numbers=("NCHW", "OIHW", "NCHW"),
        precision=jax.lax.Precision.HIGHEST)
    return jnp.maximum(out + bias.reshape(1, -1, 1, 1), 0.0)


# ---------------------------------------------------------------------------
if __name__ == "__main__":
    key = jax.random.PRNGKey(0)
    key, pkey, xkey = jax.random.split(key, 3)

    params = init_semantic_encoder_params(pkey, in_channels=19)
    x = jax.random.normal(xkey, (2, 19, 16, 16), dtype=jnp.float32)  # NCHW

    fwd = jax.jit(semantic_encoder_forward)
    outs = fwd(params, x)
    outs = [jax.block_until_ready(o) for o in outs]

    expected_shapes = [(2, 32, 16, 16), (2, 64, 8, 8), (2, 128, 4, 4), (2, 256, 2, 2)]
    assert [tuple(o.shape) for o in outs] == expected_shapes, [o.shape for o in outs]
    assert all(bool(jnp.all(o >= 0)) for o in outs)  # ReLU => non-negative

    # Numeric check vs pure-XLA f32 reference (bf16 operands -> small drift allowed).
    configs = [(7, 1, 3), (3, 2, 1), (3, 2, 1), (3, 2, 1)]
    ref = x
    for (_, s, p), layer, out in zip(configs, params, outs):
        ref = _conv_relu_reference(ref, layer["weight"], layer["bias"], s, p)
        num = float(jnp.linalg.norm((out - ref).astype(jnp.float32)))
        den = float(jnp.linalg.norm(ref.astype(jnp.float32))) + 1e-12
        assert num / den < 5e-2, ("layer rel-L2 error too large", num / den)

    print("KERNEL_OK")
</pallas_src>

<mosaic_0001>
module attributes {stable_mosaic.version = 11 : i64} {
  func.func @_matmul_bias_relu_kernel(%arg0: i32, %arg1: i32, %arg2: memref<1x128x1024xbf16, #tpu.memory_space<vmem>>, %arg3: memref<1024x128xbf16, #tpu.memory_space<vmem>>, %arg4: memref<1x128xf32, #tpu.memory_space<vmem>>, %arg5: memref<1x128x128xbf16, #tpu.memory_space<vmem>>) attributes {dimension_semantics = [#tpu.dimension_semantics<parallel>, #tpu.dimension_semantics<parallel>], iteration_bounds = array<i64: 2, 2>, scalar_prefetch = 0 : i64, scratch_operands = 0 : i64, tpu.core_type = #tpu.core_type<tc>, window_params = [{transform_indices = @transform_0, window_bounds = array<i64: 1, 128, 1024>}, {pipeline_mode = #tpu.pipeline_mode<synchronous>, transform_indices = @transform_1, window_bounds = array<i64: 1024, 128>}, {pipeline_mode = #tpu.pipeline_mode<synchronous>, transform_indices = @transform_2, window_bounds = array<i64: 1, 128>}, {transform_indices = @transform_3, window_bounds = array<i64: 1, 128, 128>}]} {
    %c0 = arith.constant 0 : index
    %c0_0 = arith.constant 0 : index
    %c0_1 = arith.constant 0 : index
    %0 = vector.load %arg2[%c0, %c0_0, %c0_1] : memref<1x128x1024xbf16, #tpu.memory_space<vmem>>, vector<1x128x1024xbf16>
    %1 = vector.shape_cast %0 : vector<1x128x1024xbf16> to vector<128x1024xbf16>
    %c0_2 = arith.constant 0 : index
    %c0_3 = arith.constant 0 : index
    %2 = vector.load %arg3[%c0_2, %c0_3] : memref<1024x128xbf16, #tpu.memory_space<vmem>>, vector<1024x128xbf16>
    %cst = arith.constant dense<0.000000e+00> : vector<128x128xf32>
    %3 = tpu.matmul %1, %2, %cst {dimension_numbers = #tpu.dot_dimension_numbers<[1], [0], [0], [1], [0, 0, 1, 1], [], []>} : vector<128x1024xbf16>, vector<1024x128xbf16>, vector<128x128xf32> -> vector<128x128xf32>
    %c0_4 = arith.constant 0 : index
    %c0_5 = arith.constant 0 : index
    %4 = vector.load %arg4[%c0_4, %c0_5] : memref<1x128xf32, #tpu.memory_space<vmem>>, vector<1x128xf32>
    %5 = vector.broadcast %4 : vector<1x128xf32> to vector<128x128xf32>
    %6 = arith.addf %3, %5 : vector<128x128xf32>
    %cst_6 = arith.constant 0.000000e+00 : f32
    %7 = vector.broadcast %cst_6 : f32 to vector<128x128xf32>
    %8 = arith.maximumf %6, %7 : vector<128x128xf32>
    %9 = arith.truncf %8 : vector<128x128xf32> to vector<128x128xbf16>
    %c0_7 = arith.constant 0 : index
    %c0_8 = arith.constant 0 : index
    %c0_9 = arith.constant 0 : index
    %10 = vector.load %arg5[%c0_7, %c0_8, %c0_9] : memref<1x128x128xbf16, #tpu.memory_space<vmem>>, vector<1x128x128xbf16>
    %11 = vector.shape_cast %10 : vector<1x128x128xbf16> to vector<128x128xbf16>
    %12 = vector.shape_cast %9 : vector<128x128xbf16> to vector<1x128x128xbf16>
    tpu.vector_store %arg5[%c0_7, %c0_8, %c0_9], %12 {strides = array<i32>} : memref<1x128x128xbf16, #tpu.memory_space<vmem>>, vector<1x128x128xbf16>,
    return
  }
  func.func @transform_0(%arg0: i32, %arg1: i32) -> (i32, i32, i32) {
    %c0_i32 = arith.constant 0 : i32
    %c0_i32_0 = arith.constant 0 : i32
    return %arg0, %arg1, %c0_i32 : i32, i32, i32
  }
  func.func @transform_1(%arg0: i32, %arg1: i32) -> (i32, i32) {
    %c0_i32 = arith.constant 0 : i32
    %c0_i32_0 = arith.constant 0 : i32
    %c0_i32_1 = arith.constant 0 : i32
    return %c0_i32, %c0_i32_0 : i32, i32
  }
  func.func @transform_2(%arg0: i32, %arg1: i32) -> (i32, i32) {
    %c0_i32 = arith.constant 0 : i32
    %c0_i32_0 = arith.constant 0 : i32
    %c0_i32_1 = arith.constant 0 : i32
    return %c0_i32, %c0_i32_0 : i32, i32
  }
  func.func @transform_3(%arg0: i32, %arg1: i32) -> (i32, i32, i32) {
    %c0_i32 = arith.constant 0 : i32
    %c0_i32_0 = arith.constant 0 : i32
    return %arg0, %arg1, %c0_i32 : i32, i32, i32
  }
}

module attributes {stable_mosaic.version = 11 : i64} {
  func.func @_matmul_bias_relu_kernel(%arg0: i32, %arg1: i32, %arg2: memref<1x64x384xbf16, #tpu.memory_space<vmem>>, %arg3: memref<384x128xbf16, #tpu.memory_space<vmem>>, %arg4: memref<1x128xf32, #tpu.memory_space<vmem>>, %arg5: memref<1x64x128xbf16, #tpu.memory_space<vmem>>) attributes {dimension_semantics = [#tpu.dimension_semantics<parallel>, #tpu.dimension_semantics<parallel>], iteration_bounds = array<i64: 2, 1>, scalar_prefetch = 0 : i64, scratch_operands = 0 : i64, tpu.core_type = #tpu.core_type<tc>, window_params = [{transform_indices = @transform_0, window_bounds = array<i64: 1, 64, 384>}, {pipeline_mode = #tpu.pipeline_mode<synchronous>, transform_indices = @transform_1, window_bounds = array<i64: 384, 128>}, {pipeline_mode = #tpu.pipeline_mode<synchronous>, transform_indices = @transform_2, window_bounds = array<i64: 1, 128>}, {transform_indices = @transform_3, window_bounds = array<i64: 1, 64, 128>}]} {
    %c0 = arith.constant 0 : index
    %c0_0 = arith.constant 0 : index
    %c0_1 = arith.constant 0 : index
    %0 = vector.load %arg2[%c0, %c0_0, %c0_1] : memref<1x64x384xbf16, #tpu.memory_space<vmem>>, vector<1x64x384xbf16>
    %1 = vector.shape_cast %0 : vector<1x64x384xbf16> to vector<64x384xbf16>
    %c0_2 = arith.constant 0 : index
    %c0_3 = arith.constant 0 : index
    %2 = vector.load %arg3[%c0_2, %c0_3] : memref<384x128xbf16, #tpu.memory_space<vmem>>, vector<384x128xbf16>
    %cst = arith.constant dense<0.000000e+00> : vector<64x128xf32>
    %3 = tpu.matmul %1, %2, %cst {dimension_numbers = #tpu.dot_dimension_numbers<[1], [0], [0], [1], [0, 0, 1, 1], [], []>} : vector<64x384xbf16>, vector<384x128xbf16>, vector<64x128xf32> -> vector<64x128xf32>
    %c0_4 = arith.constant 0 : index
    %c0_5 = arith.constant 0 : index
    %4 = vector.load %arg4[%c0_4, %c0_5] : memref<1x128xf32, #tpu.memory_space<vmem>>, vector<1x128xf32>
    %5 = vector.broadcast %4 : vector<1x128xf32> to vector<64x128xf32>
    %6 = arith.addf %3, %5 : vector<64x128xf32>
    %cst_6 = arith.constant 0.000000e+00 : f32
    %7 = vector.broadcast %cst_6 : f32 to vector<64x128xf32>
    %8 = arith.maximumf %6, %7 : vector<64x128xf32>
    %9 = arith.truncf %8 : vector<64x128xf32> to vector<64x128xbf16>
    %c0_7 = arith.constant 0 : index
    %c0_8 = arith.constant 0 : index
    %c0_9 = arith.constant 0 : index
    %10 = vector.load %arg5[%c0_7, %c0_8, %c0_9] : memref<1x64x128xbf16, #tpu.memory_space<vmem>>, vector<1x64x128xbf16>
    %11 = vector.shape_cast %10 : vector<1x64x128xbf16> to vector<64x128xbf16>
    %12 = vector.shape_cast %9 : vector<64x128xbf16> to vector<1x64x128xbf16>
    tpu.vector_store %arg5[%c0_7, %c0_8, %c0_9], %12 {strides = array<i32>} : memref<1x64x128xbf16, #tpu.memory_space<vmem>>, vector<1x64x128xbf16>,
    return
  }
  func.func @transform_0(%arg0: i32, %arg1: i32) -> (i32, i32, i32) {
    %c0_i32 = arith.constant 0 : i32
    %c0_i32_0 = arith.constant 0 : i32
    return %arg0, %arg1, %c0_i32 : i32, i32, i32
  }
  func.func @transform_1(%arg0: i32, %arg1: i32) -> (i32, i32) {
    %c0_i32 = arith.constant 0 : i32
    %c0_i32_0 = arith.constant 0 : i32
    %c0_i32_1 = arith.constant 0 : i32
    return %c0_i32, %c0_i32_0 : i32, i32
  }
  func.func @transform_2(%arg0: i32, %arg1: i32) -> (i32, i32) {
    %c0_i32 = arith.constant 0 : i32
    %c0_i32_0 = arith.constant 0 : i32
    %c0_i32_1 = arith.constant 0 : i32
    return %c0_i32, %c0_i32_0 : i32, i32
  }
  func.func @transform_3(%arg0: i32, %arg1: i32) -> (i32, i32, i32) {
    %c0_i32 = arith.constant 0 : i32
    %c0_i32_0 = arith.constant 0 : i32
    return %arg0, %arg1, %c0_i32 : i32, i32, i32
  }
}

module attributes {stable_mosaic.version = 11 : i64} {
  func.func @_matmul_bias_relu_kernel(%arg0: i32, %arg1: i32, %arg2: memref<1x16x640xbf16, #tpu.memory_space<vmem>>, %arg3: memref<640x128xbf16, #tpu.memory_space<vmem>>, %arg4: memref<1x128xf32, #tpu.memory_space<vmem>>, %arg5: memref<1x16x128xbf16, #tpu.memory_space<vmem>>) attributes {dimension_semantics = [#tpu.dimension_semantics<parallel>, #tpu.dimension_semantics<parallel>], iteration_bounds = array<i64: 2, 1>, scalar_prefetch = 0 : i64, scratch_operands = 0 : i64, tpu.core_type = #tpu.core_type<tc>, window_params = [{transform_indices = @transform_0, window_bounds = array<i64: 1, 16, 640>}, {pipeline_mode = #tpu.pipeline_mode<synchronous>, transform_indices = @transform_1, window_bounds = array<i64: 640, 128>}, {pipeline_mode = #tpu.pipeline_mode<synchronous>, transform_indices = @transform_2, window_bounds = array<i64: 1, 128>}, {transform_indices = @transform_3, window_bounds = array<i64: 1, 16, 128>}]} {
    %c0 = arith.constant 0 : index
    %c0_0 = arith.constant 0 : index
    %c0_1 = arith.constant 0 : index
    %0 = vector.load %arg2[%c0, %c0_0, %c0_1] : memref<1x16x640xbf16, #tpu.memory_space<vmem>>, vector<1x16x640xbf16>
    %1 = vector.shape_cast %0 : vector<1x16x640xbf16> to vector<16x640xbf16>
    %c0_2 = arith.constant 0 : index
    %c0_3 = arith.constant 0 : index
    %2 = vector.load %arg3[%c0_2, %c0_3] : memref<640x128xbf16, #tpu.memory_space<vmem>>, vector<640x128xbf16>
    %cst = arith.constant dense<0.000000e+00> : vector<16x128xf32>
    %3 = tpu.matmul %1, %2, %cst {dimension_numbers = #tpu.dot_dimension_numbers<[1], [0], [0], [1], [0, 0, 1, 1], [], []>} : vector<16x640xbf16>, vector<640x128xbf16>, vector<16x128xf32> -> vector<16x128xf32>
    %c0_4 = arith.constant 0 : index
    %c0_5 = arith.constant 0 : index
    %4 = vector.load %arg4[%c0_4, %c0_5] : memref<1x128xf32, #tpu.memory_space<vmem>>, vector<1x128xf32>
    %5 = vector.broadcast %4 : vector<1x128xf32> to vector<16x128xf32>
    %6 = arith.addf %3, %5 : vector<16x128xf32>
    %cst_6 = arith.constant 0.000000e+00 : f32
    %7 = vector.broadcast %cst_6 : f32 to vector<16x128xf32>
    %8 = arith.maximumf %6, %7 : vector<16x128xf32>
    %9 = arith.truncf %8 : vector<16x128xf32> to vector<16x128xbf16>
    %c0_7 = arith.constant 0 : index
    %c0_8 = arith.constant 0 : index
    %c0_9 = arith.constant 0 : index
    %10 = vector.load %arg5[%c0_7, %c0_8, %c0_9] : memref<1x16x128xbf16, #tpu.memory_space<vmem>>, vector<1x16x128xbf16>
    %11 = vector.shape_cast %10 : vector<1x16x128xbf16> to vector<16x128xbf16>
    %12 = vector.shape_cast %9 : vector<16x128xbf16> to vector<1x16x128xbf16>
    tpu.vector_store %arg5[%c0_7, %c0_8, %c0_9], %12 {strides = array<i32>} : memref<1x16x128xbf16, #tpu.memory_space<vmem>>, vector<1x16x128xbf16>,
    return
  }
  func.func @transform_0(%arg0: i32, %arg1: i32) -> (i32, i32, i32) {
    %c0_i32 = arith.constant 0 : i32
    %c0_i32_0 = arith.constant 0 : i32
    return %arg0, %arg1, %c0_i32 : i32, i32, i32
  }
  func.func @transform_1(%arg0: i32, %arg1: i32) -> (i32, i32) {
    %c0_i32 = arith.constant 0 : i32
    %c0_i32_0 = arith.constant 0 : i32
    %c0_i32_1 = arith.constant 0 : i32
    return %c0_i32, %c0_i32_0 : i32, i32
  }
  func.func @transform_2(%arg0: i32, %arg1: i32) -> (i32, i32) {
    %c0_i32 = arith.constant 0 : i32
    %c0_i32_0 = arith.constant 0 : i32
    %c0_i32_1 = arith.constant 0 : i32
    return %c0_i32, %c0_i32_0 : i32, i32
  }
  func.func @transform_3(%arg0: i32, %arg1: i32) -> (i32, i32, i32) {
    %c0_i32 = arith.constant 0 : i32
    %c0_i32_0 = arith.constant 0 : i32
    return %arg0, %arg1, %c0_i32 : i32, i32, i32
  }
}

module attributes {stable_mosaic.version = 11 : i64} {
  func.func @_matmul_bias_relu_kernel(%arg0: i32, %arg1: i32, %arg2: memref<1x4x1152xbf16, #tpu.memory_space<vmem>>, %arg3: memref<1152x256xbf16, #tpu.memory_space<vmem>>, %arg4: memref<1x256xf32, #tpu.memory_space<vmem>>, %arg5: memref<1x4x256xbf16, #tpu.memory_space<vmem>>) attributes {dimension_semantics = [#tpu.dimension_semantics<parallel>, #tpu.dimension_semantics<parallel>], iteration_bounds = array<i64: 2, 1>, scalar_prefetch = 0 : i64, scratch_operands = 0 : i64, tpu.core_type = #tpu.core_type<tc>, window_params = [{transform_indices = @transform_0, window_bounds = array<i64: 1, 4, 1152>}, {pipeline_mode = #tpu.pipeline_mode<synchronous>, transform_indices = @transform_1, window_bounds = array<i64: 1152, 256>}, {pipeline_mode = #tpu.pipeline_mode<synchronous>, transform_indices = @transform_2, window_bounds = array<i64: 1, 256>}, {transform_indices = @transform_3, window_bounds = array<i64: 1, 4, 256>}]} {
    %c0 = arith.constant 0 : index
    %c0_0 = arith.constant 0 : index
    %c0_1 = arith.constant 0 : index
    %0 = vector.load %arg2[%c0, %c0_0, %c0_1] : memref<1x4x1152xbf16, #tpu.memory_space<vmem>>, vector<1x4x1152xbf16>
    %1 = vector.shape_cast %0 : vector<1x4x1152xbf16> to vector<4x1152xbf16>
    %c0_2 = arith.constant 0 : index
    %c0_3 = arith.constant 0 : index
    %2 = vector.load %arg3[%c0_2, %c0_3] : memref<1152x256xbf16, #tpu.memory_space<vmem>>, vector<1152x256xbf16>
    %cst = arith.constant dense<0.000000e+00> : vector<4x256xf32>
    %3 = tpu.matmul %1, %2, %cst {dimension_numbers = #tpu.dot_dimension_numbers<[1], [0], [0], [1], [0, 0, 1, 1], [], []>} : vector<4x1152xbf16>, vector<1152x256xbf16>, vector<4x256xf32> -> vector<4x256xf32>
    %c0_4 = arith.constant 0 : index
    %c0_5 = arith.constant 0 : index
    %4 = vector.load %arg4[%c0_4, %c0_5] : memref<1x256xf32, #tpu.memory_space<vmem>>, vector<1x256xf32>
    %5 = vector.broadcast %4 : vector<1x256xf32> to vector<4x256xf32>
    %6 = arith.addf %3, %5 : vector<4x256xf32>
    %cst_6 = arith.constant 0.000000e+00 : f32
    %7 = vector.broadcast %cst_6 : f32 to vector<4x256xf32>
    %8 = arith.maximumf %6, %7 : vector<4x256xf32>
    %9 = arith.truncf %8 : vector<4x256xf32> to vector<4x256xbf16>
    %c0_7 = arith.constant 0 : index
    %c0_8 = arith.constant 0 : index
    %c0_9 = arith.constant 0 : index
    %10 = vector.load %arg5[%c0_7, %c0_8, %c0_9] : memref<1x4x256xbf16, #tpu.memory_space<vmem>>, vector<1x4x256xbf16>
    %11 = vector.shape_cast %10 : vector<1x4x256xbf16> to vector<4x256xbf16>
    %12 = vector.shape_cast %9 : vector<4x256xbf16> to vector<1x4x256xbf16>
    tpu.vector_store %arg5[%c0_7, %c0_8, %c0_9], %12 {strides = array<i32>} : memref<1x4x256xbf16, #tpu.memory_space<vmem>>, vector<1x4x256xbf16>,
    return
  }
  func.func @transform_0(%arg0: i32, %arg1: i32) -> (i32, i32, i32) {
    %c0_i32 = arith.constant 0 : i32
    %c0_i32_0 = arith.constant 0 : i32
    return %arg0, %arg1, %c0_i32 : i32, i32, i32
  }
  func.func @transform_1(%arg0: i32, %arg1: i32) -> (i32, i32) {
    %c0_i32 = arith.constant 0 : i32
    %c0_i32_0 = arith.constant 0 : i32
    %c0_i32_1 = arith.constant 0 : i32
    return %c0_i32, %c0_i32_0 : i32, i32
  }
  func.func @transform_2(%arg0: i32, %arg1: i32) -> (i32, i32) {
    %c0_i32 = arith.constant 0 : i32
    %c0_i32_0 = arith.constant 0 : i32
    %c0_i32_1 = arith.constant 0 : i32
    return %c0_i32, %c0_i32_0 : i32, i32
  }
  func.func @transform_3(%arg0: i32, %arg1: i32) -> (i32, i32, i32) {
    %c0_i32 = arith.constant 0 : i32
    %c0_i32_0 = arith.constant 0 : i32
    return %arg0, %arg1, %c0_i32 : i32, i32, i32
  }
}

</mosaic_0001>

<llo_original>
// kernel: semantic_encoder_forward.4
$region0: #{semantic_encoder_forward.4}
  #allocation0 [shape = 'u32[]', space=smem, size = 0x4, offset = 0x4, fixed_abs, tag = 'smem constant byte address 0x4 - core index']
  #allocation1 [shape = 'u32[144,128]{1,0:T(1,128)}', space=vmem, size = 0x12000, scoped, tag = 'internal scratch']
  %s0 = inlined_call_operand.vmem [shape: bf16[2,256,1024], index: 0, kind: input, shape index: {}]
  %s1 = inlined_call_operand.vmem [shape: bf16[1024,128], index: 1, kind: input, shape index: {}]
  %s2 = inlined_call_operand.vmem [shape: f32[1,128], index: 2, kind: input, shape index: {}]
  %s3 = inlined_call_operand.vmem [shape: bf16[2,256,128], index: 3, kind: output, shape index: {}]
  %s4 = sld [smem:[#allocation0]]
  $region45: #{semantic_encoder_forward.4} parent=0
    _
  %s6 = ssub.s32 1, %s4
  %s7 = scalar_select 0, %s6, %s4
  loop: start=0, step=1, limit=6
  $region2: #{semantic_encoder_forward.4} parent=0 // loop_pre_header
    _
  $region3: #{semantic_encoder_forward.4} parent=0 // loop_header
    %s9 = sphi 0, %s13
    %p10 = scmp.ge.s32.totalorder %s9, 6
    %s16 = sphi 0, %s28
    %s17 = sphi 0, %s24
    %s18 = sphi 0, %s16
    %s19 = sphi 0, %s17
    %s20 = sphi 0, %s18
    %s21 = sphi 0, %s19
    %s33 = sphi 0, %s35
    %s36 = sphi 0, %s33
    %s37 = sphi 0, %s36
    %s53 = sphi 0, %s37
    %s57 = sphi 0, %s57
    %s59 = sphi 0, %s57
    %s60 = sphi 0, %s59
    %s74 = sphi 0, %s60
    %s78 = sphi 0, %s78
    %s80 = sphi 0, %s78
    %s81 = sphi 0, %s80
    %s95 = sphi 0, %s81
    %s103 = sphi 0, %s105
    %s106 = sphi 0, %s103
    %s107 = sphi 0, %s106
    %s123 = sphi 0, %s107
  $region4: #{semantic_encoder_forward.4} parent=0 // loop_header_branch
    %12 = sbr.rel (%p10) target = $region8
  $region5: #{semantic_encoder_forward.4} parent=0 // loop_body
    %s14 = ssub.s32 %s9, 1
    %s15 = ssub.s32 %s9, 2
    %s22 = sadd.s32 1, %s17
    %p23 = scmp.ge.s32.totalorder %s22, 2
    %s24 = scalar_select %p23, 0, %s22
    %s25 = sadd.s32 1, %s16
    %s26 = scalar_select %p23, %s25, %s16
    %p27 = scmp.ge.s32.totalorder %s26, 2
    %s28 = scalar_select %p27, 0, %s26
    %s29 = ssub.s32 %s16, %s28
    %s30 = ssub.s32 %s17, %s24
    %s31 = sor.u32 %s29, %s30
    %p32 = scmp.eq.s32.totalorder %s31, 0
    %s34 = sadd.s32 %s33, 1
    %s35 = scalar_select %p32, %s33, %s34
    %p38 = pneg %p32
    %p39 = scmp.eq.s32.totalorder %s9, 3
    %p40 = por %p38, %p39
    %p41 = scmp.ne.s32.totalorder %s33, %s36
    %p42 = scmp.eq.s32.totalorder %s9, 0
    %p43 = por %p41, %p42
    %p44 = scmp.ne.s32.totalorder %s33, %s36
    %p45 = scmp.eq.s32.totalorder %s14, 3
    %p46 = por %p44, %p45
    %p47 = scmp.ne.s32.totalorder %s36, %s37
    %p48 = scmp.eq.s32.totalorder %s14, 0
    %p49 = por %p47, %p48
    %p50 = scmp.ne.s32.totalorder %s36, %s37
    %p51 = scmp.eq.s32.totalorder %s15, 3
    %p52 = por %p50, %p51
    %p54 = scmp.ne.s32.totalorder %s37, %s53
    %p55 = scmp.eq.s32.totalorder %s15, 0
    %p56 = por %p54, %p55
    %s58 = sadd.s32 %s57, 1
    %p61 = scmp.eq.s32.totalorder %s9, 3
    %p62 = scmp.ne.s32.totalorder %s57, %s59
    %p63 = scmp.eq.s32.totalorder %s9, 0
    %p64 = por %p62, %p63
    %p65 = scmp.ne.s32.totalorder %s57, %s59
    %p66 = scmp.eq.s32.totalorder %s14, 3
    %p67 = por %p65, %p66
    %p68 = scmp.ne.s32.totalorder %s59, %s60
    %p69 = scmp.eq.s32.totalorder %s14, 0
    %p70 = por %p68, %p69
    %p71 = scmp.ne.s32.totalorder %s59, %s60
    %p72 = scmp.eq.s32.totalorder %s15, 3
    %p73 = por %p71, %p72
    %p75 = scmp.ne.s32.totalorder %s60, %s74
    %p76 = scmp.eq.s32.totalorder %s15, 0
    %p77 = por %p75, %p76
    %s79 = sadd.s32 %s78, 1
    %p82 = scmp.eq.s32.totalorder %s9, 3
    %p83 = scmp.ne.s32.totalorder %s78, %s80
    %p84 = scmp.eq.s32.totalorder %s9, 0
    %p85 = por %p83, %p84
    %p86 = scmp.ne.s32.totalorder %s78, %s80
    %p87 = scmp.eq.s32.totalorder %s14, 3
    %p88 = por %p86, %p87
    %p89 = scmp.ne.s32.totalorder %s80, %s81
    %p90 = scmp.eq.s32.totalorder %s14, 0
    %p91 = por %p89, %p90
    %p92 = scmp.ne.s32.totalorder %s80, %s81
    %p93 = scmp.eq.s32.totalorder %s15, 3
    %p94 = por %p92, %p93
    %p96 = scmp.ne.s32.totalorder %s81, %s95
    %p97 = scmp.eq.s32.totalorder %s15, 0
    %p98 = por %p96, %p97
    %s99 = ssub.s32 %s16, %s28
    %s100 = ssub.s32 %s17, %s24
    %s101 = sor.u32 %s99, %s100
    %p102 = scmp.eq.s32.totalorder %s101, 0
    %s104 = sadd.s32 %s103, 1
    %s105 = scalar_select %p102, %s103, %s104
    %p108 = pneg %p102
    %p109 = scmp.eq.s32.totalorder %s9, 3
    %p110 = por %p108, %p109
    %p111 = scmp.ne.s32.totalorder %s103, %s106
    %p112 = scmp.eq.s32.totalorder %s9, 0
    %p113 = por %p111, %p112
    %p114 = scmp.ne.s32.totalorder %s103, %s106
    %p115 = scmp.eq.s32.totalorder %s14, 3
    %p116 = por %p114, %p115
    %p117 = scmp.ne.s32.totalorder %s106, %s107
    %p118 = scmp.eq.s32.totalorder %s14, 0
    %p119 = por %p117, %p118
    %p120 = scmp.ne.s32.totalorder %s106, %s107
    %p121 = scmp.eq.s32.totalorder %s15, 3
    %p122 = por %p120, %p121
    %p124 = scmp.ne.s32.totalorder %s107, %s123
    %p125 = scmp.eq.s32.totalorder %s15, 0
    %p126 = por %p124, %p125
    %p127 = scmp.le.s32.totalorder 1, %s9
    %p128 = scmp.lt.s32.totalorder %s9, 5
    %p129 = pnand %p127, %p128
    %p130 = pneg %p129
    // Predicated region
    $region9: #{semantic_encoder_forward.4} parent=5 // pred_check
      _
    $region10: #{semantic_encoder_forward.4} parent=5 // pred_check_branch
      %132 = sbr.rel (%p129) target = $region12
    $region11: #{semantic_encoder_forward.4} parent=5 // pred_region
      %s133 = ssub.s32 %s9, 1
      // Predicated region
      $region13: #{semantic_encoder_forward.4} parent=11 // pred_check
        %p134 = pneg %p70
      $region14: #{semantic_encoder_forward.4} parent=11 // pred_check_branch
        %136 = sbr.rel (%p134) target = $region16
      $region15: #{semantic_encoder_forward.4} parent=11 // pred_region
        _
      $region16: #{semantic_encoder_forward.4} parent=11 // pred_fallthru
        _
      // Predicated region
      $region17: #{semantic_encoder_forward.4} parent=11 // pred_check
        %p137 = pneg %p91
      $region18: #{semantic_encoder_forward.4} parent=11 // pred_check_branch
        %139 = sbr.rel (%p137) target = $region20
      $region19: #{semantic_encoder_forward.4} parent=11 // pred_region
        _
      $region20: #{semantic_encoder_forward.4} parent=11 // pred_fallthru
        _
    $region12: #{semantic_encoder_forward.4} parent=5 // pred_fallthru
      _
    %p140 = scmp.lt.s32.totalorder %s9, 4
    // Predicated region
    $region21: #{semantic_encoder_forward.4} parent=5 // pred_check
      %p141 = pneg %p140
    $region22: #{semantic_encoder_forward.4} parent=5 // pred_check_branch
      %143 = sbr.rel (%p141) target = $region24
    $region23: #{semantic_encoder_forward.4} parent=5 // pred_region
      // Predicated region
      $region25: #{semantic_encoder_forward.4} parent=23 // pred_check
        %p144 = pneg %p43
      $region26: #{semantic_encoder_forward.4} parent=23 // pred_check_branch
        %146 = sbr.rel (%p144) target = $region28
      $region27: #{semantic_encoder_forward.4} parent=23 // pred_region
        %s147 = smul.u32 16, %s17
        %p148 = scmp.lt.s32.totalorder %s16, 1
        %s149 = scalar_select %p148, %s16, 1
        %p150 = scmp.lt.s32.totalorder %s147, 31
        %s151 = scalar_select %p150, %s147, 31
        %s152 = smul.addr %s151, 8
        %s153 = smul.addr %s149, 256
        %s154 = sadd.s32 %s152, %s153
        %s155 = smul.addr %s154, 4
        %s156 = scalar_lea.vmem %s0, %s155
        %s157 = smul.u32 16, %s17
      $region28: #{semantic_encoder_forward.4} parent=23 // pred_fallthru
        _
    $region24: #{semantic_encoder_forward.4} parent=5 // pred_fallthru
      _
    %p158 = scmp.le.s32.totalorder 1, %s9
    %p159 = scmp.lt.s32.totalorder %s9, 5
    %p160 = pnand %p158, %p159
    %p161 = pneg %p160
    // Predicated region
    $region29: #{semantic_encoder_forward.4} parent=5 // pred_check
      _
    $region30: #{semantic_encoder_forward.4} parent=5 // pred_check_branch
      %163 = sbr.rel (%p160) target = $region32
    $region31: #{semantic_encoder_forward.4} parent=5 // pred_region
      %s164 = ssub.s32 %s9, 1
      %s165 = smul.u32 16, %s19
      %p166 = scmp.lt.s32.totalorder %s18, 1
      %s167 = scalar_select %p166, %s18, 1
      %p168 = scmp.lt.s32.totalorder %s165, 31
      %s169 = scalar_select %p168, %s165, 31
      %s170 = smul.addr %s169, 8
      %s171 = smul.addr %s167, 256
      %s172 = sadd.s32 %s170, %s171
      %s173 = smul.addr %s172, 4
      %s174 = scalar_lea.vmem %s0, %s173
      %p175 = pneg %p49
      %p176 = pneg %p46
      %p177 = pneg %p70
      %p178 = pneg %p67
      %p179 = pneg %p91
      %p180 = pneg %p88
      %p181 = pneg %p119
      %p182 = pneg %p116
      %s183 = smul.u32 16, %s19
      %p184 = scmp.lt.s32.totalorder %s18, 1
      %s185 = scalar_select %p184, %s18, 1
      %p186 = scmp.lt.s32.totalorder %s183, 31
      %s187 = scalar_select %p186, %s183, 31
      %s188 = smul.addr %s185, 32
      %s189 = sadd.s32 %s187, %s188
      %s190 = smul.addr %s189, 4
      %s191 = scalar_lea.vmem %s3, %s190
      %s192 = smul.u32 16, %s19
      %p193 = scmp.lt.s32.totalorder %s18, 1
      %s194 = scalar_select %p193, %s18, 1
      %p195 = scmp.lt.s32.totalorder %s192, 31
      %s196 = scalar_select %p195, %s192, 31
      %s197 = smul.addr %s196, 8
      %s198 = smul.addr %s194, 256
      %s199 = sadd.s32 %s197, %s198
      %s200 = smul.addr %s199, 4
      %s201 = scalar_lea.vmem %s0, %s200
      %s202 = smul.u32 16, %s19
      %s203 = smul.u32 16, %s19
      %p204 = scmp.lt.s32.totalorder %s18, 1
      %s205 = scalar_select %p204, %s18, 1
      %p206 = scmp.lt.s32.totalorder %s203, 31
      %s207 = scalar_select %p206, %s203, 31
      %s208 = smul.addr %s205, 32
      %s209 = sadd.s32 %s207, %s208
      %s210 = smul.addr %s209, 4
      %s211 = scalar_lea.vmem %s3, %s210
      %s212 = smul.u32 16, %s19
      %v214 = vld [vmem:[%s201] sm:$0xff]
      %v215 = vld [vmem:[%s201 + $0x8] sm:$0xff]
      %v216 = vld [vmem:[%s201 + $0x10] sm:$0xff]
      %v217 = vld [vmem:[%s201 + $0x18] sm:$0xff]
      %v218 = vld [vmem:[%s201 + $0x20] sm:$0xff]
      %v219 = vld [vmem:[%s201 + $0x28] sm:$0xff]
      %v220 = vld [vmem:[%s201 + $0x30] sm:$0xff]
      %v221 = vld [vmem:[%s201 + $0x38] sm:$0xff]
      %v222 = vld [vmem:[%s201 + $0x40] sm:$0xff]
      %v223 = vld [vmem:[%s201 + $0x48] sm:$0xff]
      %v224 = vld [vmem:[%s201 + $0x50] sm:$0xff]
      %v225 = vld [vmem:[%s201 + $0x58] sm:$0xff]
      %v226 = vld [vmem:[%s201 + $0x60] sm:$0xff]
      %v227 = vld [vmem:[%s201 + $0x68] sm:$0xff]
      %v228 = vld [vmem:[%s201 + $0x70] sm:$0xff]
      %v229 = vld [vmem:[%s201 + $0x78] sm:$0xff]
      %v230 = vld [vmem:[%s201 + $0x80] sm:$0xff]
      %v231 = vld [vmem:[%s201 + $0x88] sm:$0xff]
      %v232 = vld [vmem:[%s201 + $0x90] sm:$0xff]
      %v233 = vld [vmem:[%s201 + $0x98] sm:$0xff]
      %v234 = vld [vmem:[%s201 + $0xa0] sm:$0xff]
      %v235 = vld [vmem:[%s201 + $0xa8] sm:$0xff]
      %v236 = vld [vmem:[%s201 + $0xb0] sm:$0xff]
      %v237 = vld [vmem:[%s201 + $0xb8] sm:$0xff]
      %v238 = vld [vmem:[%s201 + $0xc0] sm:$0xff]
      %v239 = vld [vmem:[%s201 + $0xc8] sm:$0xff]
      %v240 = vld [vmem:[%s201 + $0xd0] sm:$0xff]
      %v241 = vld [vmem:[%s201 + $0xd8] sm:$0xff]
      %v242 = vld [vmem:[%s201 + $0xe0] sm:$0xff]
      %v243 = vld [vmem:[%s201 + $0xe8] sm:$0xff]
      %v244 = vld [vmem:[%s201 + $0xf0] sm:$0xff]
      %v245 = vld [vmem:[%s201 + $0xf8] sm:$0xff]
      %v246 = vld [vmem:[%s201 + $0x100] sm:$0xff]
      %v247 = vld [vmem:[%s201 + $0x108] sm:$0xff]
      %v248 = vld [vmem:[%s201 + $0x110] sm:$0xff]
      %v249 = vld [vmem:[%s201 + $0x118] sm:$0xff]
      %v250 = vld [vmem:[%s201 + $0x120] sm:$0xff]
      %v251 = vld [vmem:[%s201 + $0x128] sm:$0xff]
      %v252 = vld [vmem:[%s201 + $0x130] sm:$0xff]
      %v253 = vld [vmem:[%s201 + $0x138] sm:$0xff]
      %v254 = vld [vmem:[%s201 + $0x140] sm:$0xff]
      %v255 = vld [vmem:[%s201 + $0x148] sm:$0xff]
      %v256 = vld [vmem:[%s201 + $0x150] sm:$0xff]
      %v257 = vld [vmem:[%s201 + $0x158] sm:$0xff]
      %v258 = vld [vmem:[%s201 + $0x160] sm:$0xff]
      %v259 = vld [vmem:[%s201 + $0x168] sm:$0xff]
      %v260 = vld [vmem:[%s201 + $0x170] sm:$0xff]
      %v261 = vld [vmem:[%s201 + $0x178] sm:$0xff]
      %v262 = vld [vmem:[%s201 + $0x180] sm:$0xff]
      %v263 = vld [vmem:[%s201 + $0x188] sm:$0xff]
      %v264 = vld [vmem:[%s201 + $0x190] sm:$0xff]
      %v265 = vld [vmem:[%s201 + $0x198] sm:$0xff]
      %v266 = vld [vmem:[%s201 + $0x1a0] sm:$0xff]
      %v267 = vld [vmem:[%s201 + $0x1a8] sm:$0xff]
      %v268 = vld [vmem:[%s201 + $0x1b0] sm:$0xff]
      %v269 = vld [vmem:[%s201 + $0x1b8] sm:$0xff]
      %v270 = vld [vmem:[%s201 + $0x1c0] sm:$0xff]
      %v271 = vld [vmem:[%s201 + $0x1c8] sm:$0xff]
      %v272 = vld [vmem:[%s201 + $0x1d0] sm:$0xff]
      %v273 = vld [vmem:[%s201 + $0x1d8] sm:$0xff]
      %v274 = vld [vmem:[%s201 + $0x1e0] sm:$0xff]
      %v275 = vld [vmem:[%s201 + $0x1e8] sm:$0xff]
      %v276 = vld [vmem:[%s201 + $0x1f0] sm:$0xff]
      %v277 = vld [vmem:[%s201 + $0x1f8] sm:$0xff]
      %v278 = vld [vmem:[%s1] sm:$0xf]
      %v279 = vld [vmem:[%s1 + $0x4] sm:$0xf]
      %v280 = vld [vmem:[%s1 + $0x8] sm:$0xf]
      %v281 = vld [vmem:[%s1 + $0xc] sm:$0xf]
      %v282 = vld [vmem:[%s1 + $0x10] sm:$0xf]
      %v283 = vld [vmem:[%s1 + $0x14] sm:$0xf]
      %v284 = vld [vmem:[%s1 + $0x18] sm:$0xf]
      %v285 = vld [vmem:[%s1 + $0x1c] sm:$0xf]
      %v286 = vld [vmem:[%s1 + $0x20] sm:$0xf]
      %v287 = vld [vmem:[%s1 + $0x24] sm:$0xf]
      %v288 = vld [vmem:[%s1 + $0x28] sm:$0xf]
      %v289 = vld [vmem:[%s1 + $0x2c] sm:$0xf]
      %v290 = vld [vmem:[%s1 + $0x30] sm:$0xf]
      %v291 = vld [vmem:[%s1 + $0x34] sm:$0xf]
      %v292 = vld [vmem:[%s1 + $0x38] sm:$0xf]
      %v293 = vld [vmem:[%s1 + $0x3c] sm:$0xf]
      %v294 = vld [vmem:[%s1 + $0x40] sm:$0xf]
      %v295 = vld [vmem:[%s1 + $0x44] sm:$0xf]
      %v296 = vld [vmem:[%s1 + $0x48] sm:$0xf]
      %v297 = vld [vmem:[%s1 + $0x4c] sm:$0xf]
      %v298 = vld [vmem:[%s1 + $0x50] sm:$0xf]
      %v299 = vld [vmem:[%s1 + $0x54] sm:$0xf]
      %v300 = vld [vmem:[%s1 + $0x58] sm:$0xf]
      %v301 = vld [vmem:[%s1 + $0x5c] sm:$0xf]
      %v302 = vld [vmem:[%s1 + $0x60] sm:$0xf]
      %v303 = vld [vmem:[%s1 + $0x64] sm:$0xf]
      %v304 = vld [vmem:[%s1 + $0x68] sm:$0xf]
      %v305 = vld [vmem:[%s1 + $0x6c] sm:$0xf]
      %v306 = vld [vmem:[%s1 + $0x70] sm:$0xf]
      %v307 = vld [vmem:[%s1 + $0x74] sm:$0xf]
      %v308 = vld [vmem:[%s1 + $0x78] sm:$0xf]
      %v309 = vld [vmem:[%s1 + $0x7c] sm:$0xf]
      %v310 = vld [vmem:[%s1 + $0x80] sm:$0xf]
      %v311 = vld [vmem:[%s1 + $0x84] sm:$0xf]
      %v312 = vld [vmem:[%s1 + $0x88] sm:$0xf]
      %v313 = vld [vmem:[%s1 + $0x8c] sm:$0xf]
      %v314 = vld [vmem:[%s1 + $0x90] sm:$0xf]
      %v315 = vld [vmem:[%s1 + $0x94] sm:$0xf]
      %v316 = vld [vmem:[%s1 + $0x98] sm:$0xf]
      %v317 = vld [vmem:[%s1 + $0x9c] sm:$0xf]
      %v318 = vld [vmem:[%s1 + $0xa0] sm:$0xf]
      %v319 = vld [vmem:[%s1 + $0xa4] sm:$0xf]
      %v320 = vld [vmem:[%s1 + $0xa8] sm:$0xf]
      %v321 = vld [vmem:[%s1 + $0xac] sm:$0xf]
      %v322 = vld [vmem:[%s1 + $0xb0] sm:$0xf]
      %v323 = vld [vmem:[%s1 + $0xb4] sm:$0xf]
      %v324 = vld [vmem:[%s1 + $0xb8] sm:$0xf]
      %v325 = vld [vmem:[%s1 + $0xbc] sm:$0xf]
      %v326 = vld [vmem:[%s1 + $0xc0] sm:$0xf]
      %v327 = vld [vmem:[%s1 + $0xc4] sm:$0xf]
      %v328 = vld [vmem:[%s1 + $0xc8] sm:$0xf]
      %v329 = vld [vmem:[%s1 + $0xcc] sm:$0xf]
      %v330 = vld [vmem:[%s1 + $0xd0] sm:$0xf]
      %v331 = vld [vmem:[%s1 + $0xd4] sm:$0xf]
      %v332 = vld [vmem:[%s1 + $0xd8] sm:$0xf]
      %v333 = vld [vmem:[%s1 + $0xdc] sm:$0xf]
      %v334 = vld [vmem:[%s1 + $0xe0] sm:$0xf]
      %v335 = vld [vmem:[%s1 + $0xe4] sm:$0xf]
      %v336 = vld [vmem:[%s1 + $0xe8] sm:$0xf]
      %v337 = vld [vmem:[%s1 + $0xec] sm:$0xf]
      %v338 = vld [vmem:[%s1 + $0xf0] sm:$0xf]
      %v339 = vld [vmem:[%s1 + $0xf4] sm:$0xf]
      %v340 = vld [vmem:[%s1 + $0xf8] sm:$0xf]
      %v341 = vld [vmem:[%s1 + $0xfc] sm:$0xf]
      %v342 = vld [vmem:[%s1 + $0x100] sm:$0xf]
      %v343 = vld [vmem:[%s1 + $0x104] sm:$0xf]
      %v344 = vld [vmem:[%s1 + $0x108] sm:$0xf]
      %v345 = vld [vmem:[%s1 + $0x10c] sm:$0xf]
      %v346 = vld [vmem:[%s1 + $0x110] sm:$0xf]
      %v347 = vld [vmem:[%s1 + $0x114] sm:$0xf]
      %v348 = vld [vmem:[%s1 + $0x118] sm:$0xf]
      %v349 = vld [vmem:[%s1 + $0x11c] sm:$0xf]
      %v350 = vld [vmem:[%s1 + $0x120] sm:$0xf]
      %v351 = vld [vmem:[%s1 + $0x124] sm:$0xf]
      %v352 = vld [vmem:[%s1 + $0x128] sm:$0xf]
      %v353 = vld [vmem:[%s1 + $0x12c] sm:$0xf]
      %v354 = vld [vmem:[%s1 + $0x130] sm:$0xf]
      %v355 = vld [vmem:[%s1 + $0x134] sm:$0xf]
      %v356 = vld [vmem:[%s1 + $0x138] sm:$0xf]
      %v357 = vld [vmem:[%s1 + $0x13c] sm:$0xf]
      %v358 = vld [vmem:[%s1 + $0x140] sm:$0xf]
      %v359 = vld [vmem:[%s1 + $0x144] sm:$0xf]
      %v360 = vld [vmem:[%s1 + $0x148] sm:$0xf]
      %v361 = vld [vmem:[%s1 + $0x14c] sm:$0xf]
      %v362 = vld [vmem:[%s1 + $0x150] sm:$0xf]
      %v363 = vld [vmem:[%s1 + $0x154] sm:$0xf]
      %v364 = vld [vmem:[%s1 + $0x158] sm:$0xf]
      %v365 = vld [vmem:[%s1 + $0x15c] sm:$0xf]
      %v366 = vld [vmem:[%s1 + $0x160] sm:$0xf]
      %v367 = vld [vmem:[%s1 + $0x164] sm:$0xf]
      %v368 = vld [vmem:[%s1 + $0x168] sm:$0xf]
      %v369 = vld [vmem:[%s1 + $0x16c] sm:$0xf]
      %v370 = vld [vmem:[%s1 + $0x170] sm:$0xf]
      %v371 = vld [vmem:[%s1 + $0x174] sm:$0xf]
      %v372 = vld [vmem:[%s1 + $0x178] sm:$0xf]
      %v373 = vld [vmem:[%s1 + $0x17c] sm:$0xf]
      %v374 = vld [vmem:[%s1 + $0x180] sm:$0xf]
      %v375 = vld [vmem:[%s1 + $0x184] sm:$0xf]
      %v376 = vld [vmem:[%s1 + $0x188] sm:$0xf]
      %v377 = vld [vmem:[%s1 + $0x18c] sm:$0xf]
      %v378 = vld [vmem:[%s1 + $0x190] sm:$0xf]
      %v379 = vld [vmem:[%s1 + $0x194] sm:$0xf]
      %v380 = vld [vmem:[%s1 + $0x198] sm:$0xf]
      %v381 = vld [vmem:[%s1 + $0x19c] sm:$0xf]
      %v382 = vld [vmem:[%s1 + $0x1a0] sm:$0xf]
      %v383 = vld [vmem:[%s1 + $0x1a4] sm:$0xf]
      %v384 = vld [vmem:[%s1 + $0x1a8] sm:$0xf]
      %v385 = vld [vmem:[%s1 + $0x1ac] sm:$0xf]
      %v386 = vld [vmem:[%s1 + $0x1b0] sm:$0xf]
      %v387 = vld [vmem:[%s1 + $0x1b4] sm:$0xf]
      %v388 = vld [vmem:[%s1 + $0x1b8] sm:$0xf]
      %v389 = vld [vmem:[%s1 + $0x1bc] sm:$0xf]
      %v390 = vld [vmem:[%s1 + $0x1c0] sm:$0xf]
      %v391 = vld [vmem:[%s1 + $0x1c4] sm:$0xf]
      %v392 = vld [vmem:[%s1 + $0x1c8] sm:$0xf]
      %v393 = vld [vmem:[%s1 + $0x1cc] sm:$0xf]
      %v394 = vld [vmem:[%s1 + $0x1d0] sm:$0xf]
      %v395 = vld [vmem:[%s1 + $0x1d4] sm:$0xf]
      %v396 = vld [vmem:[%s1 + $0x1d8] sm:$0xf]
      %v397 = vld [vmem:[%s1 + $0x1dc] sm:$0xf]
      %v398 = vld [vmem:[%s1 + $0x1e0] sm:$0xf]
      %v399 = vld [vmem:[%s1 + $0x1e4] sm:$0xf]
      %v400 = vld [vmem:[%s1 + $0x1e8] sm:$0xf]
      %v401 = vld [vmem:[%s1 + $0x1ec] sm:$0xf]
      %v402 = vld [vmem:[%s1 + $0x1f0] sm:$0xf]
      %v403 = vld [vmem:[%s1 + $0x1f4] sm:$0xf]
      %v404 = vld [vmem:[%s1 + $0x1f8] sm:$0xf]
      %v405 = vld [vmem:[%s1 + $0x1fc] sm:$0xf]
      %v406 = vld [vmem:[%s2] sm:$0x1]
      %v408 = vlaneseq
      %v409 = vshrl.u32 %v408, 7
      %v410 = vsub.s32 0, %v409
      %v411 = vrot.slane %v406, %v410
      %v477 = vunpack.c.l.b16 %v214
      %v478 = vunpack.c.h.b16 %v214
      %v479 = vunpack.c.l.b16 %v215
      %v480 = vunpack.c.h.b16 %v215
      %v481 = vunpack.c.l.b16 %v216
      %v482 = vunpack.c.h.b16 %v216
      %v483 = vunpack.c.l.b16 %v217
      %v484 = vunpack.c.h.b16 %v217
      %v485 = vunpack.c.l.b16 %v218
      %v486 = vunpack.c.h.b16 %v218
      %v487 = vunpack.c.l.b16 %v219
      %v488 = vunpack.c.h.b16 %v219
      %v489 = vunpack.c.l.b16 %v220
      %v490 = vunpack.c.h.b16 %v220
      %v491 = vunpack.c.l.b16 %v221
      %v492 = vunpack.c.h.b16 %v221
      %v493 = vunpack.c.l.b16 %v222
      %v494 = vunpack.c.h.b16 %v222
      %v495 = vunpack.c.l.b16 %v223
      %v496 = vunpack.c.h.b16 %v223
      %v497 = vunpack.c.l.b16 %v224
      %v498 = vunpack.c.h.b16 %v224
      %v499 = vunpack.c.l.b16 %v225
      %v500 = vunpack.c.h.b16 %v225
      %v501 = vunpack.c.l.b16 %v226
      %v502 = vunpack.c.h.b16 %v226
      %v503 = vunpack.c.l.b16 %v227
      %v504 = vunpack.c.h.b16 %v227
      %v505 = vunpack.c.l.b16 %v228
      %v506 = vunpack.c.h.b16 %v228
      %v507 = vunpack.c.l.b16 %v229
      %v508 = vunpack.c.h.b16 %v229
      %v509 = vunpack.c.l.b16 %v230
      %v510 = vunpack.c.h.b16 %v230
      %v511 = vunpack.c.l.b16 %v231
      %v512 = vunpack.c.h.b16 %v231
      %v513 = vunpack.c.l.b16 %v232
      %v514 = vunpack.c.h.b16 %v232
      %v515 = vunpack.c.l.b16 %v233
      %v516 = vunpack.c.h.b16 %v233
      %v517 = vunpack.c.l.b16 %v234
      %v518 = vunpack.c.h.b16 %v234
      %v519 = vunpack.c.l.b16 %v235
      %v520 = vunpack.c.h.b16 %v235
      %v521 = vunpack.c.l.b16 %v236
      %v522 = vunpack.c.h.b16 %v236
      %v523 = vunpack.c.l.b16 %v237
      %v524 = vunpack.c.h.b16 %v237
      %v525 = vunpack.c.l.b16 %v238
      %v526 = vunpack.c.h.b16 %v238
      %v527 = vunpack.c.l.b16 %v239
      %v528 = vunpack.c.h.b16 %v239
      %v529 = vunpack.c.l.b16 %v240
      %v530 = vunpack.c.h.b16 %v240
      %v531 = vunpack.c.l.b16 %v241
      %v532 = vunpack.c.h.b16 %v241
      %v533 = vunpack.c.l.b16 %v242
      %v534 = vunpack.c.h.b16 %v242
      %v535 = vunpack.c.l.b16 %v243
      %v536 = vunpack.c.h.b16 %v243
      %v537 = vunpack.c.l.b16 %v244
      %v538 = vunpack.c.h.b16 %v244
      %v539 = vunpack.c.l.b16 %v245
      %v540 = vunpack.c.h.b16 %v245
      %v541 = vunpack.c.l.b16 %v246
      %v542 = vunpack.c.h.b16 %v246
      %v543 = vunpack.c.l.b16 %v247
      %v544 = vunpack.c.h.b16 %v247
      %v545 = vunpack.c.l.b16 %v248
      %v546 = vunpack.c.h.b16 %v248
      %v547 = vunpack.c.l.b16 %v249
      %v548 = vunpack.c.h.b16 %v249
      %v549 = vunpack.c.l.b16 %v250
      %v550 = vunpack.c.h.b16 %v250
      %v551 = vunpack.c.l.b16 %v251
      %v552 = vunpack.c.h.b16 %v251
      %v553 = vunpack.c.l.b16 %v252
      %v554 = vunpack.c.h.b16 %v252
      %v555 = vunpack.c.l.b16 %v253
      %v556 = vunpack.c.h.b16 %v253
      %v557 = vunpack.c.l.b16 %v254
      %v558 = vunpack.c.h.b16 %v254
      %v559 = vunpack.c.l.b16 %v255
      %v560 = vunpack.c.h.b16 %v255
      %v561 = vunpack.c.l.b16 %v256
      %v562 = vunpack.c.h.b16 %v256
      %v563 = vunpack.c.l.b16 %v257
      %v564 = vunpack.c.h.b16 %v257
      %v565 = vunpack.c.l.b16 %v258
      %v566 = vunpack.c.h.b16 %v258
      %v567 = vunpack.c.l.b16 %v259
      %v568 = vunpack.c.h.b16 %v259
      %v569 = vunpack.c.l.b16 %v260
      %v570 = vunpack.c.h.b16 %v260
      %v571 = vunpack.c.l.b16 %v261
      %v572 = vunpack.c.h.b16 %v261
      %v573 = vunpack.c.l.b16 %v262
      %v574 = vunpack.c.h.b16 %v262
      %v575 = vunpack.c.l.b16 %v263
      %v576 = vunpack.c.h.b16 %v263
      %v577 = vunpack.c.l.b16 %v264
      %v578 = vunpack.c.h.b16 %v264
      %v579 = vunpack.c.l.b16 %v265
      %v580 = vunpack.c.h.b16 %v265
      %v581 = vunpack.c.l.b16 %v266
      %v582 = vunpack.c.h.b16 %v266
      %v583 = vunpack.c.l.b16 %v267
      %v584 = vunpack.c.h.b16 %v267
      %v585 = vunpack.c.l.b16 %v268
      %v586 = vunpack.c.h.b16 %v268
      %v587 = vunpack.c.l.b16 %v269
      %v588 = vunpack.c.h.b16 %v269
      %v589 = vunpack.c.l.b16 %v270
      %v590 = vunpack.c.h.b16 %v270
      %v591 = vunpack.c.l.b16 %v271
      %v592 = vunpack.c.h.b16 %v271
      %v593 = vunpack.c.l.b16 %v272
      %v594 = vunpack.c.h.b16 %v272
      %v595 = vunpack.c.l.b16 %v273
      %v596 = vunpack.c.h.b16 %v273
      %v597 = vunpack.c.l.b16 %v274
      %v598 = vunpack.c.h.b16 %v274
      %v599 = vunpack.c.l.b16 %v275
      %v600 = vunpack.c.h.b16 %v275
      %v601 = vunpack.c.l.b16 %v276
      %v602 = vunpack.c.h.b16 %v276
      %v603 = vunpack.c.l.b16 %v277
      %v604 = vunpack.c.h.b16 %v277
      %v605 = vpack.c.b16 %v485, %v477
      %v606 = vpack.c.b16 %v486, %v478
      %v607 = vpack.c.b16 %v487, %v479
      %v608 = vpack.c.b16 %v488, %v480
      %v609 = vpack.c.b16 %v489, %v481
      %v610 = vpack.c.b16 %v490, %v482
      %v611 = vpack.c.b16 %v491, %v483
      %v612 = vpack.c.b16 %v492, %v484
      %v613 = vpack.c.b16 %v501, %v493
      %v614 = vpack.c.b16 %v502, %v494
      %v615 = vpack.c.b16 %v503, %v495
      %v616 = vpack.c.b16 %v504, %v496
      %v617 = vpack.c.b16 %v505, %v497
      %v618 = vpack.c.b16 %v506, %v498
      %v619 = vpack.c.b16 %v507, %v499
      %v620 = vpack.c.b16 %v508, %v500
      %v621 = vpack.c.b16 %v517, %v509
      %v622 = vpack.c.b16 %v518, %v510
      %v623 = vpack.c.b16 %v519, %v511
      %v624 = vpack.c.b16 %v520, %v512
      %v625 = vpack.c.b16 %v521, %v513
      %v626 = vpack.c.b16 %v522, %v514
      %v627 = vpack.c.b16 %v523, %v515
      %v628 = vpack.c.b16 %v524, %v516
      %v629 = vpack.c.b16 %v533, %v525
      %v630 = vpack.c.b16 %v534, %v526
      %v631 = vpack.c.b16 %v535, %v527
      %v632 = vpack.c.b16 %v536, %v528
      %v633 = vpack.c.b16 %v537, %v529
      %v634 = vpack.c.b16 %v538, %v530
      %v635 = vpack.c.b16 %v539, %v531
      %v636 = vpack.c.b16 %v540, %v532
      %v637 = vpack.c.b16 %v549, %v541
      %v638 = vpack.c.b16 %v550, %v542
      %v639 = vpack.c.b16 %v551, %v543
      %v640 = vpack.c.b16 %v552, %v544
      %v641 = vpack.c.b16 %v553, %v545
      %v642 = vpack.c.b16 %v554, %v546
      %v643 = vpack.c.b16 %v555, %v547
      %v644 = vpack.c.b16 %v556, %v548
      %v645 = vpack.c.b16 %v565, %v557
      %v646 = vpack.c.b16 %v566, %v558
      %v647 = vpack.c.b16 %v567, %v559
      %v648 = vpack.c.b16 %v568, %v560
      %v649 = vpack.c.b16 %v569, %v561
      %v650 = vpack.c.b16 %v570, %v562
      %v651 = vpack.c.b16 %v571, %v563
      %v652 = vpack.c.b16 %v572, %v564
      %v653 = vpack.c.b16 %v581, %v573
      %v654 = vpack.c.b16 %v582, %v574
      %v655 = vpack.c.b16 %v583, %v575
      %v656 = vpack.c.b16 %v584, %v576
      %v657 = vpack.c.b16 %v585, %v577
      %v658 = vpack.c.b16 %v586, %v578
      %v659 = vpack.c.b16 %v587, %v579
      %v660 = vpack.c.b16 %v588, %v580
      %v661 = vpack.c.b16 %v597, %v589
      %v662 = vpack.c.b16 %v598, %v590
      %v663 = vpack.c.b16 %v599, %v591
      %v664 = vpack.c.b16 %v600, %v592
      %v665 = vpack.c.b16 %v601, %v593
      %v666 = vpack.c.b16 %v602, %v594
      %v667 = vpack.c.b16 %v603, %v595
      %v668 = vpack.c.b16 %v604, %v596
      %v861 = vunpack.c.l.b16 %v278
      %v862 = vunpack.c.l.b16 %v279
      %v863 = vunpack.c.l.b16 %v280
      %v864 = vunpack.c.l.b16 %v281
      %v865 = vunpack.c.l.b16 %v282
      %v866 = vunpack.c.l.b16 %v283
      %v867 = vunpack.c.l.b16 %v284
      %v868 = vunpack.c.l.b16 %v285
      %v869 = vunpack.c.l.b16 %v286
      %v870 = vunpack.c.l.b16 %v287
      %v871 = vunpack.c.l.b16 %v288
      %v872 = vunpack.c.l.b16 %v289
      %v873 = vunpack.c.l.b16 %v290
      %v874 = vunpack.c.l.b16 %v291
      %v875 = vunpack.c.l.b16 %v292
      %v876 = vunpack.c.l.b16 %v293
      %v877 = vunpack.c.l.b16 %v294
      %v878 = vunpack.c.l.b16 %v295
      %v879 = vunpack.c.l.b16 %v296
      %v880 = vunpack.c.l.b16 %v297
      %v881 = vunpack.c.l.b16 %v298
      %v882 = vunpack.c.l.b16 %v299
      %v883 = vunpack.c.l.b16 %v300
      %v884 = vunpack.c.l.b16 %v301
      %v885 = vunpack.c.l.b16 %v302
      %v886 = vunpack.c.l.b16 %v303
      %v887 = vunpack.c.l.b16 %v304
      %v888 = vunpack.c.l.b16 %v305
      %v889 = vunpack.c.l.b16 %v306
      %v890 = vunpack.c.l.b16 %v307
      %v891 = vunpack.c.l.b16 %v308
      %v892 = vunpack.c.l.b16 %v309
      %v893 = vunpack.c.l.b16 %v310
      %v894 = vunpack.c.l.b16 %v311
      %v895 = vunpack.c.l.b16 %v312
      %v896 = vunpack.c.l.b16 %v313
      %v897 = vunpack.c.l.b16 %v314
      %v898 = vunpack.c.l.b16 %v315
      %v899 = vunpack.c.l.b16 %v316
      %v900 = vunpack.c.l.b16 %v317
      %v901 = vunpack.c.l.b16 %v318
      %v902 = vunpack.c.l.b16 %v319
      %v903 = vunpack.c.l.b16 %v320
      %v904 = vunpack.c.l.b16 %v321
      %v905 = vunpack.c.l.b16 %v322
      %v906 = vunpack.c.l.b16 %v323
      %v907 = vunpack.c.l.b16 %v324
      %v908 = vunpack.c.l.b16 %v325
      %v909 = vunpack.c.l.b16 %v326
      %v910 = vunpack.c.l.b16 %v327
      %v911 = vunpack.c.l.b16 %v328
      %v912 = vunpack.c.l.b16 %v329
      %v913 = vunpack.c.l.b16 %v330
      %v914 = vunpack.c.l.b16 %v331
      %v915 = vunpack.c.l.b16 %v332
      %v916 = vunpack.c.l.b16 %v333
      %v917 = vunpack.c.l.b16 %v334
      %v918 = vunpack.c.l.b16 %v335
      %v919 = vunpack.c.l.b16 %v336
      %v920 = vunpack.c.l.b16 %v337
      %v921 = vunpack.c.l.b16 %v338
      %v922 = vunpack.c.l.b16 %v339
      %v923 = vunpack.c.l.b16 %v340
      %v924 = vunpack.c.l.b16 %v341
      %v925 = vunpack.c.l.b16 %v342
      %v926 = vunpack.c.l.b16 %v343
      %v927 = vunpack.c.l.b16 %v344
      %v928 = vunpack.c.l.b16 %v345
      %v929 = vunpack.c.l.b16 %v346
      %v930 = vunpack.c.l.b16 %v347
      %v931 = vunpack.c.l.b16 %v348
      %v932 = vunpack.c.l.b16 %v349
      %v933 = vunpack.c.l.b16 %v350
      %v934 = vunpack.c.l.b16 %v351
      %v935 = vunpack.c.l.b16 %v352
      %v936 = vunpack.c.l.b16 %v353
      %v937 = vunpack.c.l.b16 %v354
      %v938 = vunpack.c.l.b16 %v355
      %v939 = vunpack.c.l.b16 %v356
      %v940 = vunpack.c.l.b16 %v357
      %v941 = vunpack.c.l.b16 %v358
      %v942 = vunpack.c.l.b16 %v359
      %v943 = vunpack.c.l.b16 %v360
      %v944 = vunpack.c.l.b16 %v361
      %v945 = vunpack.c.l.b16 %v362
      %v946 = vunpack.c.l.b16 %v363
      %v947 = vunpack.c.l.b16 %v364
      %v948 = vunpack.c.l.b16 %v365
      %v949 = vunpack.c.l.b16 %v366
      %v950 = vunpack.c.l.b16 %v367
      %v951 = vunpack.c.l.b16 %v368
      %v952 = vunpack.c.l.b16 %v369
      %v953 = vunpack.c.l.b16 %v370
      %v954 = vunpack.c.l.b16 %v371
      %v955 = vunpack.c.l.b16 %v372
      %v956 = vunpack.c.l.b16 %v373
      %v957 = vunpack.c.l.b16 %v374
      %v958 = vunpack.c.l.b16 %v375
      %v959 = vunpack.c.l.b16 %v376
      %v960 = vunpack.c.l.b16 %v377
      %v961 = vunpack.c.l.b16 %v378
      %v962 = vunpack.c.l.b16 %v379
      %v963 = vunpack.c.l.b16 %v380
      %v964 = vunpack.c.l.b16 %v381
      %v965 = vunpack.c.l.b16 %v382
      %v966 = vunpack.c.l.b16 %v383
      %v967 = vunpack.c.l.b16 %v384
      %v968 = vunpack.c.l.b16 %v385
      %v969 = vunpack.c.l.b16 %v386
      %v970 = vunpack.c.l.b16 %v387
      %v971 = vunpack.c.l.b16 %v388
      %v972 = vunpack.c.l.b16 %v389
      %v973 = vunpack.c.l.b16 %v390
      %v974 = vunpack.c.l.b16 %v391
      %v975 = vunpack.c.l.b16 %v392
      %v976 = vunpack.c.l.b16 %v393
      %v977 = vunpack.c.l.b16 %v394
      %v978 = vunpack.c.l.b16 %v395
      %v979 = vunpack.c.l.b16 %v396
      %v980 = vunpack.c.l.b16 %v397
      %v981 = vunpack.c.l.b16 %v398
      %v982 = vunpack.c.l.b16 %v399
      %v983 = vunpack.c.l.b16 %v400
      %v984 = vunpack.c.l.b16 %v401
      %v985 = vunpack.c.l.b16 %v402
      %v986 = vunpack.c.l.b16 %v403
      %v987 = vunpack.c.l.b16 %v404
      %v988 = vunpack.c.l.b16 %v405
      %v989 = vpack.c.b16 %v862, %v861
      %v990 = vpack.c.b16 %v864, %v863
      %v991 = vpack.c.b16 %v866, %v865
      %v992 = vpack.c.b16 %v868, %v867
      %v993 = vpack.c.b16 %v870, %v869
      %v994 = vpack.c.b16 %v872, %v871
      %v995 = vpack.c.b16 %v874, %v873
      %v996 = vpack.c.b16 %v876, %v875
      %v997 = vpack.c.b16 %v878, %v877
      %v998 = vpack.c.b16 %v880, %v879
      %v999 = vpack.c.b16 %v882, %v881
      %v1000 = vpack.c.b16 %v884, %v883
      %v1001 = vpack.c.b16 %v886, %v885
      %v1002 = vpack.c.b16 %v888, %v887
      %v1003 = vpack.c.b16 %v890, %v889
      %v1004 = vpack.c.b16 %v892, %v891
      %v1005 = vpack.c.b16 %v894, %v893
      %v1006 = vpack.c.b16 %v896, %v895
      %v1007 = vpack.c.b16 %v898, %v897
      %v1008 = vpack.c.b16 %v900, %v899
      %v1009 = vpack.c.b16 %v902, %v901
      %v1010 = vpack.c.b16 %v904, %v903
      %v1011 = vpack.c.b16 %v906, %v905
      %v1012 = vpack.c.b16 %v908, %v907
      %v1013 = vpack.c.b16 %v910, %v909
      %v1014 = vpack.c.b16 %v912, %v911
      %v1015 = vpack.c.b16 %v914, %v913
      %v1016 = vpack.c.b16 %v916, %v915
      %v1017 = vpack.c.b16 %v918, %v917
      %v1018 = vpack.c.b16 %v920, %v919
      %v1019 = vpack.c.b16 %v922, %v921
      %v1020 = vpack.c.b16 %v924, %v923
      %v1021 = vpack.c.b16 %v926, %v925
      %v1022 = vpack.c.b16 %v928, %v927
      %v1023 = vpack.c.b16 %v930, %v929
      %v1024 = vpack.c.b16 %v932, %v931
      %v1025 = vpack.c.b16 %v934, %v933
      %v1026 = vpack.c.b16 %v936, %v935
      %v1027 = vpack.c.b16 %v938, %v937
      %v1028 = vpack.c.b16 %v940, %v939
      %v1029 = vpack.c.b16 %v942, %v941
      %v1030 = vpack.c.b16 %v944, %v943
      %v1031 = vpack.c.b16 %v946, %v945
      %v1032 = vpack.c.b16 %v948, %v947
      %v1033 = vpack.c.b16 %v950, %v949
      %v1034 = vpack.c.b16 %v952, %v951
      %v1035 = vpack.c.b16 %v954, %v953
      %v1036 = vpack.c.b16 %v956, %v955
      %v1037 = vpack.c.b16 %v958, %v957
      %v1038 = vpack.c.b16 %v960, %v959
      %v1039 = vpack.c.b16 %v962, %v961
      %v1040 = vpack.c.b16 %v964, %v963
      %v1041 = vpack.c.b16 %v966, %v965
      %v1042 = vpack.c.b16 %v968, %v967
      %v1043 = vpack.c.b16 %v970, %v969
      %v1044 = vpack.c.b16 %v972, %v971
      %v1045 = vpack.c.b16 %v974, %v973
      %v1046 = vpack.c.b16 %v976, %v975
      %v1047 = vpack.c.b16 %v978, %v977
      %v1048 = vpack.c.b16 %v980, %v979
      %v1049 = vpack.c.b16 %v982, %v981
      %v1050 = vpack.c.b16 %v984, %v983
      %v1051 = vpack.c.b16 %v986, %v985
      %v1052 = vpack.c.b16 %v988, %v987
      %1117 = vmatprep.subr.bf16.mxu0 0
      %1118 = vmatpush1.bf16.msra.mxu0 %v989
      %1119 = vmatprep.subr.bf16.mxu0 0
      %1120 = vmatpush1.bf16.msra.mxu0 %v990
      %1121 = vmatprep.subr.bf16.mxu0 0
      %1122 = vmatpush1.bf16.msra.mxu0 %v991
      %1123 = vmatprep.subr.bf16.mxu0 0
      %1124 = vmatpush1.bf16.msra.mxu0 %v992
      %1125 = vmatprep.subr.bf16.mxu0 0
      %1126 = vmatpush1.bf16.msra.mxu0 %v993
      %1127 = vmatprep.subr.bf16.mxu0 0
      %1128 = vmatpush1.bf16.msra.mxu0 %v994
      %1129 = vmatprep.subr.bf16.mxu0 0
      %1130 = vmatpush1.bf16.msra.mxu0 %v995
      %1131 = vmatprep.subr.bf16.mxu0 0
      %1132 = vmatpush1.bf16.msra.mxu0 %v996
      %1133 = vmatprep.subr.bf16.mxu0 0
      %1134 = vmatpush1.bf16.msra.mxu0 %v997
      %1135 = vmatprep.subr.bf16.mxu0 0
      %1136 = vmatpush1.bf16.msra.mxu0 %v998
      %1137 = vmatprep.subr.bf16.mxu0 0
      %1138 = vmatpush1.bf16.msra.mxu0 %v999
      %1139 = vmatprep.subr.bf16.mxu0 0
      %1140 = vmatpush1.bf16.msra.mxu0 %v1000
      %1141 = vmatprep.subr.bf16.mxu0 0
      %1142 = vmatpush1.bf16.msra.mxu0 %v1001
      %1143 = vmatprep.subr.bf16.mxu0 0
      %1144 = vmatpush1.bf16.msra.mxu0 %v1002
      %1145 = vmatprep.subr.bf16.mxu0 0
      %1146 = vmatpush1.bf16.msra.mxu0 %v1003
      %1147 = vmatprep.subr.bf16.mxu0 0
      %1148 = vmatpush1.bf16.msra.mxu0 %v1004
      %1149 = vmatprep.mubr.bf16.mxu0 %v606
      %1150 = vmatmul.mubr.bf16.gmra.mrb[0].mxu0 %v605
      %v1151 = vpop.f32.mrb[0].mxu0
      %v1152 = vadd.f32 %v411, %v1151
      %v1153 = vpop.f32.mrb[0].mxu0
      %v1154 = vpop.f32.mrb[0].mxu0
      %v1155 = vadd.f32 %v411, %v1154
      %v1156 = vpop.f32.mrb[0].mxu0
      %1157 = vmatprep.mubr.bf16.mxu0 %v614
      %1158 = vmatmul.mubr.bf16.gmra.mrb[0].mxu0 %v613
      %v1159 = vpop.f32.mrb[0].mxu0
      %v1160 = vadd.f32 %v411, %v1159
      %v1161 = vpop.f32.mrb[0].mxu0
      %v1162 = vpop.f32.mrb[0].mxu0
      %v1163 = vadd.f32 %v411, %v1162
      %v1164 = vpop.f32.mrb[0].mxu0
      %1165 = vmatprep.mubr.bf16.mxu0 %v622
      %1166 = vmatmul.mubr.bf16.gmra.mrb[0].mxu0 %v621
      %v1167 = vpop.f32.mrb[0].mxu0
      %v1168 = vadd.f32 %v411, %v1167
      %v1169 = vpop.f32.mrb[0].mxu0
      %v1170 = vpop.f32.mrb[0].mxu0
      %v1171 = vadd.f32 %v411, %v1170
      %v1172 = vpop.f32.mrb[0].mxu0
      %1173 = vmatprep.mubr.bf16.mxu0 %v630
      %1174 = vmatmul.mubr.bf16.gmra.mrb[0].mxu0 %v629
      %v1175 = vpop.f32.mrb[0].mxu0
      %v1176 = vadd.f32 %v411, %v1175
      %v1177 = vpop.f32.mrb[0].mxu0
      %v1178 = vpop.f32.mrb[0].mxu0
      %v1179 = vadd.f32 %v411, %v1178
      %v1180 = vpop.f32.mrb[0].mxu0
      %1181 = vmatprep.mubr.bf16.mxu0 %v638
      %1182 = vmatmul.mubr.bf16.gmra.mrb[0].mxu0 %v637
      %v1183 = vpop.f32.mrb[0].mxu0
      %v1184 = vadd.f32 %v411, %v1183
      %v1185 = vpop.f32.mrb[0].mxu0
      %v1186 = vpop.f32.mrb[0].mxu0
      %v1187 = vadd.f32 %v411, %v1186
      %v1188 = vpop.f32.mrb[0].mxu0
      %1189 = vmatprep.mubr.bf16.mxu0 %v646
      %1190 = vmatmul.mubr.bf16.gmra.mrb[0].mxu0 %v645
      %v1191 = vpop.f32.mrb[0].mxu0
      %v1192 = vadd.f32 %v411, %v1191
      %v1193 = vpop.f32.mrb[0].mxu0
      %v1194 = vpop.f32.mrb[0].mxu0
      %v1195 = vadd.f32 %v411, %v1194
      %v1196 = vpop.f32.mrb[0].mxu0
      %1197 = vmatprep.mubr.bf16.mxu0 %v654
      %1198 = vmatmul.mubr.bf16.gmra.mrb[0].mxu0 %v653
      %v1199 = vpop.f32.mrb[0].mxu0
      %v1200 = vadd.f32 %v411, %v1199
      %v1201 = vpop.f32.mrb[0].mxu0
      %v1202 = vpop.f32.mrb[0].mxu0
      %v1203 = vadd.f32 %v411, %v1202
      %v1204 = vpop.f32.mrb[0].mxu0
      %1205 = vmatprep.mubr.bf16.mxu0 %v662
      %1206 = vmatmul.mubr.bf16.gmra.mrb[0].mxu0 %v661
      %v1207 = vpop.f32.mrb[0].mxu0
      %v1208 = vadd.f32 %v411, %v1207
      %v1209 = vpop.f32.mrb[0].mxu0
      %v1210 = vpop.f32.mrb[0].mxu0
      %v1211 = vadd.f32 %v411, %v1210
      %v1212 = vpop.f32.mrb[0].mxu0
      %1213 = vdwg.mxu0
      %1214 = vmatprep.subr.bf16.mxu0 0
      %1215 = vmatpush1.bf16.msra.mxu0 %v1005
      %1216 = vmatprep.subr.bf16.mxu0 0
      %1217 = vmatpush1.bf16.msra.mxu0 %v1006
      %1218 = vmatprep.subr.bf16.mxu0 0
      %1219 = vmatpush1.bf16.msra.mxu0 %v1007
      %1220 = vmatprep.subr.bf16.mxu0 0
      %1221 = vmatpush1.bf16.msra.mxu0 %v1008
      %1222 = vmatprep.subr.bf16.mxu0 0
      %1223 = vmatpush1.bf16.msra.mxu0 %v1009
      %1224 = vmatprep.subr.bf16.mxu0 0
      %1225 = vmatpush1.bf16.msra.mxu0 %v1010
      %1226 = vmatprep.subr.bf16.mxu0 0
      %1227 = vmatpush1.bf16.msra.mxu0 %v1011
      %1228 = vmatprep.subr.bf16.mxu0 0
      %1229 = vmatpush1.bf16.msra.mxu0 %v1012
      %1230 = vmatprep.subr.bf16.mxu0 0
      %1231 = vmatpush1.bf16.msra.mxu0 %v1013
      %1232 = vmatprep.subr.bf16.mxu0 0
      %1233 = vmatpush1.bf16.msra.mxu0 %v1014
      %1234 = vmatprep.subr.bf16.mxu0 0
      %1235 = vmatpush1.bf16.msra.mxu0 %v1015
      %1236 = vmatprep.subr.bf16.mxu0 0
      %1237 = vmatpush1.bf16.msra.mxu0 %v1016
      %1238 = vmatprep.subr.bf16.mxu0 0
      %1239 = vmatpush1.bf16.msra.mxu0 %v1017
      %1240 = vmatprep.subr.bf16.mxu0 0
      %1241 = vmatpush1.bf16.msra.mxu0 %v1018
      %1242 = vmatprep.subr.bf16.mxu0 0
      %1243 = vmatpush1.bf16.msra.mxu0 %v1019
      %1244 = vmatprep.subr.bf16.mxu0 0
      %1245 = vmatpush1.bf16.msra.mxu0 %v1020
      %1246 = vmatprep.mubr.bf16.mxu0 %v608
      %1247 = vmatmul.mubr.bf16.gmra.mrb[0].mxu0 %v607
      %v1248 = vpop.f32.mrb[0].mxu0
      %v1249 = vadd.f32 %v1152, %v1248
      %v1250 = vpop.f32.mrb[0].mxu0
      %v1251 = vpop.f32.mrb[0].mxu0
      %v1252 = vadd.f32 %v1155, %v1251
      %v1253 = vpop.f32.mrb[0].mxu0
      %1254 = vmatprep.mubr.bf16.mxu0 %v616
      %1255 = vmatmul.mubr.bf16.gmra.mrb[0].mxu0 %v615
      %v1256 = vpop.f32.mrb[0].mxu0
      %v1257 = vadd.f32 %v1160, %v1256
      %v1258 = vpop.f32.mrb[0].mxu0
      %v1259 = vpop.f32.mrb[0].mxu0
      %v1260 = vadd.f32 %v1163, %v1259
      %v1261 = vpop.f32.mrb[0].mxu0
      %1262 = vmatprep.mubr.bf16.mxu0 %v624
      %1263 = vmatmul.mubr.bf16.gmra.mrb[0].mxu0 %v623
      %v1264 = vpop.f32.mrb[0].mxu0
      %v1265 = vadd.f32 %v1168, %v1264
      %v1266 = vpop.f32.mrb[0].mxu0
      %v1267 = vpop.f32.mrb[0].mxu0
      %v1268 = vadd.f32 %v1171, %v1267
      %v1269 = vpop.f32.mrb[0].mxu0
      %1270 = vmatprep.mubr.bf16.mxu0 %v632
      %1271 = vmatmul.mubr.bf16.gmra.mrb[0].mxu0 %v631
      %v1272 = vpop.f32.mrb[0].mxu0
      %v1273 = vadd.f32 %v1176, %v1272
      %v1274 = vpop.f32.mrb[0].mxu0
      %v1275 = vpop.f32.mrb[0].mxu0
      %v1276 = vadd.f32 %v1179, %v1275
      %v1277 = vpop.f32.mrb[0].mxu0
      %1278 = vmatprep.mubr.bf16.mxu0 %v640
      %1279 = vmatmul.mubr.bf16.gmra.mrb[0].mxu0 %v639
      %v1280 = vpop.f32.mrb[0].mxu0
      %v1281 = vadd.f32 %v1184, %v1280
      %v1282 = vpop.f32.mrb[0].mxu0
      %v1283 = vpop.f32.mrb[0].mxu0
      %v1284 = vadd.f32 %v1187, %v1283
      %v1285 = vpop.f32.mrb[0].mxu0
      %1286 = vmatprep.mubr.bf16.mxu0 %v648
      %1287 = vmatmul.mubr.bf16.gmra.mrb[0].mxu0 %v647
      %v1288 = vpop.f32.mrb[0].mxu0
      %v1289 = vadd.f32 %v1192, %v1288
      %v1290 = vpop.f32.mrb[0].mxu0
      %v1291 = vpop.f32.mrb[0].mxu0
      %v1292 = vadd.f32 %v1195, %v1291
      %v1293 = vpop.f32.mrb[0].mxu0
      %1294 = vmatprep.mubr.bf16.mxu0 %v656
      %1295 = vmatmul.mubr.bf16.gmra.mrb[0].mxu0 %v655
      %v1296 = vpop.f32.mrb[0].mxu0
      %v1297 = vadd.f32 %v1200, %v1296
      %v1298 = vpop.f32.mrb[0].mxu0
      %v1299 = vpop.f32.mrb[0].mxu0
      %v1300 = vadd.f32 %v1203, %v1299
      %v1301 = vpop.f32.mrb[0].mxu0
      %1302 = vmatprep.mubr.bf16.mxu0 %v664
      %1303 = vmatmul.mubr.bf16.gmra.mrb[0].mxu0 %v663
      %v1304 = vpop.f32.mrb[0].mxu0
      %v1305 = vadd.f32 %v1208, %v1304
      %v1306 = vpop.f32.mrb[0].mxu0
      %v1307 = vpop.f32.mrb[0].mxu0
      %v1308 = vadd.f32 %v1211, %v1307
      %v1309 = vpop.f32.mrb[0].mxu0
      %1310 = vdwg.mxu0
      %1311 = vmatprep.subr.bf16.mxu0 0
      %1312 = vmatpush1.bf16.msra.mxu0 %v1021
      %1313 = vmatprep.subr.bf16.mxu0 0
      %1314 = vmatpush1.bf16.msra.mxu0 %v1022
      %1315 = vmatprep.subr.bf16.mxu0 0
      %1316 = vmatpush1.bf16.msra.mxu0 %v1023
      %1317 = vmatprep.subr.bf16.mxu0 0
      %1318 = vmatpush1.bf16.msra.mxu0 %v1024
      %1319 = vmatprep.subr.bf16.mxu0 0
      %1320 = vmatpush1.bf16.msra.mxu0 %v1025
      %1321 = vmatprep.subr.bf16.mxu0 0
      %1322 = vmatpush1.bf16.msra.mxu0 %v1026
      %1323 = vmatprep.subr.bf16.mxu0 0
      %1324 = vmatpush1.bf16.msra.mxu0 %v1027
      %1325 = vmatprep.subr.bf16.mxu0 0
      %1326 = vmatpush1.bf16.msra.mxu0 %v1028
      %1327 = vmatprep.subr.bf16.mxu0 0
      %1328 = vmatpush1.bf16.msra.mxu0 %v1029
      %1329 = vmatprep.subr.bf16.mxu0 0
      %1330 = vmatpush1.bf16.msra.mxu0 %v1030
      %1331 = vmatprep.subr.bf16.mxu0 0
      %1332 = vmatpush1.bf16.msra.mxu0 %v1031
      %1333 = vmatprep.subr.bf16.mxu0 0
      %1334 = vmatpush1.bf16.msra.mxu0 %v1032
      %1335 = vmatprep.subr.bf16.mxu0 0
      %1336 = vmatpush1.bf16.msra.mxu0 %v1033
      %1337 = vmatprep.subr.bf16.mxu0 0
      %1338 = vmatpush1.bf16.msra.mxu0 %v1034
      %1339 = vmatprep.subr.bf16.mxu0 0
      %1340 = vmatpush1.bf16.msra.mxu0 %v1035
      %1341 = vmatprep.subr.bf16.mxu0 0
      %1342 = vmatpush1.bf16.msra.mxu0 %v1036
      %1343 = vmatprep.mubr.bf16.mxu0 %v610
      %1344 = vmatmul.mubr.bf16.gmra.mrb[0].mxu0 %v609
      %v1345 = vpop.f32.mrb[0].mxu0
      %v1346 = vadd.f32 %v1249, %v1345
      %v1347 = vpop.f32.mrb[0].mxu0
      %v1348 = vpop.f32.mrb[0].mxu0
      %v1349 = vadd.f32 %v1252, %v1348
      %v1350 = vpop.f32.mrb[0].mxu0
      %1351 = vmatprep.mubr.bf16.mxu0 %v618
      %1352 = vmatmul.mubr.bf16.gmra.mrb[0].mxu0 %v617
      %v1353 = vpop.f32.mrb[0].mxu0
      %v1354 = vadd.f32 %v1257, %v1353
      %v1355 = vpop.f32.mrb[0].mxu0
      %v1356 = vpop.f32.mrb[0].mxu0
      %v1357 = vadd.f32 %v1260, %v1356
      %v1358 = vpop.f32.mrb[0].mxu0
      %1359 = vmatprep.mubr.bf16.mxu0 %v626
      %1360 = vmatmul.mubr.bf16.gmra.mrb[0].mxu0 %v625
      %v1361 = vpop.f32.mrb[0].mxu0
      %v1362 = vadd.f32 %v1265, %v1361
      %v1363 = vpop.f32.mrb[0].mxu0
      %v1364 = vpop.f32.mrb[0].mxu0
      %v1365 = vadd.f32 %v1268, %v1364
      %v1366 = vpop.f32.mrb[0].mxu0
      %1367 = vmatprep.mubr.bf16.mxu0 %v634
      %1368 = vmatmul.mubr.bf16.gmra.mrb[0].mxu0 %v633
      %v1369 = vpop.f32.mrb[0].mxu0
      %v1370 = vadd.f32 %v1273, %v1369
      %v1371 = vpop.f32.mrb[0].mxu0
      %v1372 = vpop.f32.mrb[0].mxu0
      %v1373 = vadd.f32 %v1276, %v1372
      %v1374 = vpop.f32.mrb[0].mxu0
      %1375 = vmatprep.mubr.bf16.mxu0 %v642
      %1376 = vmatmul.mubr.bf16.gmra.mrb[0].mxu0 %v641
      %v1377 = vpop.f32.mrb[0].mxu0
      %v1378 = vadd.f32 %v1281, %v1377
      %v1379 = vpop.f32.mrb[0].mxu0
      %v1380 = vpop.f32.mrb[0].mxu0
      %v1381 = vadd.f32 %v1284, %v1380
      %v1382 = vpop.f32.mrb[0].mxu0
      %1383 = vmatprep.mubr.bf16.mxu0 %v650
      %1384 = vmatmul.mubr.bf16.gmra.mrb[0].mxu0 %v649
      %v1385 = vpop.f32.mrb[0].mxu0
      %v1386 = vadd.f32 %v1289, %v1385
      %v1387 = vpop.f32.mrb[0].mxu0
      %v1388 = vpop.f32.mrb[0].mxu0
      %v1389 = vadd.f32 %v1292, %v1388
      %v1390 = vpop.f32.mrb[0].mxu0
      %1391 = vmatprep.mubr.bf16.mxu0 %v658
      %1392 = vmatmul.mubr.bf16.gmra.mrb[0].mxu0 %v657
      %v1393 = vpop.f32.mrb[0].mxu0
      %v1394 = vadd.f32 %v1297, %v1393
      %v1395 = vpop.f32.mrb[0].mxu0
      %v1396 = vpop.f32.mrb[0].mxu0
      %v1397 = vadd.f32 %v1300, %v1396
      %v1398 = vpop.f32.mrb[0].mxu0
      %1399 = vmatprep.mubr.bf16.mxu0 %v666
      %1400 = vmatmul.mubr.bf16.gmra.mrb[0].mxu0 %v665
      %v1401 = vpop.f32.mrb[0].mxu0
      %v1402 = vadd.f32 %v1305, %v1401
      %v1403 = vpop.f32.mrb[0].mxu0
      %v1404 = vpop.f32.mrb[0].mxu0
      %v1405 = vadd.f32 %v1308, %v1404
      %v1406 = vpop.f32.mrb[0].mxu0
      %1407 = vdwg.mxu0
      %1408 = vmatprep.subr.bf16.mxu0 0
      %1409 = vmatpush1.bf16.msra.mxu0 %v1037
      %1410 = vmatprep.subr.bf16.mxu0 0
      %1411 = vmatpush1.bf16.msra.mxu0 %v1038
      %1412 = vmatprep.subr.bf16.mxu0 0
      %1413 = vmatpush1.bf16.msra.mxu0 %v1039
      %1414 = vmatprep.subr.bf16.mxu0 0
      %1415 = vmatpush1.bf16.msra.mxu0 %v1040
      %1416 = vmatprep.subr.bf16.mxu0 0
      %1417 = vmatpush1.bf16.msra.mxu0 %v1041
      %1418 = vmatprep.subr.bf16.mxu0 0
      %1419 = vmatpush1.bf16.msra.mxu0 %v1042
      %1420 = vmatprep.subr.bf16.mxu0 0
      %1421 = vmatpush1.bf16.msra.mxu0 %v1043
      %1422 = vmatprep.subr.bf16.mxu0 0
      %1423 = vmatpush1.bf16.msra.mxu0 %v1044
      %1424 = vmatprep.subr.bf16.mxu0 0
      %1425 = vmatpush1.bf16.msra.mxu0 %v1045
      %1426 = vmatprep.subr.bf16.mxu0 0
      %1427 = vmatpush1.bf16.msra.mxu0 %v1046
      %1428 = vmatprep.subr.bf16.mxu0 0
      %1429 = vmatpush1.bf16.msra.mxu0 %v1047
      %1430 = vmatprep.subr.bf16.mxu0 0
      %1431 = vmatpush1.bf16.msra.mxu0 %v1048
      %1432 = vmatprep.subr.bf16.mxu0 0
      %1433 = vmatpush1.bf16.msra.mxu0 %v1049
      %1434 = vmatprep.subr.bf16.mxu0 0
      %1435 = vmatpush1.bf16.msra.mxu0 %v1050
      %1436 = vmatprep.subr.bf16.mxu0 0
      %1437 = vmatpush1.bf16.msra.mxu0 %v1051
      %1438 = vmatprep.subr.bf16.mxu0 0
      %1439 = vmatpush1.bf16.msra.mxu0 %v1052
      %1440 = vmatprep.mubr.bf16.mxu0 %v612
      %1441 = vmatmul.mubr.bf16.gmra.mrb[0].mxu0 %v611
      %v1442 = vpop.f32.mrb[0].mxu0
      %v1443 = vadd.f32 %v1346, %v1442
      %v1444 = vpop.f32.mrb[0].mxu0
      %v1445 = vpop.f32.mrb[0].mxu0
      %v1446 = vadd.f32 %v1349, %v1445
      %v1447 = vpop.f32.mrb[0].mxu0
      %1448 = vmatprep.mubr.bf16.mxu0 %v620
      %1449 = vmatmul.mubr.bf16.gmra.mrb[0].mxu0 %v619
      %v1450 = vpop.f32.mrb[0].mxu0
      %v1451 = vadd.f32 %v1354, %v1450
      %v1452 = vpop.f32.mrb[0].mxu0
      %v1453 = vpop.f32.mrb[0].mxu0
      %v1454 = vadd.f32 %v1357, %v1453
      %v1455 = vpop.f32.mrb[0].mxu0
      %1456 = vmatprep.mubr.bf16.mxu0 %v628
      %1457 = vmatmul.mubr.bf16.gmra.mrb[0].mxu0 %v627
      %v1458 = vpop.f32.mrb[0].mxu0
      %v1459 = vadd.f32 %v1362, %v1458
      %v1460 = vpop.f32.mrb[0].mxu0
      %v1461 = vpop.f32.mrb[0].mxu0
      %v1462 = vadd.f32 %v1365, %v1461
      %v1463 = vpop.f32.mrb[0].mxu0
      %1464 = vmatprep.mubr.bf16.mxu0 %v636
      %1465 = vmatmul.mubr.bf16.gmra.mrb[0].mxu0 %v635
      %v1466 = vpop.f32.mrb[0].mxu0
      %v1467 = vadd.f32 %v1370, %v1466
      %v1468 = vpop.f32.mrb[0].mxu0
      %v1469 = vpop.f32.mrb[0].mxu0
      %v1470 = vadd.f32 %v1373, %v1469
      %v1471 = vpop.f32.mrb[0].mxu0
      %1472 = vmatprep.mubr.bf16.mxu0 %v644
      %1473 = vmatmul.mubr.bf16.gmra.mrb[0].mxu0 %v643
      %v1474 = vpop.f32.mrb[0].mxu0
      %v1475 = vadd.f32 %v1378, %v1474
      %v1476 = vpop.f32.mrb[0].mxu0
      %v1477 = vpop.f32.mrb[0].mxu0
      %v1478 = vadd.f32 %v1381, %v1477
      %v1479 = vpop.f32.mrb[0].mxu0
      %1480 = vmatprep.mubr.bf16.mxu0 %v652
      %1481 = vmatmul.mubr.bf16.gmra.mrb[0].mxu0 %v651
      %v1482 = vpop.f32.mrb[0].mxu0
      %v1483 = vadd.f32 %v1386, %v1482
      %v1484 = vpop.f32.mrb[0].mxu0
      %v1485 = vpop.f32.mrb[0].mxu0
      %v1486 = vadd.f32 %v1389, %v1485
      %v1487 = vpop.f32.mrb[0].mxu0
      %1488 = vmatprep.mubr.bf16.mxu0 %v660
      %1489 = vmatmul.mubr.bf16.gmra.mrb[0].mxu0 %v659
      %v1490 = vpop.f32.mrb[0].mxu0
      %v1491 = vadd.f32 %v1394, %v1490
      %v1492 = vpop.f32.mrb[0].mxu0
      %v1493 = vpop.f32.mrb[0].mxu0
      %v1494 = vadd.f32 %v1397, %v1493
      %v1495 = vpop.f32.mrb[0].mxu0
      %1496 = vmatprep.mubr.bf16.mxu0 %v668
      %1497 = vmatmul.mubr.bf16.gmra.mrb[0].mxu0 %v667
      %v1498 = vpop.f32.mrb[0].mxu0
      %v1499 = vadd.f32 %v1402, %v1498
      %v1500 = vpop.f32.mrb[0].mxu0
      %v1501 = vpop.f32.mrb[0].mxu0
      %v1502 = vadd.f32 %v1405, %v1501
      %v1503 = vpop.f32.mrb[0].mxu0
      %1504 = vdwg.mxu0
      %v1505 = vmax.f32 %v1443, 0.0
      %v1506 = vmax.f32 %v1446, 0.0
      %v1507 = vmax.f32 %v1451, 0.0
      %v1508 = vmax.f32 %v1454, 0.0
      %v1509 = vmax.f32 %v1459, 0.0
      %v1510 = vmax.f32 %v1462, 0.0
      %v1511 = vmax.f32 %v1467, 0.0
      %v1512 = vmax.f32 %v1470, 0.0
      %v1513 = vmax.f32 %v1475, 0.0
      %v1514 = vmax.f32 %v1478, 0.0
      %v1515 = vmax.f32 %v1483, 0.0
      %v1516 = vmax.f32 %v1486, 0.0
      %v1517 = vmax.f32 %v1491, 0.0
      %v1518 = vmax.f32 %v1494, 0.0
      %v1519 = vmax.f32 %v1499, 0.0
      %v1520 = vmax.f32 %v1502, 0.0
      %v1521 = vpack.c.bf16 %v1506, %v1505
      %v1522 = vpack.c.bf16 %v1508, %v1507
      %v1523 = vpack.c.bf16 %v1510, %v1509
      %v1524 = vpack.c.bf16 %v1512, %v1511
      %v1525 = vpack.c.bf16 %v1514, %v1513
      %v1526 = vpack.c.bf16 %v1516, %v1515
      %v1527 = vpack.c.bf16 %v1518, %v1517
      %v1528 = vpack.c.bf16 %v1520, %v1519
      %v1537 = vunpack.c.l.b16 %v1521
      %v1538 = vunpack.c.h.b16 %v1521
      %v1539 = vunpack.c.l.b16 %v1522
      %v1540 = vunpack.c.h.b16 %v1522
      %v1541 = vunpack.c.l.b16 %v1523
      %v1542 = vunpack.c.h.b16 %v1523
      %v1543 = vunpack.c.l.b16 %v1524
      %v1544 = vunpack.c.h.b16 %v1524
      %v1545 = vunpack.c.l.b16 %v1525
      %v1546 = vunpack.c.h.b16 %v1525
      %v1547 = vunpack.c.l.b16 %v1526
      %v1548 = vunpack.c.h.b16 %v1526
      %v1549 = vunpack.c.l.b16 %v1527
      %v1550 = vunpack.c.h.b16 %v1527
      %v1551 = vunpack.c.l.b16 %v1528
      %v1552 = vunpack.c.h.b16 %v1528
      %v1553 = vpack.c.b16 %v1537, %v1537
      %v1554 = vpack.c.b16 %v1538, %v1538
      %v1555 = vpack.c.b16 %v1539, %v1539
      %v1556 = vpack.c.b16 %v1540, %v1540
      %v1557 = vpack.c.b16 %v1541, %v1541
      %v1558 = vpack.c.b16 %v1542, %v1542
      %v1559 = vpack.c.b16 %v1543, %v1543
      %v1560 = vpack.c.b16 %v1544, %v1544
      %v1561 = vpack.c.b16 %v1545, %v1545
      %v1562 = vpack.c.b16 %v1546, %v1546
      %v1563 = vpack.c.b16 %v1547, %v1547
      %v1564 = vpack.c.b16 %v1548, %v1548
      %v1565 = vpack.c.b16 %v1549, %v1549
      %v1566 = vpack.c.b16 %v1550, %v1550
      %v1567 = vpack.c.b16 %v1551, %v1551
      %v1568 = vpack.c.b16 %v1552, %v1552
      %1585 = vst [vmem:[%s211] sm:$0xf] %v1553
      %1586 = vst [vmem:[%s211 + $0x4] sm:$0xf] %v1554
      %1587 = vst [vmem:[%s211 + $0x8] sm:$0xf] %v1555
      %1588 = vst [vmem:[%s211 + $0xc] sm:$0xf] %v1556
      %1589 = vst [vmem:[%s211 + $0x10] sm:$0xf] %v1557
      %1590 = vst [vmem:[%s211 + $0x14] sm:$0xf] %v1558
      %1591 = vst [vmem:[%s211 + $0x18] sm:$0xf] %v1559
      %1592 = vst [vmem:[%s211 + $0x1c] sm:$0xf] %v1560
      %1593 = vst [vmem:[%s211 + $0x20] sm:$0xf] %v1561
      %1594 = vst [vmem:[%s211 + $0x24] sm:$0xf] %v1562
      %1595 = vst [vmem:[%s211 + $0x28] sm:$0xf] %v1563
      %1596 = vst [vmem:[%s211 + $0x2c] sm:$0xf] %v1564
      %1597 = vst [vmem:[%s211 + $0x30] sm:$0xf] %v1565
      %1598 = vst [vmem:[%s211 + $0x34] sm:$0xf] %v1566
      %1599 = vst [vmem:[%s211 + $0x38] sm:$0xf] %v1567
      %1600 = vst [vmem:[%s211 + $0x3c] sm:$0xf] %v1568
      %s1601 = smul.u32 16, %s19
      %p1602 = scmp.lt.s32.totalorder %s18, 1
      %s1603 = scalar_select %p1602, %s18, 1
      %p1604 = scmp.lt.s32.totalorder %s1601, 31
      %s1605 = scalar_select %p1604, %s1601, 31
      %s1606 = smul.addr %s1603, 32
      %s1607 = sadd.s32 %s1605, %s1606
      %s1608 = smul.addr %s1607, 4
      %s1609 = scalar_lea.vmem %s3, %s1608
      // Predicated region
      $region33: #{semantic_encoder_forward.4} parent=31 // pred_check
        %p1610 = pneg %p116
      $region34: #{semantic_encoder_forward.4} parent=31 // pred_check_branch
        %1612 = sbr.rel (%p1610) target = $region36
      $region35: #{semantic_encoder_forward.4} parent=31 // pred_region
        %s1613 = smul.u32 16, %s19
      $region36: #{semantic_encoder_forward.4} parent=31 // pred_fallthru
        _
    $region32: #{semantic_encoder_forward.4} parent=5 // pred_fallthru
      _
    %p1614 = scmp.le.s32.totalorder 2, %s9
    // Predicated region
    $region37: #{semantic_encoder_forward.4} parent=5 // pred_check
      %p1615 = pneg %p1614
    $region38: #{semantic_encoder_forward.4} parent=5 // pred_check_branch
      %1617 = sbr.rel (%p1615) target = $region40
    $region39: #{semantic_encoder_forward.4} parent=5 // pred_region
      %s1618 = ssub.s32 %s9, 2
      // Predicated region
      $region41: #{semantic_encoder_forward.4} parent=39 // pred_check
        %p1619 = pneg %p122
      $region42: #{semantic_encoder_forward.4} parent=39 // pred_check_branch
        %1621 = sbr.rel (%p1619) target = $region44
      $region43: #{semantic_encoder_forward.4} parent=39 // pred_region
        %s1622 = smul.u32 16, %s21
        %p1623 = scmp.lt.s32.totalorder %s20, 1
        %s1624 = scalar_select %p1623, %s20, 1
        %p1625 = scmp.lt.s32.totalorder %s1622, 31
        %s1626 = scalar_select %p1625, %s1622, 31
        %s1627 = smul.addr %s1624, 32
        %s1628 = sadd.s32 %s1626, %s1627
        %s1629 = smul.addr %s1628, 4
        %s1630 = scalar_lea.vmem %s3, %s1629
      $region44: #{semantic_encoder_forward.4} parent=39 // pred_fallthru
        _
    $region40: #{semantic_encoder_forward.4} parent=5 // pred_fallthru
      _
  $region6: #{semantic_encoder_forward.4} parent=0 // loop_footer
    %s13 = sadd.s32 1, %s9
  $region7: #{semantic_encoder_forward.4} parent=0 // loop_footer_branch
    %8 = sbr.rel target = $region3
  $region8: #{semantic_encoder_forward.4} parent=0 // loop_exit
    _

// kernel: semantic_encoder_forward.5
$region0: #{semantic_encoder_forward.5}
  #allocation0 [shape = 'u32[]', space=smem, size = 0x4, offset = 0x4, fixed_abs, tag = 'smem constant byte address 0x4 - core index']
  #allocation1 [shape = 'u32[144,128]{1,0:T(1,128)}', space=vmem, size = 0x12000, scoped, tag = 'internal scratch']
  %s0 = inlined_call_operand.vmem [shape: bf16[2,64,384], index: 0, kind: input, shape index: {}]
  %s1 = inlined_call_operand.vmem [shape: bf16[384,128], index: 1, kind: input, shape index: {}]
  %s2 = inlined_call_operand.vmem [shape: f32[1,128], index: 2, kind: input, shape index: {}]
  %s3 = inlined_call_operand.vmem [shape: bf16[2,64,128], index: 3, kind: output, shape index: {}]
  %s4 = sld [smem:[#allocation0]]
  $region45: #{semantic_encoder_forward.5} parent=0
    _
  %s6 = ssub.s32 1, %s4
  %s7 = scalar_select 0, %s6, %s4
  loop: start=0, step=1, limit=4
  $region2: #{semantic_encoder_forward.5} parent=0 // loop_pre_header
    _
  $region3: #{semantic_encoder_forward.5} parent=0 // loop_header
    %s9 = sphi 0, %s13
    %p10 = scmp.ge.s32.totalorder %s9, 4
    %s16 = sphi 0, %s28
    %s17 = sphi 0, %s24
    %s18 = sphi 0, %s16
    %s19 = sphi 0, %s17
    %s20 = sphi 0, %s18
    %s21 = sphi 0, %s19
    %s33 = sphi 0, %s35
    %s36 = sphi 0, %s33
    %s37 = sphi 0, %s36
    %s53 = sphi 0, %s37
    %s57 = sphi 0, %s57
    %s59 = sphi 0, %s57
    %s60 = sphi 0, %s59
    %s74 = sphi 0, %s60
    %s78 = sphi 0, %s78
    %s80 = sphi 0, %s78
    %s81 = sphi 0, %s80
    %s95 = sphi 0, %s81
    %s103 = sphi 0, %s105
    %s106 = sphi 0, %s103
    %s107 = sphi 0, %s106
    %s123 = sphi 0, %s107
  $region4: #{semantic_encoder_forward.5} parent=0 // loop_header_branch
    %12 = sbr.rel (%p10) target = $region8
  $region5: #{semantic_encoder_forward.5} parent=0 // loop_body
    %s14 = ssub.s32 %s9, 1
    %s15 = ssub.s32 %s9, 2
    %s22 = sadd.s32 1, %s17
    %p23 = scmp.ge.s32.totalorder %s22, 1
    %s24 = scalar_select %p23, 0, %s22
    %s25 = sadd.s32 1, %s16
    %s26 = scalar_select %p23, %s25, %s16
    %p27 = scmp.ge.s32.totalorder %s26, 2
    %s28 = scalar_select %p27, 0, %s26
    %s29 = ssub.s32 %s16, %s28
    %s30 = ssub.s32 %s17, %s24
    %s31 = sor.u32 %s29, %s30
    %p32 = scmp.eq.s32.totalorder %s31, 0
    %s34 = sadd.s32 %s33, 1
    %s35 = scalar_select %p32, %s33, %s34
    %p38 = pneg %p32
    %p39 = scmp.eq.s32.totalorder %s9, 1
    %p40 = por %p38, %p39
    %p41 = scmp.ne.s32.totalorder %s33, %s36
    %p42 = scmp.eq.s32.totalorder %s9, 0
    %p43 = por %p41, %p42
    %p44 = scmp.ne.s32.totalorder %s33, %s36
    %p45 = scmp.eq.s32.totalorder %s14, 1
    %p46 = por %p44, %p45
    %p47 = scmp.ne.s32.totalorder %s36, %s37
    %p48 = scmp.eq.s32.totalorder %s14, 0
    %p49 = por %p47, %p48
    %p50 = scmp.ne.s32.totalorder %s36, %s37
    %p51 = scmp.eq.s32.totalorder %s15, 1
    %p52 = por %p50, %p51
    %p54 = scmp.ne.s32.totalorder %s37, %s53
    %p55 = scmp.eq.s32.totalorder %s15, 0
    %p56 = por %p54, %p55
    %s58 = sadd.s32 %s57, 1
    %p61 = scmp.eq.s32.totalorder %s9, 1
    %p62 = scmp.ne.s32.totalorder %s57, %s59
    %p63 = scmp.eq.s32.totalorder %s9, 0
    %p64 = por %p62, %p63
    %p65 = scmp.ne.s32.totalorder %s57, %s59
    %p66 = scmp.eq.s32.totalorder %s14, 1
    %p67 = por %p65, %p66
    %p68 = scmp.ne.s32.totalorder %s59, %s60
    %p69 = scmp.eq.s32.totalorder %s14, 0
    %p70 = por %p68, %p69
    %p71 = scmp.ne.s32.totalorder %s59, %s60
    %p72 = scmp.eq.s32.totalorder %s15, 1
    %p73 = por %p71, %p72
    %p75 = scmp.ne.s32.totalorder %s60, %s74
    %p76 = scmp.eq.s32.totalorder %s15, 0
    %p77 = por %p75, %p76
    %s79 = sadd.s32 %s78, 1
    %p82 = scmp.eq.s32.totalorder %s9, 1
    %p83 = scmp.ne.s32.totalorder %s78, %s80
    %p84 = scmp.eq.s32.totalorder %s9, 0
    %p85 = por %p83, %p84
    %p86 = scmp.ne.s32.totalorder %s78, %s80
    %p87 = scmp.eq.s32.totalorder %s14, 1
    %p88 = por %p86, %p87
    %p89 = scmp.ne.s32.totalorder %s80, %s81
    %p90 = scmp.eq.s32.totalorder %s14, 0
    %p91 = por %p89, %p90
    %p92 = scmp.ne.s32.totalorder %s80, %s81
    %p93 = scmp.eq.s32.totalorder %s15, 1
    %p94 = por %p92, %p93
    %p96 = scmp.ne.s32.totalorder %s81, %s95
    %p97 = scmp.eq.s32.totalorder %s15, 0
    %p98 = por %p96, %p97
    %s99 = ssub.s32 %s16, %s28
    %s100 = ssub.s32 %s17, %s24
    %s101 = sor.u32 %s99, %s100
    %p102 = scmp.eq.s32.totalorder %s101, 0
    %s104 = sadd.s32 %s103, 1
    %s105 = scalar_select %p102, %s103, %s104
    %p108 = pneg %p102
    %p109 = scmp.eq.s32.totalorder %s9, 1
    %p110 = por %p108, %p109
    %p111 = scmp.ne.s32.totalorder %s103, %s106
    %p112 = scmp.eq.s32.totalorder %s9, 0
    %p113 = por %p111, %p112
    %p114 = scmp.ne.s32.totalorder %s103, %s106
    %p115 = scmp.eq.s32.totalorder %s14, 1
    %p116 = por %p114, %p115
    %p117 = scmp.ne.s32.totalorder %s106, %s107
    %p118 = scmp.eq.s32.totalorder %s14, 0
    %p119 = por %p117, %p118
    %p120 = scmp.ne.s32.totalorder %s106, %s107
    %p121 = scmp.eq.s32.totalorder %s15, 1
    %p122 = por %p120, %p121
    %p124 = scmp.ne.s32.totalorder %s107, %s123
    %p125 = scmp.eq.s32.totalorder %s15, 0
    %p126 = por %p124, %p125
    %p127 = scmp.le.s32.totalorder 1, %s9
    %p128 = scmp.lt.s32.totalorder %s9, 3
    %p129 = pnand %p127, %p128
    %p130 = pneg %p129
    // Predicated region
    $region9: #{semantic_encoder_forward.5} parent=5 // pred_check
      _
    $region10: #{semantic_encoder_forward.5} parent=5 // pred_check_branch
      %132 = sbr.rel (%p129) target = $region12
    $region11: #{semantic_encoder_forward.5} parent=5 // pred_region
      %s133 = ssub.s32 %s9, 1
      // Predicated region
      $region13: #{semantic_encoder_forward.5} parent=11 // pred_check
        %p134 = pneg %p70
      $region14: #{semantic_encoder_forward.5} parent=11 // pred_check_branch
        %136 = sbr.rel (%p134) target = $region16
      $region15: #{semantic_encoder_forward.5} parent=11 // pred_region
        _
      $region16: #{semantic_encoder_forward.5} parent=11 // pred_fallthru
        _
      // Predicated region
      $region17: #{semantic_encoder_forward.5} parent=11 // pred_check
        %p137 = pneg %p91
      $region18: #{semantic_encoder_forward.5} parent=11 // pred_check_branch
        %139 = sbr.rel (%p137) target = $region20
      $region19: #{semantic_encoder_forward.5} parent=11 // pred_region
        _
      $region20: #{semantic_encoder_forward.5} parent=11 // pred_fallthru
        _
    $region12: #{semantic_encoder_forward.5} parent=5 // pred_fallthru
      _
    %p140 = scmp.lt.s32.totalorder %s9, 2
    // Predicated region
    $region21: #{semantic_encoder_forward.5} parent=5 // pred_check
      %p141 = pneg %p140
    $region22: #{semantic_encoder_forward.5} parent=5 // pred_check_branch
      %143 = sbr.rel (%p141) target = $region24
    $region23: #{semantic_encoder_forward.5} parent=5 // pred_region
      // Predicated region
      $region25: #{semantic_encoder_forward.5} parent=23 // pred_check
        %p144 = pneg %p43
      $region26: #{semantic_encoder_forward.5} parent=23 // pred_check_branch
        %146 = sbr.rel (%p144) target = $region28
      $region27: #{semantic_encoder_forward.5} parent=23 // pred_region
        %s147 = smul.u32 8, %s17
        %p148 = scmp.lt.s32.totalorder %s16, 1
        %s149 = scalar_select %p148, %s16, 1
        %p150 = scmp.lt.s32.totalorder %s147, 7
        %s151 = scalar_select %p150, %s147, 7
        %s152 = smul.addr %s151, 3
        %s153 = smul.addr %s149, 24
        %s154 = sadd.s32 %s152, %s153
        %s155 = smul.addr %s154, 4
        %s156 = scalar_lea.vmem %s0, %s155
        %s157 = smul.u32 8, %s17
      $region28: #{semantic_encoder_forward.5} parent=23 // pred_fallthru
        _
    $region24: #{semantic_encoder_forward.5} parent=5 // pred_fallthru
      _
    %p158 = scmp.le.s32.totalorder 1, %s9
    %p159 = scmp.lt.s32.totalorder %s9, 3
    %p160 = pnand %p158, %p159
    %p161 = pneg %p160
    // Predicated region
    $region29: #{semantic_encoder_forward.5} parent=5 // pred_check
      _
    $region30: #{semantic_encoder_forward.5} parent=5 // pred_check_branch
      %163 = sbr.rel (%p160) target = $region32
    $region31: #{semantic_encoder_forward.5} parent=5 // pred_region
      %s164 = ssub.s32 %s9, 1
      %s165 = smul.u32 8, %s19
      %p166 = scmp.lt.s32.totalorder %s18, 1
      %s167 = scalar_select %p166, %s18, 1
      %p168 = scmp.lt.s32.totalorder %s165, 7
      %s169 = scalar_select %p168, %s165, 7
      %s170 = smul.addr %s169, 3
      %s171 = smul.addr %s167, 24
      %s172 = sadd.s32 %s170, %s171
      %s173 = smul.addr %s172, 4
      %s174 = scalar_lea.vmem %s0, %s173
      %p175 = pneg %p49
      %p176 = pneg %p46
      %p177 = pneg %p70
      %p178 = pneg %p67
      %p179 = pneg %p91
      %p180 = pneg %p88
      %p181 = pneg %p119
      %p182 = pneg %p116
      %s183 = smul.u32 8, %s19
      %p184 = scmp.lt.s32.totalorder %s18, 1
      %s185 = scalar_select %p184, %s18, 1
      %p186 = scmp.lt.s32.totalorder %s183, 7
      %s187 = scalar_select %p186, %s183, 7
      %s188 = smul.addr %s185, 8
      %s189 = sadd.s32 %s187, %s188
      %s190 = smul.addr %s189, 4
      %s191 = scalar_lea.vmem %s3, %s190
      %s192 = smul.u32 8, %s19
      %p193 = scmp.lt.s32.totalorder %s18, 1
      %s194 = scalar_select %p193, %s18, 1
      %p195 = scmp.lt.s32.totalorder %s192, 7
      %s196 = scalar_select %p195, %s192, 7
      %s197 = smul.addr %s196, 3
      %s198 = smul.addr %s194, 24
      %s199 = sadd.s32 %s197, %s198
      %s200 = smul.addr %s199, 4
      %s201 = scalar_lea.vmem %s0, %s200
      %s202 = smul.u32 8, %s19
      %s203 = smul.u32 8, %s19
      %p204 = scmp.lt.s32.totalorder %s18, 1
      %s205 = scalar_select %p204, %s18, 1
      %p206 = scmp.lt.s32.totalorder %s203, 7
      %s207 = scalar_select %p206, %s203, 7
      %s208 = smul.addr %s205, 8
      %s209 = sadd.s32 %s207, %s208
      %s210 = smul.addr %s209, 4
      %s211 = scalar_lea.vmem %s3, %s210
      %s212 = smul.u32 8, %s19
      %v214 = vld [vmem:[%s201] sm:$0xff]
      %v215 = vld [vmem:[%s201 + $0x8] sm:$0xf]
      %v216 = vld [vmem:[%s201 + $0xc] sm:$0xff]
      %v217 = vld [vmem:[%s201 + $0x14] sm:$0xf]
      %v218 = vld [vmem:[%s201 + $0x18] sm:$0xff]
      %v219 = vld [vmem:[%s201 + $0x20] sm:$0xf]
      %v220 = vld [vmem:[%s201 + $0x24] sm:$0xff]
      %v221 = vld [vmem:[%s201 + $0x2c] sm:$0xf]
      %v222 = vld [vmem:[%s201 + $0x30] sm:$0xff]
      %v223 = vld [vmem:[%s201 + $0x38] sm:$0xf]
      %v224 = vld [vmem:[%s201 + $0x3c] sm:$0xff]
      %v225 = vld [vmem:[%s201 + $0x44] sm:$0xf]
      %v226 = vld [vmem:[%s201 + $0x48] sm:$0xff]
      %v227 = vld [vmem:[%s201 + $0x50] sm:$0xf]
      %v228 = vld [vmem:[%s201 + $0x54] sm:$0xff]
      %v229 = vld [vmem:[%s201 + $0x5c] sm:$0xf]
      %v230 = vld [vmem:[%s1] sm:$0xf]
      %v231 = vld [vmem:[%s1 + $0x4] sm:$0xf]
      %v232 = vld [vmem:[%s1 + $0x8] sm:$0xf]
      %v233 = vld [vmem:[%s1 + $0xc] sm:$0xf]
      %v234 = vld [vmem:[%s1 + $0x10] sm:$0xf]
      %v235 = vld [vmem:[%s1 + $0x14] sm:$0xf]
      %v236 = vld [vmem:[%s1 + $0x18] sm:$0xf]
      %v237 = vld [vmem:[%s1 + $0x1c] sm:$0xf]
      %v238 = vld [vmem:[%s1 + $0x20] sm:$0xf]
      %v239 = vld [vmem:[%s1 + $0x24] sm:$0xf]
      %v240 = vld [vmem:[%s1 + $0x28] sm:$0xf]
      %v241 = vld [vmem:[%s1 + $0x2c] sm:$0xf]
      %v242 = vld [vmem:[%s1 + $0x30] sm:$0xf]
      %v243 = vld [vmem:[%s1 + $0x34] sm:$0xf]
      %v244 = vld [vmem:[%s1 + $0x38] sm:$0xf]
      %v245 = vld [vmem:[%s1 + $0x3c] sm:$0xf]
      %v246 = vld [vmem:[%s1 + $0x40] sm:$0xf]
      %v247 = vld [vmem:[%s1 + $0x44] sm:$0xf]
      %v248 = vld [vmem:[%s1 + $0x48] sm:$0xf]
      %v249 = vld [vmem:[%s1 + $0x4c] sm:$0xf]
      %v250 = vld [vmem:[%s1 + $0x50] sm:$0xf]
      %v251 = vld [vmem:[%s1 + $0x54] sm:$0xf]
      %v252 = vld [vmem:[%s1 + $0x58] sm:$0xf]
      %v253 = vld [vmem:[%s1 + $0x5c] sm:$0xf]
      %v254 = vld [vmem:[%s1 + $0x60] sm:$0xf]
      %v255 = vld [vmem:[%s1 + $0x64] sm:$0xf]
      %v256 = vld [vmem:[%s1 + $0x68] sm:$0xf]
      %v257 = vld [vmem:[%s1 + $0x6c] sm:$0xf]
      %v258 = vld [vmem:[%s1 + $0x70] sm:$0xf]
      %v259 = vld [vmem:[%s1 + $0x74] sm:$0xf]
      %v260 = vld [vmem:[%s1 + $0x78] sm:$0xf]
      %v261 = vld [vmem:[%s1 + $0x7c] sm:$0xf]
      %v262 = vld [vmem:[%s1 + $0x80] sm:$0xf]
      %v263 = vld [vmem:[%s1 + $0x84] sm:$0xf]
      %v264 = vld [vmem:[%s1 + $0x88] sm:$0xf]
      %v265 = vld [vmem:[%s1 + $0x8c] sm:$0xf]
      %v266 = vld [vmem:[%s1 + $0x90] sm:$0xf]
      %v267 = vld [vmem:[%s1 + $0x94] sm:$0xf]
      %v268 = vld [vmem:[%s1 + $0x98] sm:$0xf]
      %v269 = vld [vmem:[%s1 + $0x9c] sm:$0xf]
      %v270 = vld [vmem:[%s1 + $0xa0] sm:$0xf]
      %v271 = vld [vmem:[%s1 + $0xa4] sm:$0xf]
      %v272 = vld [vmem:[%s1 + $0xa8] sm:$0xf]
      %v273 = vld [vmem:[%s1 + $0xac] sm:$0xf]
      %v274 = vld [vmem:[%s1 + $0xb0] sm:$0xf]
      %v275 = vld [vmem:[%s1 + $0xb4] sm:$0xf]
      %v276 = vld [vmem:[%s1 + $0xb8] sm:$0xf]
      %v277 = vld [vmem:[%s1 + $0xbc] sm:$0xf]
      %v278 = vld [vmem:[%s2] sm:$0x1]
      %v280 = vlaneseq
      %v281 = vshrl.u32 %v280, 7
      %v282 = vsub.s32 0, %v281
      %v283 = vrot.slane %v278, %v282
      %v301 = vunpack.c.l.b16 %v214
      %v302 = vunpack.c.h.b16 %v214
      %v303 = vunpack.c.l.b16 %v215
      %v304 = vunpack.c.l.b16 %v216
      %v305 = vunpack.c.h.b16 %v216
      %v306 = vunpack.c.l.b16 %v217
      %v307 = vunpack.c.l.b16 %v218
      %v308 = vunpack.c.h.b16 %v218
      %v309 = vunpack.c.l.b16 %v219
      %v310 = vunpack.c.l.b16 %v220
      %v311 = vunpack.c.h.b16 %v220
      %v312 = vunpack.c.l.b16 %v221
      %v313 = vunpack.c.l.b16 %v222
      %v314 = vunpack.c.h.b16 %v222
      %v315 = vunpack.c.l.b16 %v223
      %v316 = vunpack.c.l.b16 %v224
      %v317 = vunpack.c.h.b16 %v224
      %v318 = vunpack.c.l.b16 %v225
      %v319 = vunpack.c.l.b16 %v226
      %v320 = vunpack.c.h.b16 %v226
      %v321 = vunpack.c.l.b16 %v227
      %v322 = vunpack.c.l.b16 %v228
      %v323 = vunpack.c.h.b16 %v228
      %v324 = vunpack.c.l.b16 %v229
      %v325 = vpack.c.b16 %v304, %v301
      %v326 = vpack.c.b16 %v305, %v302
      %v327 = vpack.c.b16 %v306, %v303
      %v328 = vpack.c.b16 %v310, %v307
      %v329 = vpack.c.b16 %v311, %v308
      %v330 = vpack.c.b16 %v312, %v309
      %v331 = vpack.c.b16 %v316, %v313
      %v332 = vpack.c.b16 %v317, %v314
      %v333 = vpack.c.b16 %v318, %v315
      %v334 = vpack.c.b16 %v322, %v319
      %v335 = vpack.c.b16 %v323, %v320
      %v336 = vpack.c.b16 %v324, %v321
      %v397 = vunpack.c.l.b16 %v230
      %v398 = vunpack.c.l.b16 %v231
      %v399 = vunpack.c.l.b16 %v232
      %v400 = vunpack.c.l.b16 %v233
      %v401 = vunpack.c.l.b16 %v234
      %v402 = vunpack.c.l.b16 %v235
      %v403 = vunpack.c.l.b16 %v236
      %v404 = vunpack.c.l.b16 %v237
      %v405 = vunpack.c.l.b16 %v238
      %v406 = vunpack.c.l.b16 %v239
      %v407 = vunpack.c.l.b16 %v240
      %v408 = vunpack.c.l.b16 %v241
      %v409 = vunpack.c.l.b16 %v242
      %v410 = vunpack.c.l.b16 %v243
      %v411 = vunpack.c.l.b16 %v244
      %v412 = vunpack.c.l.b16 %v245
      %v413 = vunpack.c.l.b16 %v246
      %v414 = vunpack.c.l.b16 %v247
      %v415 = vunpack.c.l.b16 %v248
      %v416 = vunpack.c.l.b16 %v249
      %v417 = vunpack.c.l.b16 %v250
      %v418 = vunpack.c.l.b16 %v251
      %v419 = vunpack.c.l.b16 %v252
      %v420 = vunpack.c.l.b16 %v253
      %v421 = vunpack.c.l.b16 %v254
      %v422 = vunpack.c.l.b16 %v255
      %v423 = vunpack.c.l.b16 %v256
      %v424 = vunpack.c.l.b16 %v257
      %v425 = vunpack.c.l.b16 %v258
      %v426 = vunpack.c.l.b16 %v259
      %v427 = vunpack.c.l.b16 %v260
      %v428 = vunpack.c.l.b16 %v261
      %v429 = vunpack.c.l.b16 %v262
      %v430 = vunpack.c.l.b16 %v263
      %v431 = vunpack.c.l.b16 %v264
      %v432 = vunpack.c.l.b16 %v265
      %v433 = vunpack.c.l.b16 %v266
      %v434 = vunpack.c.l.b16 %v267
      %v435 = vunpack.c.l.b16 %v268
      %v436 = vunpack.c.l.b16 %v269
      %v437 = vunpack.c.l.b16 %v270
      %v438 = vunpack.c.l.b16 %v271
      %v439 = vunpack.c.l.b16 %v272
      %v440 = vunpack.c.l.b16 %v273
      %v441 = vunpack.c.l.b16 %v274
      %v442 = vunpack.c.l.b16 %v275
      %v443 = vunpack.c.l.b16 %v276
      %v444 = vunpack.c.l.b16 %v277
      %v445 = vpack.c.b16 %v398, %v397
      %v446 = vpack.c.b16 %v400, %v399
      %v447 = vpack.c.b16 %v402, %v401
      %v448 = vpack.c.b16 %v404, %v403
      %v449 = vpack.c.b16 %v406, %v405
      %v450 = vpack.c.b16 %v408, %v407
      %v451 = vpack.c.b16 %v410, %v409
      %v452 = vpack.c.b16 %v412, %v411
      %v453 = vpack.c.b16 %v414, %v413
      %v454 = vpack.c.b16 %v416, %v415
      %v455 = vpack.c.b16 %v418, %v417
      %v456 = vpack.c.b16 %v420, %v419
      %v457 = vpack.c.b16 %v422, %v421
      %v458 = vpack.c.b16 %v424, %v423
      %v459 = vpack.c.b16 %v426, %v425
      %v460 = vpack.c.b16 %v428, %v427
      %v461 = vpack.c.b16 %v430, %v429
      %v462 = vpack.c.b16 %v432, %v431
      %v463 = vpack.c.b16 %v434, %v433
      %v464 = vpack.c.b16 %v436, %v435
      %v465 = vpack.c.b16 %v438, %v437
      %v466 = vpack.c.b16 %v440, %v439
      %v467 = vpack.c.b16 %v442, %v441
      %v468 = vpack.c.b16 %v444, %v443
      %493 = vmatprep.subr.bf16.mxu0 0
      %494 = vmatpush1.bf16.msra.mxu0 %v445
      %495 = vmatprep.subr.bf16.mxu0 0
      %496 = vmatpush1.bf16.msra.mxu0 %v446
      %497 = vmatprep.subr.bf16.mxu0 0
      %498 = vmatpush1.bf16.msra.mxu0 %v447
      %499 = vmatprep.subr.bf16.mxu0 0
      %500 = vmatpush1.bf16.msra.mxu0 %v448
      %501 = vmatprep.subr.bf16.mxu0 0
      %502 = vmatpush1.bf16.msra.mxu0 %v449
      %503 = vmatprep.subr.bf16.mxu0 0
      %504 = vmatpush1.bf16.msra.mxu0 %v450
      %505 = vmatprep.subr.bf16.mxu0 0
      %506 = vmatpush1.bf16.msra.mxu0 %v451
      %507 = vmatprep.subr.bf16.mxu0 0
      %508 = vmatpush1.bf16.msra.mxu0 %v452
      %509 = vmatprep.subr.bf16.mxu0 0
      %510 = vmatpush1.bf16.msra.mxu0 %v453
      %511 = vmatprep.subr.bf16.mxu0 0
      %512 = vmatpush1.bf16.msra.mxu0 %v454
      %513 = vmatprep.subr.bf16.mxu0 0
      %514 = vmatpush1.bf16.msra.mxu0 %v455
      %515 = vmatprep.subr.bf16.mxu0 0
      %516 = vmatpush1.bf16.msra.mxu0 %v456
      %517 = vmatprep.subr.bf16.mxu0 0
      %518 = vmatpush1.bf16.msra.mxu0 %v457
      %519 = vmatprep.subr.bf16.mxu0 0
      %520 = vmatpush1.bf16.msra.mxu0 %v458
      %521 = vmatprep.subr.bf16.mxu0 0
      %522 = vmatpush1.bf16.msra.mxu0 %v459
      %523 = vmatprep.subr.bf16.mxu0 0
      %524 = vmatpush1.bf16.msra.mxu0 %v460
      %525 = vmatprep.mubr.bf16.mxu0 %v326
      %526 = vmatmul.mubr.bf16.gmra.mrb[0].mxu0 %v325
      %v527 = vpop.f32.mrb[0].mxu0
      %v528 = vadd.f32 %v283, %v527
      %v529 = vpop.f32.mrb[0].mxu0
      %v530 = vpop.f32.mrb[0].mxu0
      %v531 = vadd.f32 %v283, %v530
      %v532 = vpop.f32.mrb[0].mxu0
      %533 = vmatprep.mubr.bf16.mxu0 %v329
      %534 = vmatmul.mubr.bf16.gmra.mrb[0].mxu0 %v328
      %v535 = vpop.f32.mrb[0].mxu0
      %v536 = vadd.f32 %v283, %v535
      %v537 = vpop.f32.mrb[0].mxu0
      %v538 = vpop.f32.mrb[0].mxu0
      %v539 = vadd.f32 %v283, %v538
      %v540 = vpop.f32.mrb[0].mxu0
      %541 = vmatprep.mubr.bf16.mxu0 %v332
      %542 = vmatmul.mubr.bf16.gmra.mrb[0].mxu0 %v331
      %v543 = vpop.f32.mrb[0].mxu0
      %v544 = vadd.f32 %v283, %v543
      %v545 = vpop.f32.mrb[0].mxu0
      %v546 = vpop.f32.mrb[0].mxu0
      %v547 = vadd.f32 %v283, %v546
      %v548 = vpop.f32.mrb[0].mxu0
      %549 = vmatprep.mubr.bf16.mxu0 %v335
      %550 = vmatmul.mubr.bf16.gmra.mrb[0].mxu0 %v334
      %v551 = vpop.f32.mrb[0].mxu0
      %v552 = vadd.f32 %v283, %v551
      %v553 = vpop.f32.mrb[0].mxu0
      %v554 = vpop.f32.mrb[0].mxu0
      %v555 = vadd.f32 %v283, %v554
      %v556 = vpop.f32.mrb[0].mxu0
      %557 = vdwg.mxu0
      %558 = vmatprep.subr.bf16.mxu0 0
      %559 = vmatpush1.bf16.msra.mxu0 %v461
      %560 = vmatprep.subr.bf16.mxu0 0
      %561 = vmatpush1.bf16.msra.mxu0 %v462
      %562 = vmatprep.subr.bf16.mxu0 0
      %563 = vmatpush1.bf16.msra.mxu0 %v463
      %564 = vmatprep.subr.bf16.mxu0 0
      %565 = vmatpush1.bf16.msra.mxu0 %v464
      %566 = vmatprep.subr.bf16.mxu0 0
      %567 = vmatpush1.bf16.msra.mxu0 %v465
      %568 = vmatprep.subr.bf16.mxu0 0
      %569 = vmatpush1.bf16.msra.mxu0 %v466
      %570 = vmatprep.subr.bf16.mxu0 0
      %571 = vmatpush1.bf16.msra.mxu0 %v467
      %572 = vmatprep.subr.bf16.mxu0 0
      %573 = vmatpush1.bf16.msra.mxu0 %v468
      %574 = vmatprep.subr.bf16.mxu0 0
      %575 = vmatpush1.bf16.msra.mxu0 0
      %576 = vmatprep.subr.bf16.mxu0 0
      %577 = vmatpush1.bf16.msra.mxu0 0
      %578 = vmatprep.subr.bf16.mxu0 0
      %579 = vmatpush1.bf16.msra.mxu0 0
      %580 = vmatprep.subr.bf16.mxu0 0
      %581 = vmatpush1.bf16.msra.mxu0 0
      %582 = vmatprep.subr.bf16.mxu0 0
      %583 = vmatpush1.bf16.msra.mxu0 0
      %584 = vmatprep.subr.bf16.mxu0 0
      %585 = vmatpush1.bf16.msra.mxu0 0
      %586 = vmatprep.subr.bf16.mxu0 0
      %587 = vmatpush1.bf16.msra.mxu0 0
      %588 = vmatprep.subr.bf16.mxu0 0
      %589 = vmatpush1.bf16.msra.mxu0 0
      %590 = vmatprep.mubr.bf16.mxu0 0
      %591 = vmatmul.mubr.bf16.gmra.mrb[0].mxu0 %v327
      %v592 = vpop.f32.mrb[0].mxu0
      %v593 = vadd.f32 %v528, %v592
      %v594 = vpop.f32.mrb[0].mxu0
      %v595 = vpop.f32.mrb[0].mxu0
      %v596 = vadd.f32 %v531, %v595
      %v597 = vpop.f32.mrb[0].mxu0
      %598 = vmatprep.mubr.bf16.mxu0 0
      %599 = vmatmul.mubr.bf16.gmra.mrb[0].mxu0 %v330
      %v600 = vpop.f32.mrb[0].mxu0
      %v601 = vadd.f32 %v536, %v600
      %v602 = vpop.f32.mrb[0].mxu0
      %v603 = vpop.f32.mrb[0].mxu0
      %v604 = vadd.f32 %v539, %v603
      %v605 = vpop.f32.mrb[0].mxu0
      %606 = vmatprep.mubr.bf16.mxu0 0
      %607 = vmatmul.mubr.bf16.gmra.mrb[0].mxu0 %v333
      %v608 = vpop.f32.mrb[0].mxu0
      %v609 = vadd.f32 %v544, %v608
      %v610 = vpop.f32.mrb[0].mxu0
      %v611 = vpop.f32.mrb[0].mxu0
      %v612 = vadd.f32 %v547, %v611
      %v613 = vpop.f32.mrb[0].mxu0
      %614 = vmatprep.mubr.bf16.mxu0 0
      %615 = vmatmul.mubr.bf16.gmra.mrb[0].mxu0 %v336
      %v616 = vpop.f32.mrb[0].mxu0
      %v617 = vadd.f32 %v552, %v616
      %v618 = vpop.f32.mrb[0].mxu0
      %v619 = vpop.f32.mrb[0].mxu0
      %v620 = vadd.f32 %v555, %v619
      %v621 = vpop.f32.mrb[0].mxu0
      %622 = vdwg.mxu0
      %v623 = vmax.f32 %v593, 0.0
      %v624 = vmax.f32 %v596, 0.0
      %v625 = vmax.f32 %v601, 0.0
      %v626 = vmax.f32 %v604, 0.0
      %v627 = vmax.f32 %v609, 0.0
      %v628 = vmax.f32 %v612, 0.0
      %v629 = vmax.f32 %v617, 0.0
      %v630 = vmax.f32 %v620, 0.0
      %v631 = vpack.c.bf16 %v624, %v623
      %v632 = vpack.c.bf16 %v626, %v625
      %v633 = vpack.c.bf16 %v628, %v627
      %v634 = vpack.c.bf16 %v630, %v629
      %v639 = vunpack.c.l.b16 %v631
      %v640 = vunpack.c.h.b16 %v631
      %v641 = vunpack.c.l.b16 %v632
      %v642 = vunpack.c.h.b16 %v632
      %v643 = vunpack.c.l.b16 %v633
      %v644 = vunpack.c.h.b16 %v633
      %v645 = vunpack.c.l.b16 %v634
      %v646 = vunpack.c.h.b16 %v634
      %v647 = vpack.c.b16 %v639, %v639
      %v648 = vpack.c.b16 %v640, %v640
      %v649 = vpack.c.b16 %v641, %v641
      %v650 = vpack.c.b16 %v642, %v642
      %v651 = vpack.c.b16 %v643, %v643
      %v652 = vpack.c.b16 %v644, %v644
      %v653 = vpack.c.b16 %v645, %v645
      %v654 = vpack.c.b16 %v646, %v646
      %663 = vst [vmem:[%s211] sm:$0xf] %v647
      %664 = vst [vmem:[%s211 + $0x4] sm:$0xf] %v648
      %665 = vst [vmem:[%s211 + $0x8] sm:$0xf] %v649
      %666 = vst [vmem:[%s211 + $0xc] sm:$0xf] %v650
      %667 = vst [vmem:[%s211 + $0x10] sm:$0xf] %v651
      %668 = vst [vmem:[%s211 + $0x14] sm:$0xf] %v652
      %669 = vst [vmem:[%s211 + $0x18] sm:$0xf] %v653
      %670 = vst [vmem:[%s211 + $0x1c] sm:$0xf] %v654
      %s671 = smul.u32 8, %s19
      %p672 = scmp.lt.s32.totalorder %s18, 1
      %s673 = scalar_select %p672, %s18, 1
      %p674 = scmp.lt.s32.totalorder %s671, 7
      %s675 = scalar_select %p674, %s671, 7
      %s676 = smul.addr %s673, 8
      %s677 = sadd.s32 %s675, %s676
      %s678 = smul.addr %s677, 4
      %s679 = scalar_lea.vmem %s3, %s678
      // Predicated region
      $region33: #{semantic_encoder_forward.5} parent=31 // pred_check
        %p680 = pneg %p116
      $region34: #{semantic_encoder_forward.5} parent=31 // pred_check_branch
        %682 = sbr.rel (%p680) target = $region36
      $region35: #{semantic_encoder_forward.5} parent=31 // pred_region
        %s683 = smul.u32 8, %s19
      $region36: #{semantic_encoder_forward.5} parent=31 // pred_fallthru
        _
    $region32: #{semantic_encoder_forward.5} parent=5 // pred_fallthru
      _
    %p684 = scmp.le.s32.totalorder 2, %s9
    // Predicated region
    $region37: #{semantic_encoder_forward.5} parent=5 // pred_check
      %p685 = pneg %p684
    $region38: #{semantic_encoder_forward.5} parent=5 // pred_check_branch
      %687 = sbr.rel (%p685) target = $region40
    $region39: #{semantic_encoder_forward.5} parent=5 // pred_region
      %s688 = ssub.s32 %s9, 2
      // Predicated region
      $region41: #{semantic_encoder_forward.5} parent=39 // pred_check
        %p689 = pneg %p122
      $region42: #{semantic_encoder_forward.5} parent=39 // pred_check_branch
        %691 = sbr.rel (%p689) target = $region44
      $region43: #{semantic_encoder_forward.5} parent=39 // pred_region
        %s692 = smul.u32 8, %s21
        %p693 = scmp.lt.s32.totalorder %s20, 1
        %s694 = scalar_select %p693, %s20, 1
        %p695 = scmp.lt.s32.totalorder %s692, 7
        %s696 = scalar_select %p695, %s692, 7
        %s697 = smul.addr %s694, 8
        %s698 = sadd.s32 %s696, %s697
        %s699 = smul.addr %s698, 4
        %s700 = scalar_lea.vmem %s3, %s699
      $region44: #{semantic_encoder_forward.5} parent=39 // pred_fallthru
        _
    $region40: #{semantic_encoder_forward.5} parent=5 // pred_fallthru
      _
  $region6: #{semantic_encoder_forward.5} parent=0 // loop_footer
    %s13 = sadd.s32 1, %s9
  $region7: #{semantic_encoder_forward.5} parent=0 // loop_footer_branch
    %8 = sbr.rel target = $region3
  $region8: #{semantic_encoder_forward.5} parent=0 // loop_exit
    _

// kernel: semantic_encoder_forward.6
$region0: #{semantic_encoder_forward.6}
  #allocation0 [shape = 'u32[]', space=smem, size = 0x4, offset = 0x4, fixed_abs, tag = 'smem constant byte address 0x4 - core index']
  #allocation1 [shape = 'u32[144,128]{1,0:T(1,128)}', space=vmem, size = 0x12000, scoped, tag = 'internal scratch']
  %s0 = inlined_call_operand.vmem [shape: bf16[2,16,640], index: 0, kind: input, shape index: {}]
  %s1 = inlined_call_operand.vmem [shape: bf16[640,128], index: 1, kind: input, shape index: {}]
  %s2 = inlined_call_operand.vmem [shape: f32[1,128], index: 2, kind: input, shape index: {}]
  %s3 = inlined_call_operand.vmem [shape: bf16[2,16,128], index: 3, kind: output, shape index: {}]
  %s4 = sld [smem:[#allocation0]]
  $region45: #{semantic_encoder_forward.6} parent=0
    _
  %s6 = ssub.s32 1, %s4
  %s7 = scalar_select 0, %s6, %s4
  loop: start=0, step=1, limit=4
  $region2: #{semantic_encoder_forward.6} parent=0 // loop_pre_header
    _
  $region3: #{semantic_encoder_forward.6} parent=0 // loop_header
    %s9 = sphi 0, %s13
    %p10 = scmp.ge.s32.totalorder %s9, 4
    %s16 = sphi 0, %s28
    %s17 = sphi 0, %s24
    %s18 = sphi 0, %s16
    %s19 = sphi 0, %s17
    %s20 = sphi 0, %s18
    %s21 = sphi 0, %s19
    %s33 = sphi 0, %s35
    %s36 = sphi 0, %s33
    %s37 = sphi 0, %s36
    %s53 = sphi 0, %s37
    %s57 = sphi 0, %s57
    %s59 = sphi 0, %s57
    %s60 = sphi 0, %s59
    %s74 = sphi 0, %s60
    %s78 = sphi 0, %s78
    %s80 = sphi 0, %s78
    %s81 = sphi 0, %s80
    %s95 = sphi 0, %s81
    %s103 = sphi 0, %s105
    %s106 = sphi 0, %s103
    %s107 = sphi 0, %s106
    %s123 = sphi 0, %s107
  $region4: #{semantic_encoder_forward.6} parent=0 // loop_header_branch
    %12 = sbr.rel (%p10) target = $region8
  $region5: #{semantic_encoder_forward.6} parent=0 // loop_body
    %s14 = ssub.s32 %s9, 1
    %s15 = ssub.s32 %s9, 2
    %s22 = sadd.s32 1, %s17
    %p23 = scmp.ge.s32.totalorder %s22, 1
    %s24 = scalar_select %p23, 0, %s22
    %s25 = sadd.s32 1, %s16
    %s26 = scalar_select %p23, %s25, %s16
    %p27 = scmp.ge.s32.totalorder %s26, 2
    %s28 = scalar_select %p27, 0, %s26
    %s29 = ssub.s32 %s16, %s28
    %s30 = ssub.s32 %s17, %s24
    %s31 = sor.u32 %s29, %s30
    %p32 = scmp.eq.s32.totalorder %s31, 0
    %s34 = sadd.s32 %s33, 1
    %s35 = scalar_select %p32, %s33, %s34
    %p38 = pneg %p32
    %p39 = scmp.eq.s32.totalorder %s9, 1
    %p40 = por %p38, %p39
    %p41 = scmp.ne.s32.totalorder %s33, %s36
    %p42 = scmp.eq.s32.totalorder %s9, 0
    %p43 = por %p41, %p42
    %p44 = scmp.ne.s32.totalorder %s33, %s36
    %p45 = scmp.eq.s32.totalorder %s14, 1
    %p46 = por %p44, %p45
    %p47 = scmp.ne.s32.totalorder %s36, %s37
    %p48 = scmp.eq.s32.totalorder %s14, 0
    %p49 = por %p47, %p48
    %p50 = scmp.ne.s32.totalorder %s36, %s37
    %p51 = scmp.eq.s32.totalorder %s15, 1
    %p52 = por %p50, %p51
    %p54 = scmp.ne.s32.totalorder %s37, %s53
    %p55 = scmp.eq.s32.totalorder %s15, 0
    %p56 = por %p54, %p55
    %s58 = sadd.s32 %s57, 1
    %p61 = scmp.eq.s32.totalorder %s9, 1
    %p62 = scmp.ne.s32.totalorder %s57, %s59
    %p63 = scmp.eq.s32.totalorder %s9, 0
    %p64 = por %p62, %p63
    %p65 = scmp.ne.s32.totalorder %s57, %s59
    %p66 = scmp.eq.s32.totalorder %s14, 1
    %p67 = por %p65, %p66
    %p68 = scmp.ne.s32.totalorder %s59, %s60
    %p69 = scmp.eq.s32.totalorder %s14, 0
    %p70 = por %p68, %p69
    %p71 = scmp.ne.s32.totalorder %s59, %s60
    %p72 = scmp.eq.s32.totalorder %s15, 1
    %p73 = por %p71, %p72
    %p75 = scmp.ne.s32.totalorder %s60, %s74
    %p76 = scmp.eq.s32.totalorder %s15, 0
    %p77 = por %p75, %p76
    %s79 = sadd.s32 %s78, 1
    %p82 = scmp.eq.s32.totalorder %s9, 1
    %p83 = scmp.ne.s32.totalorder %s78, %s80
    %p84 = scmp.eq.s32.totalorder %s9, 0
    %p85 = por %p83, %p84
    %p86 = scmp.ne.s32.totalorder %s78, %s80
    %p87 = scmp.eq.s32.totalorder %s14, 1
    %p88 = por %p86, %p87
    %p89 = scmp.ne.s32.totalorder %s80, %s81
    %p90 = scmp.eq.s32.totalorder %s14, 0
    %p91 = por %p89, %p90
    %p92 = scmp.ne.s32.totalorder %s80, %s81
    %p93 = scmp.eq.s32.totalorder %s15, 1
    %p94 = por %p92, %p93
    %p96 = scmp.ne.s32.totalorder %s81, %s95
    %p97 = scmp.eq.s32.totalorder %s15, 0
    %p98 = por %p96, %p97
    %s99 = ssub.s32 %s16, %s28
    %s100 = ssub.s32 %s17, %s24
    %s101 = sor.u32 %s99, %s100
    %p102 = scmp.eq.s32.totalorder %s101, 0
    %s104 = sadd.s32 %s103, 1
    %s105 = scalar_select %p102, %s103, %s104
    %p108 = pneg %p102
    %p109 = scmp.eq.s32.totalorder %s9, 1
    %p110 = por %p108, %p109
    %p111 = scmp.ne.s32.totalorder %s103, %s106
    %p112 = scmp.eq.s32.totalorder %s9, 0
    %p113 = por %p111, %p112
    %p114 = scmp.ne.s32.totalorder %s103, %s106
    %p115 = scmp.eq.s32.totalorder %s14, 1
    %p116 = por %p114, %p115
    %p117 = scmp.ne.s32.totalorder %s106, %s107
    %p118 = scmp.eq.s32.totalorder %s14, 0
    %p119 = por %p117, %p118
    %p120 = scmp.ne.s32.totalorder %s106, %s107
    %p121 = scmp.eq.s32.totalorder %s15, 1
    %p122 = por %p120, %p121
    %p124 = scmp.ne.s32.totalorder %s107, %s123
    %p125 = scmp.eq.s32.totalorder %s15, 0
    %p126 = por %p124, %p125
    %p127 = scmp.le.s32.totalorder 1, %s9
    %p128 = scmp.lt.s32.totalorder %s9, 3
    %p129 = pnand %p127, %p128
    %p130 = pneg %p129
    // Predicated region
    $region9: #{semantic_encoder_forward.6} parent=5 // pred_check
      _
    $region10: #{semantic_encoder_forward.6} parent=5 // pred_check_branch
      %132 = sbr.rel (%p129) target = $region12
    $region11: #{semantic_encoder_forward.6} parent=5 // pred_region
      %s133 = ssub.s32 %s9, 1
      // Predicated region
      $region13: #{semantic_encoder_forward.6} parent=11 // pred_check
        %p134 = pneg %p70
      $region14: #{semantic_encoder_forward.6} parent=11 // pred_check_branch
        %136 = sbr.rel (%p134) target = $region16
      $region15: #{semantic_encoder_forward.6} parent=11 // pred_region
        _
      $region16: #{semantic_encoder_forward.6} parent=11 // pred_fallthru
        _
      // Predicated region
      $region17: #{semantic_encoder_forward.6} parent=11 // pred_check
        %p137 = pneg %p91
      $region18: #{semantic_encoder_forward.6} parent=11 // pred_check_branch
        %139 = sbr.rel (%p137) target = $region20
      $region19: #{semantic_encoder_forward.6} parent=11 // pred_region
        _
      $region20: #{semantic_encoder_forward.6} parent=11 // pred_fallthru
        _
    $region12: #{semantic_encoder_forward.6} parent=5 // pred_fallthru
      _
    %p140 = scmp.lt.s32.totalorder %s9, 2
    // Predicated region
    $region21: #{semantic_encoder_forward.6} parent=5 // pred_check
      %p141 = pneg %p140
    $region22: #{semantic_encoder_forward.6} parent=5 // pred_check_branch
      %143 = sbr.rel (%p141) target = $region24
    $region23: #{semantic_encoder_forward.6} parent=5 // pred_region
      // Predicated region
      $region25: #{semantic_encoder_forward.6} parent=23 // pred_check
        %p144 = pneg %p43
      $region26: #{semantic_encoder_forward.6} parent=23 // pred_check_branch
        %146 = sbr.rel (%p144) target = $region28
      $region27: #{semantic_encoder_forward.6} parent=23 // pred_region
        %s147 = smul.u32 2, %s17
        %p148 = scmp.lt.s32.totalorder %s16, 1
        %s149 = scalar_select %p148, %s16, 1
        %p150 = scmp.lt.s32.totalorder %s147, 1
        %s151 = scalar_select %p150, %s147, 1
        %s152 = smul.addr %s151, 5
        %s153 = smul.addr %s149, 10
        %s154 = sadd.s32 %s152, %s153
        %s155 = smul.addr %s154, 4
        %s156 = scalar_lea.vmem %s0, %s155
        %s157 = smul.u32 2, %s17
      $region28: #{semantic_encoder_forward.6} parent=23 // pred_fallthru
        _
    $region24: #{semantic_encoder_forward.6} parent=5 // pred_fallthru
      _
    %p158 = scmp.le.s32.totalorder 1, %s9
    %p159 = scmp.lt.s32.totalorder %s9, 3
    %p160 = pnand %p158, %p159
    %p161 = pneg %p160
    // Predicated region
    $region29: #{semantic_encoder_forward.6} parent=5 // pred_check
      _
    $region30: #{semantic_encoder_forward.6} parent=5 // pred_check_branch
      %163 = sbr.rel (%p160) target = $region32
    $region31: #{semantic_encoder_forward.6} parent=5 // pred_region
      %s164 = ssub.s32 %s9, 1
      %s165 = smul.u32 2, %s19
      %p166 = scmp.lt.s32.totalorder %s18, 1
      %s167 = scalar_select %p166, %s18, 1
      %p168 = scmp.lt.s32.totalorder %s165, 1
      %s169 = scalar_select %p168, %s165, 1
      %s170 = smul.addr %s169, 5
      %s171 = smul.addr %s167, 10
      %s172 = sadd.s32 %s170, %s171
      %s173 = smul.addr %s172, 4
      %s174 = scalar_lea.vmem %s0, %s173
      %p175 = pneg %p49
      %p176 = pneg %p46
      %p177 = pneg %p70
      %p178 = pneg %p67
      %p179 = pneg %p91
      %p180 = pneg %p88
      %p181 = pneg %p119
      %p182 = pneg %p116
      %s183 = smul.u32 2, %s19
      %p184 = scmp.lt.s32.totalorder %s18, 1
      %s185 = scalar_select %p184, %s18, 1
      %p186 = scmp.lt.s32.totalorder %s183, 1
      %s187 = scalar_select %p186, %s183, 1
      %s188 = smul.addr %s185, 2
      %s189 = sadd.s32 %s187, %s188
      %s190 = smul.addr %s189, 4
      %s191 = scalar_lea.vmem %s3, %s190
      %s192 = smul.u32 2, %s19
      %p193 = scmp.lt.s32.totalorder %s18, 1
      %s194 = scalar_select %p193, %s18, 1
      %p195 = scmp.lt.s32.totalorder %s192, 1
      %s196 = scalar_select %p195, %s192, 1
      %s197 = smul.addr %s196, 5
      %s198 = smul.addr %s194, 10
      %s199 = sadd.s32 %s197, %s198
      %s200 = smul.addr %s199, 4
      %s201 = scalar_lea.vmem %s0, %s200
      %s202 = smul.u32 2, %s19
      %s203 = smul.u32 2, %s19
      %p204 = scmp.lt.s32.totalorder %s18, 1
      %s205 = scalar_select %p204, %s18, 1
      %p206 = scmp.lt.s32.totalorder %s203, 1
      %s207 = scalar_select %p206, %s203, 1
      %s208 = smul.addr %s205, 2
      %s209 = sadd.s32 %s207, %s208
      %s210 = smul.addr %s209, 4
      %s211 = scalar_lea.vmem %s3, %s210
      %s212 = smul.u32 2, %s19
      %v214 = vld [vmem:[%s201] sm:$0xff]
      %v215 = vld [vmem:[%s201 + $0x8] sm:$0xff]
      %v216 = vld [vmem:[%s201 + $0x10] sm:$0xf]
      %v217 = vld [vmem:[%s201 + $0x14] sm:$0xff]
      %v218 = vld [vmem:[%s201 + $0x1c] sm:$0xff]
      %v219 = vld [vmem:[%s201 + $0x24] sm:$0xf]
      %v220 = vld [vmem:[%s1] sm:$0xf]
      %v221 = vld [vmem:[%s1 + $0x4] sm:$0xf]
      %v222 = vld [vmem:[%s1 + $0x8] sm:$0xf]
      %v223 = vld [vmem:[%s1 + $0xc] sm:$0xf]
      %v224 = vld [vmem:[%s1 + $0x10] sm:$0xf]
      %v225 = vld [vmem:[%s1 + $0x14] sm:$0xf]
      %v226 = vld [vmem:[%s1 + $0x18] sm:$0xf]
      %v227 = vld [vmem:[%s1 + $0x1c] sm:$0xf]
      %v228 = vld [vmem:[%s1 + $0x20] sm:$0xf]
      %v229 = vld [vmem:[%s1 + $0x24] sm:$0xf]
      %v230 = vld [vmem:[%s1 + $0x28] sm:$0xf]
      %v231 = vld [vmem:[%s1 + $0x2c] sm:$0xf]
      %v232 = vld [vmem:[%s1 + $0x30] sm:$0xf]
      %v233 = vld [vmem:[%s1 + $0x34] sm:$0xf]
      %v234 = vld [vmem:[%s1 + $0x38] sm:$0xf]
      %v235 = vld [vmem:[%s1 + $0x3c] sm:$0xf]
      %v236 = vld [vmem:[%s1 + $0x40] sm:$0xf]
      %v237 = vld [vmem:[%s1 + $0x44] sm:$0xf]
      %v238 = vld [vmem:[%s1 + $0x48] sm:$0xf]
      %v239 = vld [vmem:[%s1 + $0x4c] sm:$0xf]
      %v240 = vld [vmem:[%s1 + $0x50] sm:$0xf]
      %v241 = vld [vmem:[%s1 + $0x54] sm:$0xf]
      %v242 = vld [vmem:[%s1 + $0x58] sm:$0xf]
      %v243 = vld [vmem:[%s1 + $0x5c] sm:$0xf]
      %v244 = vld [vmem:[%s1 + $0x60] sm:$0xf]
      %v245 = vld [vmem:[%s1 + $0x64] sm:$0xf]
      %v246 = vld [vmem:[%s1 + $0x68] sm:$0xf]
      %v247 = vld [vmem:[%s1 + $0x6c] sm:$0xf]
      %v248 = vld [vmem:[%s1 + $0x70] sm:$0xf]
      %v249 = vld [vmem:[%s1 + $0x74] sm:$0xf]
      %v250 = vld [vmem:[%s1 + $0x78] sm:$0xf]
      %v251 = vld [vmem:[%s1 + $0x7c] sm:$0xf]
      %v252 = vld [vmem:[%s1 + $0x80] sm:$0xf]
      %v253 = vld [vmem:[%s1 + $0x84] sm:$0xf]
      %v254 = vld [vmem:[%s1 + $0x88] sm:$0xf]
      %v255 = vld [vmem:[%s1 + $0x8c] sm:$0xf]
      %v256 = vld [vmem:[%s1 + $0x90] sm:$0xf]
      %v257 = vld [vmem:[%s1 + $0x94] sm:$0xf]
      %v258 = vld [vmem:[%s1 + $0x98] sm:$0xf]
      %v259 = vld [vmem:[%s1 + $0x9c] sm:$0xf]
      %v260 = vld [vmem:[%s1 + $0xa0] sm:$0xf]
      %v261 = vld [vmem:[%s1 + $0xa4] sm:$0xf]
      %v262 = vld [vmem:[%s1 + $0xa8] sm:$0xf]
      %v263 = vld [vmem:[%s1 + $0xac] sm:$0xf]
      %v264 = vld [vmem:[%s1 + $0xb0] sm:$0xf]
      %v265 = vld [vmem:[%s1 + $0xb4] sm:$0xf]
      %v266 = vld [vmem:[%s1 + $0xb8] sm:$0xf]
      %v267 = vld [vmem:[%s1 + $0xbc] sm:$0xf]
      %v268 = vld [vmem:[%s1 + $0xc0] sm:$0xf]
      %v269 = vld [vmem:[%s1 + $0xc4] sm:$0xf]
      %v270 = vld [vmem:[%s1 + $0xc8] sm:$0xf]
      %v271 = vld [vmem:[%s1 + $0xcc] sm:$0xf]
      %v272 = vld [vmem:[%s1 + $0xd0] sm:$0xf]
      %v273 = vld [vmem:[%s1 + $0xd4] sm:$0xf]
      %v274 = vld [vmem:[%s1 + $0xd8] sm:$0xf]
      %v275 = vld [vmem:[%s1 + $0xdc] sm:$0xf]
      %v276 = vld [vmem:[%s1 + $0xe0] sm:$0xf]
      %v277 = vld [vmem:[%s1 + $0xe4] sm:$0xf]
      %v278 = vld [vmem:[%s1 + $0xe8] sm:$0xf]
      %v279 = vld [vmem:[%s1 + $0xec] sm:$0xf]
      %v280 = vld [vmem:[%s1 + $0xf0] sm:$0xf]
      %v281 = vld [vmem:[%s1 + $0xf4] sm:$0xf]
      %v282 = vld [vmem:[%s1 + $0xf8] sm:$0xf]
      %v283 = vld [vmem:[%s1 + $0xfc] sm:$0xf]
      %v284 = vld [vmem:[%s1 + $0x100] sm:$0xf]
      %v285 = vld [vmem:[%s1 + $0x104] sm:$0xf]
      %v286 = vld [vmem:[%s1 + $0x108] sm:$0xf]
      %v287 = vld [vmem:[%s1 + $0x10c] sm:$0xf]
      %v288 = vld [vmem:[%s1 + $0x110] sm:$0xf]
      %v289 = vld [vmem:[%s1 + $0x114] sm:$0xf]
      %v290 = vld [vmem:[%s1 + $0x118] sm:$0xf]
      %v291 = vld [vmem:[%s1 + $0x11c] sm:$0xf]
      %v292 = vld [vmem:[%s1 + $0x120] sm:$0xf]
      %v293 = vld [vmem:[%s1 + $0x124] sm:$0xf]
      %v294 = vld [vmem:[%s1 + $0x128] sm:$0xf]
      %v295 = vld [vmem:[%s1 + $0x12c] sm:$0xf]
      %v296 = vld [vmem:[%s1 + $0x130] sm:$0xf]
      %v297 = vld [vmem:[%s1 + $0x134] sm:$0xf]
      %v298 = vld [vmem:[%s1 + $0x138] sm:$0xf]
      %v299 = vld [vmem:[%s1 + $0x13c] sm:$0xf]
      %v300 = vld [vmem:[%s2] sm:$0x1]
      %v302 = vlaneseq
      %v303 = vshrl.u32 %v302, 7
      %v304 = vsub.s32 0, %v303
      %v305 = vrot.slane %v300, %v304
      %v313 = vunpack.c.l.b16 %v214
      %v314 = vunpack.c.h.b16 %v214
      %v315 = vunpack.c.l.b16 %v215
      %v316 = vunpack.c.h.b16 %v215
      %v317 = vunpack.c.l.b16 %v216
      %v318 = vunpack.c.l.b16 %v217
      %v319 = vunpack.c.h.b16 %v217
      %v320 = vunpack.c.l.b16 %v218
      %v321 = vunpack.c.h.b16 %v218
      %v322 = vunpack.c.l.b16 %v219
      %v323 = vpack.c.b16 %v318, %v313
      %v324 = vpack.c.b16 %v319, %v314
      %v325 = vpack.c.b16 %v320, %v315
      %v326 = vpack.c.b16 %v321, %v316
      %v327 = vpack.c.b16 %v322, %v317
      %v413 = vunpack.c.l.b16 %v220
      %v414 = vunpack.c.l.b16 %v221
      %v415 = vunpack.c.l.b16 %v222
      %v416 = vunpack.c.l.b16 %v223
      %v417 = vunpack.c.l.b16 %v224
      %v418 = vunpack.c.l.b16 %v225
      %v419 = vunpack.c.l.b16 %v226
      %v420 = vunpack.c.l.b16 %v227
      %v421 = vunpack.c.l.b16 %v228
      %v422 = vunpack.c.l.b16 %v229
      %v423 = vunpack.c.l.b16 %v230
      %v424 = vunpack.c.l.b16 %v231
      %v425 = vunpack.c.l.b16 %v232
      %v426 = vunpack.c.l.b16 %v233
      %v427 = vunpack.c.l.b16 %v234
      %v428 = vunpack.c.l.b16 %v235
      %v429 = vunpack.c.l.b16 %v236
      %v430 = vunpack.c.l.b16 %v237
      %v431 = vunpack.c.l.b16 %v238
      %v432 = vunpack.c.l.b16 %v239
      %v433 = vunpack.c.l.b16 %v240
      %v434 = vunpack.c.l.b16 %v241
      %v435 = vunpack.c.l.b16 %v242
      %v436 = vunpack.c.l.b16 %v243
      %v437 = vunpack.c.l.b16 %v244
      %v438 = vunpack.c.l.b16 %v245
      %v439 = vunpack.c.l.b16 %v246
      %v440 = vunpack.c.l.b16 %v247
      %v441 = vunpack.c.l.b16 %v248
      %v442 = vunpack.c.l.b16 %v249
      %v443 = vunpack.c.l.b16 %v250
      %v444 = vunpack.c.l.b16 %v251
      %v445 = vunpack.c.l.b16 %v252
      %v446 = vunpack.c.l.b16 %v253
      %v447 = vunpack.c.l.b16 %v254
      %v448 = vunpack.c.l.b16 %v255
      %v449 = vunpack.c.l.b16 %v256
      %v450 = vunpack.c.l.b16 %v257
      %v451 = vunpack.c.l.b16 %v258
      %v452 = vunpack.c.l.b16 %v259
      %v453 = vunpack.c.l.b16 %v260
      %v454 = vunpack.c.l.b16 %v261
      %v455 = vunpack.c.l.b16 %v262
      %v456 = vunpack.c.l.b16 %v263
      %v457 = vunpack.c.l.b16 %v264
      %v458 = vunpack.c.l.b16 %v265
      %v459 = vunpack.c.l.b16 %v266
      %v460 = vunpack.c.l.b16 %v267
      %v461 = vunpack.c.l.b16 %v268
      %v462 = vunpack.c.l.b16 %v269
      %v463 = vunpack.c.l.b16 %v270
      %v464 = vunpack.c.l.b16 %v271
      %v465 = vunpack.c.l.b16 %v272
      %v466 = vunpack.c.l.b16 %v273
      %v467 = vunpack.c.l.b16 %v274
      %v468 = vunpack.c.l.b16 %v275
      %v469 = vunpack.c.l.b16 %v276
      %v470 = vunpack.c.l.b16 %v277
      %v471 = vunpack.c.l.b16 %v278
      %v472 = vunpack.c.l.b16 %v279
      %v473 = vunpack.c.l.b16 %v280
      %v474 = vunpack.c.l.b16 %v281
      %v475 = vunpack.c.l.b16 %v282
      %v476 = vunpack.c.l.b16 %v283
      %v477 = vunpack.c.l.b16 %v284
      %v478 = vunpack.c.l.b16 %v285
      %v479 = vunpack.c.l.b16 %v286
      %v480 = vunpack.c.l.b16 %v287
      %v481 = vunpack.c.l.b16 %v288
      %v482 = vunpack.c.l.b16 %v289
      %v483 = vunpack.c.l.b16 %v290
      %v484 = vunpack.c.l.b16 %v291
      %v485 = vunpack.c.l.b16 %v292
      %v486 = vunpack.c.l.b16 %v293
      %v487 = vunpack.c.l.b16 %v294
      %v488 = vunpack.c.l.b16 %v295
      %v489 = vunpack.c.l.b16 %v296
      %v490 = vunpack.c.l.b16 %v297
      %v491 = vunpack.c.l.b16 %v298
      %v492 = vunpack.c.l.b16 %v299
      %v493 = vpack.c.b16 %v414, %v413
      %v494 = vpack.c.b16 %v416, %v415
      %v495 = vpack.c.b16 %v418, %v417
      %v496 = vpack.c.b16 %v420, %v419
      %v497 = vpack.c.b16 %v422, %v421
      %v498 = vpack.c.b16 %v424, %v423
      %v499 = vpack.c.b16 %v426, %v425
      %v500 = vpack.c.b16 %v428, %v427
      %v501 = vpack.c.b16 %v430, %v429
      %v502 = vpack.c.b16 %v432, %v431
      %v503 = vpack.c.b16 %v434, %v433
      %v504 = vpack.c.b16 %v436, %v435
      %v505 = vpack.c.b16 %v438, %v437
      %v506 = vpack.c.b16 %v440, %v439
      %v507 = vpack.c.b16 %v442, %v441
      %v508 = vpack.c.b16 %v444, %v443
      %v509 = vpack.c.b16 %v446, %v445
      %v510 = vpack.c.b16 %v448, %v447
      %v511 = vpack.c.b16 %v450, %v449
      %v512 = vpack.c.b16 %v452, %v451
      %v513 = vpack.c.b16 %v454, %v453
      %v514 = vpack.c.b16 %v456, %v455
      %v515 = vpack.c.b16 %v458, %v457
      %v516 = vpack.c.b16 %v460, %v459
      %v517 = vpack.c.b16 %v462, %v461
      %v518 = vpack.c.b16 %v464, %v463
      %v519 = vpack.c.b16 %v466, %v465
      %v520 = vpack.c.b16 %v468, %v467
      %v521 = vpack.c.b16 %v470, %v469
      %v522 = vpack.c.b16 %v472, %v471
      %v523 = vpack.c.b16 %v474, %v473
      %v524 = vpack.c.b16 %v476, %v475
      %v525 = vpack.c.b16 %v478, %v477
      %v526 = vpack.c.b16 %v480, %v479
      %v527 = vpack.c.b16 %v482, %v481
      %v528 = vpack.c.b16 %v484, %v483
      %v529 = vpack.c.b16 %v486, %v485
      %v530 = vpack.c.b16 %v488, %v487
      %v531 = vpack.c.b16 %v490, %v489
      %v532 = vpack.c.b16 %v492, %v491
      %573 = vmatprep.subr.bf16.mxu0 0
      %574 = vmatpush1.bf16.msra.mxu0 %v493
      %575 = vmatprep.subr.bf16.mxu0 0
      %576 = vmatpush1.bf16.msra.mxu0 %v494
      %577 = vmatprep.subr.bf16.mxu0 0
      %578 = vmatpush1.bf16.msra.mxu0 %v495
      %579 = vmatprep.subr.bf16.mxu0 0
      %580 = vmatpush1.bf16.msra.mxu0 %v496
      %581 = vmatprep.subr.bf16.mxu0 0
      %582 = vmatpush1.bf16.msra.mxu0 %v497
      %583 = vmatprep.subr.bf16.mxu0 0
      %584 = vmatpush1.bf16.msra.mxu0 %v498
      %585 = vmatprep.subr.bf16.mxu0 0
      %586 = vmatpush1.bf16.msra.mxu0 %v499
      %587 = vmatprep.subr.bf16.mxu0 0
      %588 = vmatpush1.bf16.msra.mxu0 %v500
      %589 = vmatprep.subr.bf16.mxu0 0
      %590 = vmatpush1.bf16.msra.mxu0 %v501
      %591 = vmatprep.subr.bf16.mxu0 0
      %592 = vmatpush1.bf16.msra.mxu0 %v502
      %593 = vmatprep.subr.bf16.mxu0 0
      %594 = vmatpush1.bf16.msra.mxu0 %v503
      %595 = vmatprep.subr.bf16.mxu0 0
      %596 = vmatpush1.bf16.msra.mxu0 %v504
      %597 = vmatprep.subr.bf16.mxu0 0
      %598 = vmatpush1.bf16.msra.mxu0 %v505
      %599 = vmatprep.subr.bf16.mxu0 0
      %600 = vmatpush1.bf16.msra.mxu0 %v506
      %601 = vmatprep.subr.bf16.mxu0 0
      %602 = vmatpush1.bf16.msra.mxu0 %v507
      %603 = vmatprep.subr.bf16.mxu0 0
      %604 = vmatpush1.bf16.msra.mxu0 %v508
      %605 = vmatprep.mubr.bf16.mxu0 %v324
      %606 = vmatmul.mubr.bf16.gmra.mrb[0].mxu0 %v323
      %v607 = vpop.f32.mrb[0].mxu0
      %v608 = vadd.f32 %v305, %v607
      %v609 = vpop.f32.mrb[0].mxu0
      %v610 = vpop.f32.mrb[0].mxu0
      %v611 = vadd.f32 %v305, %v610
      %v612 = vpop.f32.mrb[0].mxu0
      %613 = vdwg.mxu0
      %614 = vmatprep.subr.bf16.mxu0 0
      %615 = vmatpush1.bf16.msra.mxu0 %v509
      %616 = vmatprep.subr.bf16.mxu0 0
      %617 = vmatpush1.bf16.msra.mxu0 %v510
      %618 = vmatprep.subr.bf16.mxu0 0
      %619 = vmatpush1.bf16.msra.mxu0 %v511
      %620 = vmatprep.subr.bf16.mxu0 0
      %621 = vmatpush1.bf16.msra.mxu0 %v512
      %622 = vmatprep.subr.bf16.mxu0 0
      %623 = vmatpush1.bf16.msra.mxu0 %v513
      %624 = vmatprep.subr.bf16.mxu0 0
      %625 = vmatpush1.bf16.msra.mxu0 %v514
      %626 = vmatprep.subr.bf16.mxu0 0
      %627 = vmatpush1.bf16.msra.mxu0 %v515
      %628 = vmatprep.subr.bf16.mxu0 0
      %629 = vmatpush1.bf16.msra.mxu0 %v516
      %630 = vmatprep.subr.bf16.mxu0 0
      %631 = vmatpush1.bf16.msra.mxu0 %v517
      %632 = vmatprep.subr.bf16.mxu0 0
      %633 = vmatpush1.bf16.msra.mxu0 %v518
      %634 = vmatprep.subr.bf16.mxu0 0
      %635 = vmatpush1.bf16.msra.mxu0 %v519
      %636 = vmatprep.subr.bf16.mxu0 0
      %637 = vmatpush1.bf16.msra.mxu0 %v520
      %638 = vmatprep.subr.bf16.mxu0 0
      %639 = vmatpush1.bf16.msra.mxu0 %v521
      %640 = vmatprep.subr.bf16.mxu0 0
      %641 = vmatpush1.bf16.msra.mxu0 %v522
      %642 = vmatprep.subr.bf16.mxu0 0
      %643 = vmatpush1.bf16.msra.mxu0 %v523
      %644 = vmatprep.subr.bf16.mxu0 0
      %645 = vmatpush1.bf16.msra.mxu0 %v524
      %646 = vmatprep.mubr.bf16.mxu0 %v326
      %647 = vmatmul.mubr.bf16.gmra.mrb[0].mxu0 %v325
      %v648 = vpop.f32.mrb[0].mxu0
      %v649 = vadd.f32 %v608, %v648
      %v650 = vpop.f32.mrb[0].mxu0
      %v651 = vpop.f32.mrb[0].mxu0
      %v652 = vadd.f32 %v611, %v651
      %v653 = vpop.f32.mrb[0].mxu0
      %654 = vdwg.mxu0
      %655 = vmatprep.subr.bf16.mxu0 0
      %656 = vmatpush1.bf16.msra.mxu0 %v525
      %657 = vmatprep.subr.bf16.mxu0 0
      %658 = vmatpush1.bf16.msra.mxu0 %v526
      %659 = vmatprep.subr.bf16.mxu0 0
      %660 = vmatpush1.bf16.msra.mxu0 %v527
      %661 = vmatprep.subr.bf16.mxu0 0
      %662 = vmatpush1.bf16.msra.mxu0 %v528
      %663 = vmatprep.subr.bf16.mxu0 0
      %664 = vmatpush1.bf16.msra.mxu0 %v529
      %665 = vmatprep.subr.bf16.mxu0 0
      %666 = vmatpush1.bf16.msra.mxu0 %v530
      %667 = vmatprep.subr.bf16.mxu0 0
      %668 = vmatpush1.bf16.msra.mxu0 %v531
      %669 = vmatprep.subr.bf16.mxu0 0
      %670 = vmatpush1.bf16.msra.mxu0 %v532
      %671 = vmatprep.subr.bf16.mxu0 0
      %672 = vmatpush1.bf16.msra.mxu0 0
      %673 = vmatprep.subr.bf16.mxu0 0
      %674 = vmatpush1.bf16.msra.mxu0 0
      %675 = vmatprep.subr.bf16.mxu0 0
      %676 = vmatpush1.bf16.msra.mxu0 0
      %677 = vmatprep.subr.bf16.mxu0 0
      %678 = vmatpush1.bf16.msra.mxu0 0
      %679 = vmatprep.subr.bf16.mxu0 0
      %680 = vmatpush1.bf16.msra.mxu0 0
      %681 = vmatprep.subr.bf16.mxu0 0
      %682 = vmatpush1.bf16.msra.mxu0 0
      %683 = vmatprep.subr.bf16.mxu0 0
      %684 = vmatpush1.bf16.msra.mxu0 0
      %685 = vmatprep.subr.bf16.mxu0 0
      %686 = vmatpush1.bf16.msra.mxu0 0
      %687 = vmatprep.mubr.bf16.mxu0 0
      %688 = vmatmul.mubr.bf16.gmra.mrb[0].mxu0 %v327
      %v689 = vpop.f32.mrb[0].mxu0
      %v690 = vadd.f32 %v649, %v689
      %v691 = vpop.f32.mrb[0].mxu0
      %v692 = vpop.f32.mrb[0].mxu0
      %v693 = vadd.f32 %v652, %v692
      %v694 = vpop.f32.mrb[0].mxu0
      %695 = vdwg.mxu0
      %v696 = vmax.f32 %v690, 0.0
      %v697 = vmax.f32 %v693, 0.0
      %v698 = vpack.c.bf16 %v697, %v696
      %v700 = vunpack.c.l.b16 %v698
      %v701 = vunpack.c.h.b16 %v698
      %v702 = vpack.c.b16 %v700, %v700
      %v703 = vpack.c.b16 %v701, %v701
      %706 = vst [vmem:[%s211] sm:$0xf] %v702
      %707 = vst [vmem:[%s211 + $0x4] sm:$0xf] %v703
      %s708 = smul.u32 2, %s19
      %p709 = scmp.lt.s32.totalorder %s18, 1
      %s710 = scalar_select %p709, %s18, 1
      %p711 = scmp.lt.s32.totalorder %s708, 1
      %s712 = scalar_select %p711, %s708, 1
      %s713 = smul.addr %s710, 2
      %s714 = sadd.s32 %s712, %s713
      %s715 = smul.addr %s714, 4
      %s716 = scalar_lea.vmem %s3, %s715
      // Predicated region
      $region33: #{semantic_encoder_forward.6} parent=31 // pred_check
        %p717 = pneg %p116
      $region34: #{semantic_encoder_forward.6} parent=31 // pred_check_branch
        %719 = sbr.rel (%p717) target = $region36
      $region35: #{semantic_encoder_forward.6} parent=31 // pred_region
        %s720 = smul.u32 2, %s19
      $region36: #{semantic_encoder_forward.6} parent=31 // pred_fallthru
        _
    $region32: #{semantic_encoder_forward.6} parent=5 // pred_fallthru
      _
    %p721 = scmp.le.s32.totalorder 2, %s9
    // Predicated region
    $region37: #{semantic_encoder_forward.6} parent=5 // pred_check
      %p722 = pneg %p721
    $region38: #{semantic_encoder_forward.6} parent=5 // pred_check_branch
      %724 = sbr.rel (%p722) target = $region40
    $region39: #{semantic_encoder_forward.6} parent=5 // pred_region
      %s725 = ssub.s32 %s9, 2
      // Predicated region
      $region41: #{semantic_encoder_forward.6} parent=39 // pred_check
        %p726 = pneg %p122
      $region42: #{semantic_encoder_forward.6} parent=39 // pred_check_branch
        %728 = sbr.rel (%p726) target = $region44
      $region43: #{semantic_encoder_forward.6} parent=39 // pred_region
        %s729 = smul.u32 2, %s21
        %p730 = scmp.lt.s32.totalorder %s20, 1
        %s731 = scalar_select %p730, %s20, 1
        %p732 = scmp.lt.s32.totalorder %s729, 1
        %s733 = scalar_select %p732, %s729, 1
        %s734 = smul.addr %s731, 2
        %s735 = sadd.s32 %s733, %s734
        %s736 = smul.addr %s735, 4
        %s737 = scalar_lea.vmem %s3, %s736
      $region44: #{semantic_encoder_forward.6} parent=39 // pred_fallthru
        _
    $region40: #{semantic_encoder_forward.6} parent=5 // pred_fallthru
      _
  $region6: #{semantic_encoder_forward.6} parent=0 // loop_footer
    %s13 = sadd.s32 1, %s9
  $region7: #{semantic_encoder_forward.6} parent=0 // loop_footer_branch
    %8 = sbr.rel target = $region3
  $region8: #{semantic_encoder_forward.6} parent=0 // loop_exit
    _

// kernel: semantic_encoder_forward.7
$region0: #{semantic_encoder_forward.7}
  #allocation0 [shape = 'u32[]', space=smem, size = 0x4, offset = 0x4, fixed_abs, tag = 'smem constant byte address 0x4 - core index']
  #allocation1 [shape = 'u32[144,128]{1,0:T(1,128)}', space=vmem, size = 0x12000, scoped, tag = 'internal scratch']
  %s0 = inlined_call_operand.vmem [shape: bf16[2,4,1152], index: 0, kind: input, shape index: {}]
  %s1 = inlined_call_operand.vmem [shape: bf16[1152,256], index: 1, kind: input, shape index: {}]
  %s2 = inlined_call_operand.vmem [shape: f32[1,256], index: 2, kind: input, shape index: {}]
  %s3 = inlined_call_operand.vmem [shape: bf16[2,4,256], index: 3, kind: output, shape index: {}]
  %s4 = sld [smem:[#allocation0]]
  $region45: #{semantic_encoder_forward.7} parent=0
    _
  %s6 = ssub.s32 1, %s4
  %s7 = scalar_select 0, %s6, %s4
  loop: start=0, step=1, limit=4
  $region2: #{semantic_encoder_forward.7} parent=0 // loop_pre_header
    _
  $region3: #{semantic_encoder_forward.7} parent=0 // loop_header
    %s9 = sphi 0, %s13
    %p10 = scmp.ge.s32.totalorder %s9, 4
    %s16 = sphi 0, %s28
    %s17 = sphi 0, %s24
    %s18 = sphi 0, %s16
    %s19 = sphi 0, %s17
    %s20 = sphi 0, %s18
    %s21 = sphi 0, %s19
    %s33 = sphi 0, %s35
    %s36 = sphi 0, %s33
    %s37 = sphi 0, %s36
    %s53 = sphi 0, %s37
    %s57 = sphi 0, %s57
    %s59 = sphi 0, %s57
    %s60 = sphi 0, %s59
    %s74 = sphi 0, %s60
    %s78 = sphi 0, %s78
    %s80 = sphi 0, %s78
    %s81 = sphi 0, %s80
    %s95 = sphi 0, %s81
    %s103 = sphi 0, %s105
    %s106 = sphi 0, %s103
    %s107 = sphi 0, %s106
    %s123 = sphi 0, %s107
  $region4: #{semantic_encoder_forward.7} parent=0 // loop_header_branch
    %12 = sbr.rel (%p10) target = $region8
  $region5: #{semantic_encoder_forward.7} parent=0 // loop_body
    %s14 = ssub.s32 %s9, 1
    %s15 = ssub.s32 %s9, 2
    %s22 = sadd.s32 1, %s17
    %p23 = scmp.ge.s32.totalorder %s22, 1
    %s24 = scalar_select %p23, 0, %s22
    %s25 = sadd.s32 1, %s16
    %s26 = scalar_select %p23, %s25, %s16
    %p27 = scmp.ge.s32.totalorder %s26, 2
    %s28 = scalar_select %p27, 0, %s26
    %s29 = ssub.s32 %s16, %s28
    %s30 = ssub.s32 %s17, %s24
    %s31 = sor.u32 %s29, %s30
    %p32 = scmp.eq.s32.totalorder %s31, 0
    %s34 = sadd.s32 %s33, 1
    %s35 = scalar_select %p32, %s33, %s34
    %p38 = pneg %p32
    %p39 = scmp.eq.s32.totalorder %s9, 1
    %p40 = por %p38, %p39
    %p41 = scmp.ne.s32.totalorder %s33, %s36
    %p42 = scmp.eq.s32.totalorder %s9, 0
    %p43 = por %p41, %p42
    %p44 = scmp.ne.s32.totalorder %s33, %s36
    %p45 = scmp.eq.s32.totalorder %s14, 1
    %p46 = por %p44, %p45
    %p47 = scmp.ne.s32.totalorder %s36, %s37
    %p48 = scmp.eq.s32.totalorder %s14, 0
    %p49 = por %p47, %p48
    %p50 = scmp.ne.s32.totalorder %s36, %s37
    %p51 = scmp.eq.s32.totalorder %s15, 1
    %p52 = por %p50, %p51
    %p54 = scmp.ne.s32.totalorder %s37, %s53
    %p55 = scmp.eq.s32.totalorder %s15, 0
    %p56 = por %p54, %p55
    %s58 = sadd.s32 %s57, 1
    %p61 = scmp.eq.s32.totalorder %s9, 1
    %p62 = scmp.ne.s32.totalorder %s57, %s59
    %p63 = scmp.eq.s32.totalorder %s9, 0
    %p64 = por %p62, %p63
    %p65 = scmp.ne.s32.totalorder %s57, %s59
    %p66 = scmp.eq.s32.totalorder %s14, 1
    %p67 = por %p65, %p66
    %p68 = scmp.ne.s32.totalorder %s59, %s60
    %p69 = scmp.eq.s32.totalorder %s14, 0
    %p70 = por %p68, %p69
    %p71 = scmp.ne.s32.totalorder %s59, %s60
    %p72 = scmp.eq.s32.totalorder %s15, 1
    %p73 = por %p71, %p72
    %p75 = scmp.ne.s32.totalorder %s60, %s74
    %p76 = scmp.eq.s32.totalorder %s15, 0
    %p77 = por %p75, %p76
    %s79 = sadd.s32 %s78, 1
    %p82 = scmp.eq.s32.totalorder %s9, 1
    %p83 = scmp.ne.s32.totalorder %s78, %s80
    %p84 = scmp.eq.s32.totalorder %s9, 0
    %p85 = por %p83, %p84
    %p86 = scmp.ne.s32.totalorder %s78, %s80
    %p87 = scmp.eq.s32.totalorder %s14, 1
    %p88 = por %p86, %p87
    %p89 = scmp.ne.s32.totalorder %s80, %s81
    %p90 = scmp.eq.s32.totalorder %s14, 0
    %p91 = por %p89, %p90
    %p92 = scmp.ne.s32.totalorder %s80, %s81
    %p93 = scmp.eq.s32.totalorder %s15, 1
    %p94 = por %p92, %p93
    %p96 = scmp.ne.s32.totalorder %s81, %s95
    %p97 = scmp.eq.s32.totalorder %s15, 0
    %p98 = por %p96, %p97
    %s99 = ssub.s32 %s16, %s28
    %s100 = ssub.s32 %s17, %s24
    %s101 = sor.u32 %s99, %s100
    %p102 = scmp.eq.s32.totalorder %s101, 0
    %s104 = sadd.s32 %s103, 1
    %s105 = scalar_select %p102, %s103, %s104
    %p108 = pneg %p102
    %p109 = scmp.eq.s32.totalorder %s9, 1
    %p110 = por %p108, %p109
    %p111 = scmp.ne.s32.totalorder %s103, %s106
    %p112 = scmp.eq.s32.totalorder %s9, 0
    %p113 = por %p111, %p112
    %p114 = scmp.ne.s32.totalorder %s103, %s106
    %p115 = scmp.eq.s32.totalorder %s14, 1
    %p116 = por %p114, %p115
    %p117 = scmp.ne.s32.totalorder %s106, %s107
    %p118 = scmp.eq.s32.totalorder %s14, 0
    %p119 = por %p117, %p118
    %p120 = scmp.ne.s32.totalorder %s106, %s107
    %p121 = scmp.eq.s32.totalorder %s15, 1
    %p122 = por %p120, %p121
    %p124 = scmp.ne.s32.totalorder %s107, %s123
    %p125 = scmp.eq.s32.totalorder %s15, 0
    %p126 = por %p124, %p125
    %p127 = scmp.le.s32.totalorder 1, %s9
    %p128 = scmp.lt.s32.totalorder %s9, 3
    %p129 = pnand %p127, %p128
    %p130 = pneg %p129
    // Predicated region
    $region9: #{semantic_encoder_forward.7} parent=5 // pred_check
      _
    $region10: #{semantic_encoder_forward.7} parent=5 // pred_check_branch
      %132 = sbr.rel (%p129) target = $region12
    $region11: #{semantic_encoder_forward.7} parent=5 // pred_region
      %s133 = ssub.s32 %s9, 1
      // Predicated region
      $region13: #{semantic_encoder_forward.7} parent=11 // pred_check
        %p134 = pneg %p70
      $region14: #{semantic_encoder_forward.7} parent=11 // pred_check_branch
        %136 = sbr.rel (%p134) target = $region16
      $region15: #{semantic_encoder_forward.7} parent=11 // pred_region
        _
      $region16: #{semantic_encoder_forward.7} parent=11 // pred_fallthru
        _
      // Predicated region
      $region17: #{semantic_encoder_forward.7} parent=11 // pred_check
        %p137 = pneg %p91
      $region18: #{semantic_encoder_forward.7} parent=11 // pred_check_branch
        %139 = sbr.rel (%p137) target = $region20
      $region19: #{semantic_encoder_forward.7} parent=11 // pred_region
        _
      $region20: #{semantic_encoder_forward.7} parent=11 // pred_fallthru
        _
    $region12: #{semantic_encoder_forward.7} parent=5 // pred_fallthru
      _
    %p140 = scmp.lt.s32.totalorder %s9, 2
    // Predicated region
    $region21: #{semantic_encoder_forward.7} parent=5 // pred_check
      %p141 = pneg %p140
    $region22: #{semantic_encoder_forward.7} parent=5 // pred_check_branch
      %143 = sbr.rel (%p141) target = $region24
    $region23: #{semantic_encoder_forward.7} parent=5 // pred_region
      // Predicated region
      $region25: #{semantic_encoder_forward.7} parent=23 // pred_check
        %p144 = pneg %p43
      $region26: #{semantic_encoder_forward.7} parent=23 // pred_check_branch
        %146 = sbr.rel (%p144) target = $region28
      $region27: #{semantic_encoder_forward.7} parent=23 // pred_region
        %p147 = scmp.lt.s32.totalorder %s16, 1
        %s148 = scalar_select %p147, %s16, 1
        %p149 = scmp.lt.s32.totalorder %s17, 0
        %s150 = scalar_select %p149, %s17, 0
        %s151 = smul.addr %s150, 9
        %s152 = smul.addr %s148, 9
        %s153 = sadd.s32 %s151, %s152
        %s154 = smul.addr %s153, 2
        %s155 = scalar_lea.vmem %s0, %s154
      $region28: #{semantic_encoder_forward.7} parent=23 // pred_fallthru
        _
    $region24: #{semantic_encoder_forward.7} parent=5 // pred_fallthru
      _
    %p156 = scmp.le.s32.totalorder 1, %s9
    %p157 = scmp.lt.s32.totalorder %s9, 3
    %p158 = pnand %p156, %p157
    %p159 = pneg %p158
    // Predicated region
    $region29: #{semantic_encoder_forward.7} parent=5 // pred_check
      _
    $region30: #{semantic_encoder_forward.7} parent=5 // pred_check_branch
      %161 = sbr.rel (%p158) target = $region32
    $region31: #{semantic_encoder_forward.7} parent=5 // pred_region
      %s162 = ssub.s32 %s9, 1
      %p163 = scmp.lt.s32.totalorder %s18, 1
      %s164 = scalar_select %p163, %s18, 1
      %p165 = scmp.lt.s32.totalorder %s19, 0
      %s166 = scalar_select %p165, %s19, 0
      %s167 = smul.addr %s166, 9
      %s168 = smul.addr %s164, 9
      %s169 = sadd.s32 %s167, %s168
      %s170 = smul.addr %s169, 2
      %s171 = scalar_lea.vmem %s0, %s170
      %p172 = pneg %p49
      %p173 = pneg %p46
      %p174 = pneg %p70
      %p175 = pneg %p67
      %p176 = pneg %p91
      %p177 = pneg %p88
      %p178 = pneg %p119
      %p179 = pneg %p116
      %p180 = scmp.lt.s32.totalorder %s18, 1
      %s181 = scalar_select %p180, %s18, 1
      %p182 = scmp.lt.s32.totalorder %s19, 0
      %s183 = scalar_select %p182, %s19, 0
      %s184 = smul.addr %s183, 2
      %s185 = smul.addr %s181, 2
      %s186 = sadd.s32 %s184, %s185
      %s187 = smul.addr %s186, 2
      %s188 = scalar_lea.vmem %s3, %s187
      %p189 = scmp.lt.s32.totalorder %s18, 1
      %s190 = scalar_select %p189, %s18, 1
      %p191 = scmp.lt.s32.totalorder %s19, 0
      %s192 = scalar_select %p191, %s19, 0
      %s193 = smul.addr %s192, 9
      %s194 = smul.addr %s190, 9
      %s195 = sadd.s32 %s193, %s194
      %s196 = smul.addr %s195, 2
      %s197 = scalar_lea.vmem %s0, %s196
      %p198 = scmp.lt.s32.totalorder %s18, 1
      %s199 = scalar_select %p198, %s18, 1
      %p200 = scmp.lt.s32.totalorder %s19, 0
      %s201 = scalar_select %p200, %s19, 0
      %s202 = smul.addr %s201, 2
      %s203 = smul.addr %s199, 2
      %s204 = sadd.s32 %s202, %s203
      %s205 = smul.addr %s204, 2
      %s206 = scalar_lea.vmem %s3, %s205
      %v208 = vld [vmem:[%s197] sm:$0xff]
      %v209 = vld [vmem:[%s197 + $0x8] sm:$0xff]
      %v210 = vld [vmem:[%s197 + $0x10] sm:$0x3]
      %v211 = vld [vmem:[%s1] sm:$0xff]
      %v212 = vld [vmem:[%s1 + $0x8] sm:$0xff]
      %v213 = vld [vmem:[%s1 + $0x10] sm:$0xff]
      %v214 = vld [vmem:[%s1 + $0x18] sm:$0xff]
      %v215 = vld [vmem:[%s1 + $0x20] sm:$0xff]
      %v216 = vld [vmem:[%s1 + $0x28] sm:$0xff]
      %v217 = vld [vmem:[%s1 + $0x30] sm:$0xff]
      %v218 = vld [vmem:[%s1 + $0x38] sm:$0xff]
      %v219 = vld [vmem:[%s1 + $0x40] sm:$0xff]
      %v220 = vld [vmem:[%s1 + $0x48] sm:$0xff]
      %v221 = vld [vmem:[%s1 + $0x50] sm:$0xff]
      %v222 = vld [vmem:[%s1 + $0x58] sm:$0xff]
      %v223 = vld [vmem:[%s1 + $0x60] sm:$0xff]
      %v224 = vld [vmem:[%s1 + $0x68] sm:$0xff]
      %v225 = vld [vmem:[%s1 + $0x70] sm:$0xff]
      %v226 = vld [vmem:[%s1 + $0x78] sm:$0xff]
      %v227 = vld [vmem:[%s1 + $0x80] sm:$0xff]
      %v228 = vld [vmem:[%s1 + $0x88] sm:$0xff]
      %v229 = vld [vmem:[%s1 + $0x90] sm:$0xff]
      %v230 = vld [vmem:[%s1 + $0x98] sm:$0xff]
      %v231 = vld [vmem:[%s1 + $0xa0] sm:$0xff]
      %v232 = vld [vmem:[%s1 + $0xa8] sm:$0xff]
      %v233 = vld [vmem:[%s1 + $0xb0] sm:$0xff]
      %v234 = vld [vmem:[%s1 + $0xb8] sm:$0xff]
      %v235 = vld [vmem:[%s1 + $0xc0] sm:$0xff]
      %v236 = vld [vmem:[%s1 + $0xc8] sm:$0xff]
      %v237 = vld [vmem:[%s1 + $0xd0] sm:$0xff]
      %v238 = vld [vmem:[%s1 + $0xd8] sm:$0xff]
      %v239 = vld [vmem:[%s1 + $0xe0] sm:$0xff]
      %v240 = vld [vmem:[%s1 + $0xe8] sm:$0xff]
      %v241 = vld [vmem:[%s1 + $0xf0] sm:$0xff]
      %v242 = vld [vmem:[%s1 + $0xf8] sm:$0xff]
      %v243 = vld [vmem:[%s1 + $0x100] sm:$0xff]
      %v244 = vld [vmem:[%s1 + $0x108] sm:$0xff]
      %v245 = vld [vmem:[%s1 + $0x110] sm:$0xff]
      %v246 = vld [vmem:[%s1 + $0x118] sm:$0xff]
      %v247 = vld [vmem:[%s1 + $0x120] sm:$0xff]
      %v248 = vld [vmem:[%s1 + $0x128] sm:$0xff]
      %v249 = vld [vmem:[%s1 + $0x130] sm:$0xff]
      %v250 = vld [vmem:[%s1 + $0x138] sm:$0xff]
      %v251 = vld [vmem:[%s1 + $0x140] sm:$0xff]
      %v252 = vld [vmem:[%s1 + $0x148] sm:$0xff]
      %v253 = vld [vmem:[%s1 + $0x150] sm:$0xff]
      %v254 = vld [vmem:[%s1 + $0x158] sm:$0xff]
      %v255 = vld [vmem:[%s1 + $0x160] sm:$0xff]
      %v256 = vld [vmem:[%s1 + $0x168] sm:$0xff]
      %v257 = vld [vmem:[%s1 + $0x170] sm:$0xff]
      %v258 = vld [vmem:[%s1 + $0x178] sm:$0xff]
      %v259 = vld [vmem:[%s1 + $0x180] sm:$0xff]
      %v260 = vld [vmem:[%s1 + $0x188] sm:$0xff]
      %v261 = vld [vmem:[%s1 + $0x190] sm:$0xff]
      %v262 = vld [vmem:[%s1 + $0x198] sm:$0xff]
      %v263 = vld [vmem:[%s1 + $0x1a0] sm:$0xff]
      %v264 = vld [vmem:[%s1 + $0x1a8] sm:$0xff]
      %v265 = vld [vmem:[%s1 + $0x1b0] sm:$0xff]
      %v266 = vld [vmem:[%s1 + $0x1b8] sm:$0xff]
      %v267 = vld [vmem:[%s1 + $0x1c0] sm:$0xff]
      %v268 = vld [vmem:[%s1 + $0x1c8] sm:$0xff]
      %v269 = vld [vmem:[%s1 + $0x1d0] sm:$0xff]
      %v270 = vld [vmem:[%s1 + $0x1d8] sm:$0xff]
      %v271 = vld [vmem:[%s1 + $0x1e0] sm:$0xff]
      %v272 = vld [vmem:[%s1 + $0x1e8] sm:$0xff]
      %v273 = vld [vmem:[%s1 + $0x1f0] sm:$0xff]
      %v274 = vld [vmem:[%s1 + $0x1f8] sm:$0xff]
      %v275 = vld [vmem:[%s1 + $0x200] sm:$0xff]
      %v276 = vld [vmem:[%s1 + $0x208] sm:$0xff]
      %v277 = vld [vmem:[%s1 + $0x210] sm:$0xff]
      %v278 = vld [vmem:[%s1 + $0x218] sm:$0xff]
      %v279 = vld [vmem:[%s1 + $0x220] sm:$0xff]
      %v280 = vld [vmem:[%s1 + $0x228] sm:$0xff]
      %v281 = vld [vmem:[%s1 + $0x230] sm:$0xff]
      %v282 = vld [vmem:[%s1 + $0x238] sm:$0xff]
      %v283 = vld [vmem:[%s1 + $0x240] sm:$0xff]
      %v284 = vld [vmem:[%s1 + $0x248] sm:$0xff]
      %v285 = vld [vmem:[%s1 + $0x250] sm:$0xff]
      %v286 = vld [vmem:[%s1 + $0x258] sm:$0xff]
      %v287 = vld [vmem:[%s1 + $0x260] sm:$0xff]
      %v288 = vld [vmem:[%s1 + $0x268] sm:$0xff]
      %v289 = vld [vmem:[%s1 + $0x270] sm:$0xff]
      %v290 = vld [vmem:[%s1 + $0x278] sm:$0xff]
      %v291 = vld [vmem:[%s1 + $0x280] sm:$0xff]
      %v292 = vld [vmem:[%s1 + $0x288] sm:$0xff]
      %v293 = vld [vmem:[%s1 + $0x290] sm:$0xff]
      %v294 = vld [vmem:[%s1 + $0x298] sm:$0xff]
      %v295 = vld [vmem:[%s1 + $0x2a0] sm:$0xff]
      %v296 = vld [vmem:[%s1 + $0x2a8] sm:$0xff]
      %v297 = vld [vmem:[%s1 + $0x2b0] sm:$0xff]
      %v298 = vld [vmem:[%s1 + $0x2b8] sm:$0xff]
      %v299 = vld [vmem:[%s1 + $0x2c0] sm:$0xff]
      %v300 = vld [vmem:[%s1 + $0x2c8] sm:$0xff]
      %v301 = vld [vmem:[%s1 + $0x2d0] sm:$0xff]
      %v302 = vld [vmem:[%s1 + $0x2d8] sm:$0xff]
      %v303 = vld [vmem:[%s1 + $0x2e0] sm:$0xff]
      %v304 = vld [vmem:[%s1 + $0x2e8] sm:$0xff]
      %v305 = vld [vmem:[%s1 + $0x2f0] sm:$0xff]
      %v306 = vld [vmem:[%s1 + $0x2f8] sm:$0xff]
      %v307 = vld [vmem:[%s1 + $0x300] sm:$0xff]
      %v308 = vld [vmem:[%s1 + $0x308] sm:$0xff]
      %v309 = vld [vmem:[%s1 + $0x310] sm:$0xff]
      %v310 = vld [vmem:[%s1 + $0x318] sm:$0xff]
      %v311 = vld [vmem:[%s1 + $0x320] sm:$0xff]
      %v312 = vld [vmem:[%s1 + $0x328] sm:$0xff]
      %v313 = vld [vmem:[%s1 + $0x330] sm:$0xff]
      %v314 = vld [vmem:[%s1 + $0x338] sm:$0xff]
      %v315 = vld [vmem:[%s1 + $0x340] sm:$0xff]
      %v316 = vld [vmem:[%s1 + $0x348] sm:$0xff]
      %v317 = vld [vmem:[%s1 + $0x350] sm:$0xff]
      %v318 = vld [vmem:[%s1 + $0x358] sm:$0xff]
      %v319 = vld [vmem:[%s1 + $0x360] sm:$0xff]
      %v320 = vld [vmem:[%s1 + $0x368] sm:$0xff]
      %v321 = vld [vmem:[%s1 + $0x370] sm:$0xff]
      %v322 = vld [vmem:[%s1 + $0x378] sm:$0xff]
      %v323 = vld [vmem:[%s1 + $0x380] sm:$0xff]
      %v324 = vld [vmem:[%s1 + $0x388] sm:$0xff]
      %v325 = vld [vmem:[%s1 + $0x390] sm:$0xff]
      %v326 = vld [vmem:[%s1 + $0x398] sm:$0xff]
      %v327 = vld [vmem:[%s1 + $0x3a0] sm:$0xff]
      %v328 = vld [vmem:[%s1 + $0x3a8] sm:$0xff]
      %v329 = vld [vmem:[%s1 + $0x3b0] sm:$0xff]
      %v330 = vld [vmem:[%s1 + $0x3b8] sm:$0xff]
      %v331 = vld [vmem:[%s1 + $0x3c0] sm:$0xff]
      %v332 = vld [vmem:[%s1 + $0x3c8] sm:$0xff]
      %v333 = vld [vmem:[%s1 + $0x3d0] sm:$0xff]
      %v334 = vld [vmem:[%s1 + $0x3d8] sm:$0xff]
      %v335 = vld [vmem:[%s1 + $0x3e0] sm:$0xff]
      %v336 = vld [vmem:[%s1 + $0x3e8] sm:$0xff]
      %v337 = vld [vmem:[%s1 + $0x3f0] sm:$0xff]
      %v338 = vld [vmem:[%s1 + $0x3f8] sm:$0xff]
      %v339 = vld [vmem:[%s1 + $0x400] sm:$0xff]
      %v340 = vld [vmem:[%s1 + $0x408] sm:$0xff]
      %v341 = vld [vmem:[%s1 + $0x410] sm:$0xff]
      %v342 = vld [vmem:[%s1 + $0x418] sm:$0xff]
      %v343 = vld [vmem:[%s1 + $0x420] sm:$0xff]
      %v344 = vld [vmem:[%s1 + $0x428] sm:$0xff]
      %v345 = vld [vmem:[%s1 + $0x430] sm:$0xff]
      %v346 = vld [vmem:[%s1 + $0x438] sm:$0xff]
      %v347 = vld [vmem:[%s1 + $0x440] sm:$0xff]
      %v348 = vld [vmem:[%s1 + $0x448] sm:$0xff]
      %v349 = vld [vmem:[%s1 + $0x450] sm:$0xff]
      %v350 = vld [vmem:[%s1 + $0x458] sm:$0xff]
      %v351 = vld [vmem:[%s1 + $0x460] sm:$0xff]
      %v352 = vld [vmem:[%s1 + $0x468] sm:$0xff]
      %v353 = vld [vmem:[%s1 + $0x470] sm:$0xff]
      %v354 = vld [vmem:[%s1 + $0x478] sm:$0xff]
      %v355 = vld [vmem:[%s2] sm:$0x3]
      %v357 = vlaneseq
      %v358 = vshrl.u32 %v357, 7
      %v359 = vsub.s32 0, %v358
      %v360 = vrot.slane %v355, %v359
      %v361 = vlaneseq
      %v362 = vshrl.u32 %v361, 7
      %v363 = vsub.s32 1, %v362
      %v364 = vrot.slane %v355, %v363
      %v370 = vcombine.high %v208, %v208
      %v372 = vunpack.c.l.s4 1983009808
      %v373 = vunpack.c.0.s8 %v372
      %v374 = vlaneseq
      %v375 = vshrl.u32 %v374, 7
      %v376 = vsub.s32 %v373, %v375
      %v377 = vrot.slane %v208, %v376
      %v379 = vunpack.c.l.s4 1983009808
      %v380 = vunpack.c.0.s8 %v379
      %v381 = vlaneseq
      %v382 = vshrl.u32 %v381, 7
      %v383 = vsub.s32 %v380, %v382
      %v384 = vrot.slane %v370, %v383
      %v385 = vcombine.high %v377, %v377
      %v386 = vcombine.high %v384, %v384
      %v387 = vcombine.high %v209, %v209
      %v389 = vunpack.c.l.s4 1983009808
      %v390 = vunpack.c.0.s8 %v389
      %v391 = vlaneseq
      %v392 = vshrl.u32 %v391, 7
      %v393 = vsub.s32 %v390, %v392
      %v394 = vrot.slane %v209, %v393
      %v396 = vunpack.c.l.s4 1983009808
      %v397 = vunpack.c.0.s8 %v396
      %v398 = vlaneseq
      %v399 = vshrl.u32 %v398, 7
      %v400 = vsub.s32 %v397, %v399
      %v401 = vrot.slane %v387, %v400
      %v402 = vcombine.high %v394, %v394
      %v403 = vcombine.high %v401, %v401
      %v405 = vunpack.c.l.s4 1983009808
      %v406 = vunpack.c.0.s8 %v405
      %v407 = vlaneseq
      %v408 = vshrl.u32 %v407, 7
      %v409 = vsub.s32 %v406, %v408
      %v410 = vrot.slane %v210, %v409
      %v564 = vunpack.c.l.b16 %v211
      %v565 = vunpack.c.h.b16 %v211
      %v566 = vunpack.c.l.b16 %v212
      %v567 = vunpack.c.h.b16 %v212
      %v568 = vunpack.c.l.b16 %v213
      %v569 = vunpack.c.h.b16 %v213
      %v570 = vunpack.c.l.b16 %v214
      %v571 = vunpack.c.h.b16 %v214
      %v572 = vunpack.c.l.b16 %v215
      %v573 = vunpack.c.h.b16 %v215
      %v574 = vunpack.c.l.b16 %v216
      %v575 = vunpack.c.h.b16 %v216
      %v576 = vunpack.c.l.b16 %v217
      %v577 = vunpack.c.h.b16 %v217
      %v578 = vunpack.c.l.b16 %v218
      %v579 = vunpack.c.h.b16 %v218
      %v580 = vunpack.c.l.b16 %v219
      %v581 = vunpack.c.h.b16 %v219
      %v582 = vunpack.c.l.b16 %v220
      %v583 = vunpack.c.h.b16 %v220
      %v584 = vunpack.c.l.b16 %v221
      %v585 = vunpack.c.h.b16 %v221
      %v586 = vunpack.c.l.b16 %v222
      %v587 = vunpack.c.h.b16 %v222
      %v588 = vunpack.c.l.b16 %v223
      %v589 = vunpack.c.h.b16 %v223
      %v590 = vunpack.c.l.b16 %v224
      %v591 = vunpack.c.h.b16 %v224
      %v592 = vunpack.c.l.b16 %v225
      %v593 = vunpack.c.h.b16 %v225
      %v594 = vunpack.c.l.b16 %v226
      %v595 = vunpack.c.h.b16 %v226
      %v596 = vunpack.c.l.b16 %v227
      %v597 = vunpack.c.h.b16 %v227
      %v598 = vunpack.c.l.b16 %v228
      %v599 = vunpack.c.h.b16 %v228
      %v600 = vunpack.c.l.b16 %v229
      %v601 = vunpack.c.h.b16 %v229
      %v602 = vunpack.c.l.b16 %v230
      %v603 = vunpack.c.h.b16 %v230
      %v604 = vunpack.c.l.b16 %v231
      %v605 = vunpack.c.h.b16 %v231
      %v606 = vunpack.c.l.b16 %v232
      %v607 = vunpack.c.h.b16 %v232
      %v608 = vunpack.c.l.b16 %v233
      %v609 = vunpack.c.h.b16 %v233
      %v610 = vunpack.c.l.b16 %v234
      %v611 = vunpack.c.h.b16 %v234
      %v612 = vunpack.c.l.b16 %v235
      %v613 = vunpack.c.h.b16 %v235
      %v614 = vunpack.c.l.b16 %v236
      %v615 = vunpack.c.h.b16 %v236
      %v616 = vunpack.c.l.b16 %v237
      %v617 = vunpack.c.h.b16 %v237
      %v618 = vunpack.c.l.b16 %v238
      %v619 = vunpack.c.h.b16 %v238
      %v620 = vunpack.c.l.b16 %v239
      %v621 = vunpack.c.h.b16 %v239
      %v622 = vunpack.c.l.b16 %v240
      %v623 = vunpack.c.h.b16 %v240
      %v624 = vunpack.c.l.b16 %v241
      %v625 = vunpack.c.h.b16 %v241
      %v626 = vunpack.c.l.b16 %v242
      %v627 = vunpack.c.h.b16 %v242
      %v628 = vunpack.c.l.b16 %v243
      %v629 = vunpack.c.h.b16 %v243
      %v630 = vunpack.c.l.b16 %v244
      %v631 = vunpack.c.h.b16 %v244
      %v632 = vunpack.c.l.b16 %v245
      %v633 = vunpack.c.h.b16 %v245
      %v634 = vunpack.c.l.b16 %v246
      %v635 = vunpack.c.h.b16 %v246
      %v636 = vunpack.c.l.b16 %v247
      %v637 = vunpack.c.h.b16 %v247
      %v638 = vunpack.c.l.b16 %v248
      %v639 = vunpack.c.h.b16 %v248
      %v640 = vunpack.c.l.b16 %v249
      %v641 = vunpack.c.h.b16 %v249
      %v642 = vunpack.c.l.b16 %v250
      %v643 = vunpack.c.h.b16 %v250
      %v644 = vunpack.c.l.b16 %v251
      %v645 = vunpack.c.h.b16 %v251
      %v646 = vunpack.c.l.b16 %v252
      %v647 = vunpack.c.h.b16 %v252
      %v648 = vunpack.c.l.b16 %v253
      %v649 = vunpack.c.h.b16 %v253
      %v650 = vunpack.c.l.b16 %v254
      %v651 = vunpack.c.h.b16 %v254
      %v652 = vunpack.c.l.b16 %v255
      %v653 = vunpack.c.h.b16 %v255
      %v654 = vunpack.c.l.b16 %v256
      %v655 = vunpack.c.h.b16 %v256
      %v656 = vunpack.c.l.b16 %v257
      %v657 = vunpack.c.h.b16 %v257
      %v658 = vunpack.c.l.b16 %v258
      %v659 = vunpack.c.h.b16 %v258
      %v660 = vunpack.c.l.b16 %v259
      %v661 = vunpack.c.h.b16 %v259
      %v662 = vunpack.c.l.b16 %v260
      %v663 = vunpack.c.h.b16 %v260
      %v664 = vunpack.c.l.b16 %v261
      %v665 = vunpack.c.h.b16 %v261
      %v666 = vunpack.c.l.b16 %v262
      %v667 = vunpack.c.h.b16 %v262
      %v668 = vunpack.c.l.b16 %v263
      %v669 = vunpack.c.h.b16 %v263
      %v670 = vunpack.c.l.b16 %v264
      %v671 = vunpack.c.h.b16 %v264
      %v672 = vunpack.c.l.b16 %v265
      %v673 = vunpack.c.h.b16 %v265
      %v674 = vunpack.c.l.b16 %v266
      %v675 = vunpack.c.h.b16 %v266
      %v676 = vunpack.c.l.b16 %v267
      %v677 = vunpack.c.h.b16 %v267
      %v678 = vunpack.c.l.b16 %v268
      %v679 = vunpack.c.h.b16 %v268
      %v680 = vunpack.c.l.b16 %v269
      %v681 = vunpack.c.h.b16 %v269
      %v682 = vunpack.c.l.b16 %v270
      %v683 = vunpack.c.h.b16 %v270
      %v684 = vunpack.c.l.b16 %v271
      %v685 = vunpack.c.h.b16 %v271
      %v686 = vunpack.c.l.b16 %v272
      %v687 = vunpack.c.h.b16 %v272
      %v688 = vunpack.c.l.b16 %v273
      %v689 = vunpack.c.h.b16 %v273
      %v690 = vunpack.c.l.b16 %v274
      %v691 = vunpack.c.h.b16 %v274
      %v692 = vunpack.c.l.b16 %v275
      %v693 = vunpack.c.h.b16 %v275
      %v694 = vunpack.c.l.b16 %v276
      %v695 = vunpack.c.h.b16 %v276
      %v696 = vunpack.c.l.b16 %v277
      %v697 = vunpack.c.h.b16 %v277
      %v698 = vunpack.c.l.b16 %v278
      %v699 = vunpack.c.h.b16 %v278
      %v700 = vunpack.c.l.b16 %v279
      %v701 = vunpack.c.h.b16 %v279
      %v702 = vunpack.c.l.b16 %v280
      %v703 = vunpack.c.h.b16 %v280
      %v704 = vunpack.c.l.b16 %v281
      %v705 = vunpack.c.h.b16 %v281
      %v706 = vunpack.c.l.b16 %v282
      %v707 = vunpack.c.h.b16 %v282
      %v708 = vunpack.c.l.b16 %v283
      %v709 = vunpack.c.h.b16 %v283
      %v710 = vunpack.c.l.b16 %v284
      %v711 = vunpack.c.h.b16 %v284
      %v712 = vunpack.c.l.b16 %v285
      %v713 = vunpack.c.h.b16 %v285
      %v714 = vunpack.c.l.b16 %v286
      %v715 = vunpack.c.h.b16 %v286
      %v716 = vunpack.c.l.b16 %v287
      %v717 = vunpack.c.h.b16 %v287
      %v718 = vunpack.c.l.b16 %v288
      %v719 = vunpack.c.h.b16 %v288
      %v720 = vunpack.c.l.b16 %v289
      %v721 = vunpack.c.h.b16 %v289
      %v722 = vunpack.c.l.b16 %v290
      %v723 = vunpack.c.h.b16 %v290
      %v724 = vunpack.c.l.b16 %v291
      %v725 = vunpack.c.h.b16 %v291
      %v726 = vunpack.c.l.b16 %v292
      %v727 = vunpack.c.h.b16 %v292
      %v728 = vunpack.c.l.b16 %v293
      %v729 = vunpack.c.h.b16 %v293
      %v730 = vunpack.c.l.b16 %v294
      %v731 = vunpack.c.h.b16 %v294
      %v732 = vunpack.c.l.b16 %v295
      %v733 = vunpack.c.h.b16 %v295
      %v734 = vunpack.c.l.b16 %v296
      %v735 = vunpack.c.h.b16 %v296
      %v736 = vunpack.c.l.b16 %v297
      %v737 = vunpack.c.h.b16 %v297
      %v738 = vunpack.c.l.b16 %v298
      %v739 = vunpack.c.h.b16 %v298
      %v740 = vunpack.c.l.b16 %v299
      %v741 = vunpack.c.h.b16 %v299
      %v742 = vunpack.c.l.b16 %v300
      %v743 = vunpack.c.h.b16 %v300
      %v744 = vunpack.c.l.b16 %v301
      %v745 = vunpack.c.h.b16 %v301
      %v746 = vunpack.c.l.b16 %v302
      %v747 = vunpack.c.h.b16 %v302
      %v748 = vunpack.c.l.b16 %v303
      %v749 = vunpack.c.h.b16 %v303
      %v750 = vunpack.c.l.b16 %v304
      %v751 = vunpack.c.h.b16 %v304
      %v752 = vunpack.c.l.b16 %v305
      %v753 = vunpack.c.h.b16 %v305
      %v754 = vunpack.c.l.b16 %v306
      %v755 = vunpack.c.h.b16 %v306
      %v756 = vunpack.c.l.b16 %v307
      %v757 = vunpack.c.h.b16 %v307
      %v758 = vunpack.c.l.b16 %v308
      %v759 = vunpack.c.h.b16 %v308
      %v760 = vunpack.c.l.b16 %v309
      %v761 = vunpack.c.h.b16 %v309
      %v762 = vunpack.c.l.b16 %v310
      %v763 = vunpack.c.h.b16 %v310
      %v764 = vunpack.c.l.b16 %v311
      %v765 = vunpack.c.h.b16 %v311
      %v766 = vunpack.c.l.b16 %v312
      %v767 = vunpack.c.h.b16 %v312
      %v768 = vunpack.c.l.b16 %v313
      %v769 = vunpack.c.h.b16 %v313
      %v770 = vunpack.c.l.b16 %v314
      %v771 = vunpack.c.h.b16 %v314
      %v772 = vunpack.c.l.b16 %v315
      %v773 = vunpack.c.h.b16 %v315
      %v774 = vunpack.c.l.b16 %v316
      %v775 = vunpack.c.h.b16 %v316
      %v776 = vunpack.c.l.b16 %v317
      %v777 = vunpack.c.h.b16 %v317
      %v778 = vunpack.c.l.b16 %v318
      %v779 = vunpack.c.h.b16 %v318
      %v780 = vunpack.c.l.b16 %v319
      %v781 = vunpack.c.h.b16 %v319
      %v782 = vunpack.c.l.b16 %v320
      %v783 = vunpack.c.h.b16 %v320
      %v784 = vunpack.c.l.b16 %v321
      %v785 = vunpack.c.h.b16 %v321
      %v786 = vunpack.c.l.b16 %v322
      %v787 = vunpack.c.h.b16 %v322
      %v788 = vunpack.c.l.b16 %v323
      %v789 = vunpack.c.h.b16 %v323
      %v790 = vunpack.c.l.b16 %v324
      %v791 = vunpack.c.h.b16 %v324
      %v792 = vunpack.c.l.b16 %v325
      %v793 = vunpack.c.h.b16 %v325
      %v794 = vunpack.c.l.b16 %v326
      %v795 = vunpack.c.h.b16 %v326
      %v796 = vunpack.c.l.b16 %v327
      %v797 = vunpack.c.h.b16 %v327
      %v798 = vunpack.c.l.b16 %v328
      %v799 = vunpack.c.h.b16 %v328
      %v800 = vunpack.c.l.b16 %v329
      %v801 = vunpack.c.h.b16 %v329
      %v802 = vunpack.c.l.b16 %v330
      %v803 = vunpack.c.h.b16 %v330
      %v804 = vunpack.c.l.b16 %v331
      %v805 = vunpack.c.h.b16 %v331
      %v806 = vunpack.c.l.b16 %v332
      %v807 = vunpack.c.h.b16 %v332
      %v808 = vunpack.c.l.b16 %v333
      %v809 = vunpack.c.h.b16 %v333
      %v810 = vunpack.c.l.b16 %v334
      %v811 = vunpack.c.h.b16 %v334
      %v812 = vunpack.c.l.b16 %v335
      %v813 = vunpack.c.h.b16 %v335
      %v814 = vunpack.c.l.b16 %v336
      %v815 = vunpack.c.h.b16 %v336
      %v816 = vunpack.c.l.b16 %v337
      %v817 = vunpack.c.h.b16 %v337
      %v818 = vunpack.c.l.b16 %v338
      %v819 = vunpack.c.h.b16 %v338
      %v820 = vunpack.c.l.b16 %v339
      %v821 = vunpack.c.h.b16 %v339
      %v822 = vunpack.c.l.b16 %v340
      %v823 = vunpack.c.h.b16 %v340
      %v824 = vunpack.c.l.b16 %v341
      %v825 = vunpack.c.h.b16 %v341
      %v826 = vunpack.c.l.b16 %v342
      %v827 = vunpack.c.h.b16 %v342
      %v828 = vunpack.c.l.b16 %v343
      %v829 = vunpack.c.h.b16 %v343
      %v830 = vunpack.c.l.b16 %v344
      %v831 = vunpack.c.h.b16 %v344
      %v832 = vunpack.c.l.b16 %v345
      %v833 = vunpack.c.h.b16 %v345
      %v834 = vunpack.c.l.b16 %v346
      %v835 = vunpack.c.h.b16 %v346
      %v836 = vunpack.c.l.b16 %v347
      %v837 = vunpack.c.h.b16 %v347
      %v838 = vunpack.c.l.b16 %v348
      %v839 = vunpack.c.h.b16 %v348
      %v840 = vunpack.c.l.b16 %v349
      %v841 = vunpack.c.h.b16 %v349
      %v842 = vunpack.c.l.b16 %v350
      %v843 = vunpack.c.h.b16 %v350
      %v844 = vunpack.c.l.b16 %v351
      %v845 = vunpack.c.h.b16 %v351
      %v846 = vunpack.c.l.b16 %v352
      %v847 = vunpack.c.h.b16 %v352
      %v848 = vunpack.c.l.b16 %v353
      %v849 = vunpack.c.h.b16 %v353
      %v850 = vunpack.c.l.b16 %v354
      %v851 = vunpack.c.h.b16 %v354
      %v852 = vpack.c.b16 %v566, %v564
      %v853 = vpack.c.b16 %v567, %v565
      %v854 = vpack.c.b16 %v570, %v568
      %v855 = vpack.c.b16 %v571, %v569
      %v856 = vpack.c.b16 %v574, %v572
      %v857 = vpack.c.b16 %v575, %v573
      %v858 = vpack.c.b16 %v578, %v576
      %v859 = vpack.c.b16 %v579, %v577
      %v860 = vpack.c.b16 %v582, %v580
      %v861 = vpack.c.b16 %v583, %v581
      %v862 = vpack.c.b16 %v586, %v584
      %v863 = vpack.c.b16 %v587, %v585
      %v864 = vpack.c.b16 %v590, %v588
      %v865 = vpack.c.b16 %v591, %v589
      %v866 = vpack.c.b16 %v594, %v592
      %v867 = vpack.c.b16 %v595, %v593
      %v868 = vpack.c.b16 %v598, %v596
      %v869 = vpack.c.b16 %v599, %v597
      %v870 = vpack.c.b16 %v602, %v600
      %v871 = vpack.c.b16 %v603, %v601
      %v872 = vpack.c.b16 %v606, %v604
      %v873 = vpack.c.b16 %v607, %v605
      %v874 = vpack.c.b16 %v610, %v608
      %v875 = vpack.c.b16 %v611, %v609
      %v876 = vpack.c.b16 %v614, %v612
      %v877 = vpack.c.b16 %v615, %v613
      %v878 = vpack.c.b16 %v618, %v616
      %v879 = vpack.c.b16 %v619, %v617
      %v880 = vpack.c.b16 %v622, %v620
      %v881 = vpack.c.b16 %v623, %v621
      %v882 = vpack.c.b16 %v626, %v624
      %v883 = vpack.c.b16 %v627, %v625
      %v884 = vpack.c.b16 %v630, %v628
      %v885 = vpack.c.b16 %v631, %v629
      %v886 = vpack.c.b16 %v634, %v632
      %v887 = vpack.c.b16 %v635, %v633
      %v888 = vpack.c.b16 %v638, %v636
      %v889 = vpack.c.b16 %v639, %v637
      %v890 = vpack.c.b16 %v642, %v640
      %v891 = vpack.c.b16 %v643, %v641
      %v892 = vpack.c.b16 %v646, %v644
      %v893 = vpack.c.b16 %v647, %v645
      %v894 = vpack.c.b16 %v650, %v648
      %v895 = vpack.c.b16 %v651, %v649
      %v896 = vpack.c.b16 %v654, %v652
      %v897 = vpack.c.b16 %v655, %v653
      %v898 = vpack.c.b16 %v658, %v656
      %v899 = vpack.c.b16 %v659, %v657
      %v900 = vpack.c.b16 %v662, %v660
      %v901 = vpack.c.b16 %v663, %v661
      %v902 = vpack.c.b16 %v666, %v664
      %v903 = vpack.c.b16 %v667, %v665
      %v904 = vpack.c.b16 %v670, %v668
      %v905 = vpack.c.b16 %v671, %v669
      %v906 = vpack.c.b16 %v674, %v672
      %v907 = vpack.c.b16 %v675, %v673
      %v908 = vpack.c.b16 %v678, %v676
      %v909 = vpack.c.b16 %v679, %v677
      %v910 = vpack.c.b16 %v682, %v680
      %v911 = vpack.c.b16 %v683, %v681
      %v912 = vpack.c.b16 %v686, %v684
      %v913 = vpack.c.b16 %v687, %v685
      %v914 = vpack.c.b16 %v690, %v688
      %v915 = vpack.c.b16 %v691, %v689
      %v916 = vpack.c.b16 %v694, %v692
      %v917 = vpack.c.b16 %v695, %v693
      %v918 = vpack.c.b16 %v698, %v696
      %v919 = vpack.c.b16 %v699, %v697
      %v920 = vpack.c.b16 %v702, %v700
      %v921 = vpack.c.b16 %v703, %v701
      %v922 = vpack.c.b16 %v706, %v704
      %v923 = vpack.c.b16 %v707, %v705
      %v924 = vpack.c.b16 %v710, %v708
      %v925 = vpack.c.b16 %v711, %v709
      %v926 = vpack.c.b16 %v714, %v712
      %v927 = vpack.c.b16 %v715, %v713
      %v928 = vpack.c.b16 %v718, %v716
      %v929 = vpack.c.b16 %v719, %v717
      %v930 = vpack.c.b16 %v722, %v720
      %v931 = vpack.c.b16 %v723, %v721
      %v932 = vpack.c.b16 %v726, %v724
      %v933 = vpack.c.b16 %v727, %v725
      %v934 = vpack.c.b16 %v730, %v728
      %v935 = vpack.c.b16 %v731, %v729
      %v936 = vpack.c.b16 %v734, %v732
      %v937 = vpack.c.b16 %v735, %v733
      %v938 = vpack.c.b16 %v738, %v736
      %v939 = vpack.c.b16 %v739, %v737
      %v940 = vpack.c.b16 %v742, %v740
      %v941 = vpack.c.b16 %v743, %v741
      %v942 = vpack.c.b16 %v746, %v744
      %v943 = vpack.c.b16 %v747, %v745
      %v944 = vpack.c.b16 %v750, %v748
      %v945 = vpack.c.b16 %v751, %v749
      %v946 = vpack.c.b16 %v754, %v752
      %v947 = vpack.c.b16 %v755, %v753
      %v948 = vpack.c.b16 %v758, %v756
      %v949 = vpack.c.b16 %v759, %v757
      %v950 = vpack.c.b16 %v762, %v760
      %v951 = vpack.c.b16 %v763, %v761
      %v952 = vpack.c.b16 %v766, %v764
      %v953 = vpack.c.b16 %v767, %v765
      %v954 = vpack.c.b16 %v770, %v768
      %v955 = vpack.c.b16 %v771, %v769
      %v956 = vpack.c.b16 %v774, %v772
      %v957 = vpack.c.b16 %v775, %v773
      %v958 = vpack.c.b16 %v778, %v776
      %v959 = vpack.c.b16 %v779, %v777
      %v960 = vpack.c.b16 %v782, %v780
      %v961 = vpack.c.b16 %v783, %v781
      %v962 = vpack.c.b16 %v786, %v784
      %v963 = vpack.c.b16 %v787, %v785
      %v964 = vpack.c.b16 %v790, %v788
      %v965 = vpack.c.b16 %v791, %v789
      %v966 = vpack.c.b16 %v794, %v792
      %v967 = vpack.c.b16 %v795, %v793
      %v968 = vpack.c.b16 %v798, %v796
      %v969 = vpack.c.b16 %v799, %v797
      %v970 = vpack.c.b16 %v802, %v800
      %v971 = vpack.c.b16 %v803, %v801
      %v972 = vpack.c.b16 %v806, %v804
      %v973 = vpack.c.b16 %v807, %v805
      %v974 = vpack.c.b16 %v810, %v808
      %v975 = vpack.c.b16 %v811, %v809
      %v976 = vpack.c.b16 %v814, %v812
      %v977 = vpack.c.b16 %v815, %v813
      %v978 = vpack.c.b16 %v818, %v816
      %v979 = vpack.c.b16 %v819, %v817
      %v980 = vpack.c.b16 %v822, %v820
      %v981 = vpack.c.b16 %v823, %v821
      %v982 = vpack.c.b16 %v826, %v824
      %v983 = vpack.c.b16 %v827, %v825
      %v984 = vpack.c.b16 %v830, %v828
      %v985 = vpack.c.b16 %v831, %v829
      %v986 = vpack.c.b16 %v834, %v832
      %v987 = vpack.c.b16 %v835, %v833
      %v988 = vpack.c.b16 %v838, %v836
      %v989 = vpack.c.b16 %v839, %v837
      %v990 = vpack.c.b16 %v842, %v840
      %v991 = vpack.c.b16 %v843, %v841
      %v992 = vpack.c.b16 %v846, %v844
      %v993 = vpack.c.b16 %v847, %v845
      %v994 = vpack.c.b16 %v850, %v848
      %v995 = vpack.c.b16 %v851, %v849
      %1140 = vmatprep.subr.bf16.mxu0 %v853
      %1141 = vmatpush1.bf16.msra.mxu0 %v852
      %1142 = vmatprep.subr.bf16.mxu0 %v855
      %1143 = vmatpush1.bf16.msra.mxu0 %v854
      %1144 = vmatprep.subr.bf16.mxu0 %v857
      %1145 = vmatpush1.bf16.msra.mxu0 %v856
      %1146 = vmatprep.subr.bf16.mxu0 %v859
      %1147 = vmatpush1.bf16.msra.mxu0 %v858
      %1148 = vmatprep.subr.bf16.mxu0 %v861
      %1149 = vmatpush1.bf16.msra.mxu0 %v860
      %1150 = vmatprep.subr.bf16.mxu0 %v863
      %1151 = vmatpush1.bf16.msra.mxu0 %v862
      %1152 = vmatprep.subr.bf16.mxu0 %v865
      %1153 = vmatpush1.bf16.msra.mxu0 %v864
      %1154 = vmatprep.subr.bf16.mxu0 %v867
      %1155 = vmatpush1.bf16.msra.mxu0 %v866
      %1156 = vmatprep.subr.bf16.mxu0 %v869
      %1157 = vmatpush1.bf16.msra.mxu0 %v868
      %1158 = vmatprep.subr.bf16.mxu0 %v871
      %1159 = vmatpush1.bf16.msra.mxu0 %v870
      %1160 = vmatprep.subr.bf16.mxu0 %v873
      %1161 = vmatpush1.bf16.msra.mxu0 %v872
      %1162 = vmatprep.subr.bf16.mxu0 %v875
      %1163 = vmatpush1.bf16.msra.mxu0 %v874
      %1164 = vmatprep.subr.bf16.mxu0 %v877
      %1165 = vmatpush1.bf16.msra.mxu0 %v876
      %1166 = vmatprep.subr.bf16.mxu0 %v879
      %1167 = vmatpush1.bf16.msra.mxu0 %v878
      %1168 = vmatprep.subr.bf16.mxu0 %v881
      %1169 = vmatpush1.bf16.msra.mxu0 %v880
      %1170 = vmatprep.subr.bf16.mxu0 %v883
      %1171 = vmatpush1.bf16.msra.mxu0 %v882
      %1172 = vmatprep.mubr.bf16.mxu0 %v385
      %1173 = vmatmul.mubr.bf16.gmra.mrb[0].mxu0 %v377
      %v1174 = vpop.f32.mrb[0].mxu0
      %v1175 = vadd.f32 %v360, %v1174
      %v1176 = vpop.f32.mrb[0].mxu0
      %v1177 = vadd.f32 %v364, %v1176
      %v1178 = vpop.f32.mrb[0].mxu0
      %v1179 = vpop.f32.mrb[0].mxu0
      %1180 = vdwg.mxu0
      %1181 = vmatprep.subr.bf16.mxu0 %v885
      %1182 = vmatpush1.bf16.msra.mxu0 %v884
      %1183 = vmatprep.subr.bf16.mxu0 %v887
      %1184 = vmatpush1.bf16.msra.mxu0 %v886
      %1185 = vmatprep.subr.bf16.mxu0 %v889
      %1186 = vmatpush1.bf16.msra.mxu0 %v888
      %1187 = vmatprep.subr.bf16.mxu0 %v891
      %1188 = vmatpush1.bf16.msra.mxu0 %v890
      %1189 = vmatprep.subr.bf16.mxu0 %v893
      %1190 = vmatpush1.bf16.msra.mxu0 %v892
      %1191 = vmatprep.subr.bf16.mxu0 %v895
      %1192 = vmatpush1.bf16.msra.mxu0 %v894
      %1193 = vmatprep.subr.bf16.mxu0 %v897
      %1194 = vmatpush1.bf16.msra.mxu0 %v896
      %1195 = vmatprep.subr.bf16.mxu0 %v899
      %1196 = vmatpush1.bf16.msra.mxu0 %v898
      %1197 = vmatprep.subr.bf16.mxu0 %v901
      %1198 = vmatpush1.bf16.msra.mxu0 %v900
      %1199 = vmatprep.subr.bf16.mxu0 %v903
      %1200 = vmatpush1.bf16.msra.mxu0 %v902
      %1201 = vmatprep.subr.bf16.mxu0 %v905
      %1202 = vmatpush1.bf16.msra.mxu0 %v904
      %1203 = vmatprep.subr.bf16.mxu0 %v907
      %1204 = vmatpush1.bf16.msra.mxu0 %v906
      %1205 = vmatprep.subr.bf16.mxu0 %v909
      %1206 = vmatpush1.bf16.msra.mxu0 %v908
      %1207 = vmatprep.subr.bf16.mxu0 %v911
      %1208 = vmatpush1.bf16.msra.mxu0 %v910
      %1209 = vmatprep.subr.bf16.mxu0 %v913
      %1210 = vmatpush1.bf16.msra.mxu0 %v912
      %1211 = vmatprep.subr.bf16.mxu0 %v915
      %1212 = vmatpush1.bf16.msra.mxu0 %v914
      %1213 = vmatprep.mubr.bf16.mxu0 %v386
      %1214 = vmatmul.mubr.bf16.gmra.mrb[0].mxu0 %v384
      %v1215 = vpop.f32.mrb[0].mxu0
      %v1216 = vadd.f32 %v1175, %v1215
      %v1217 = vpop.f32.mrb[0].mxu0
      %v1218 = vadd.f32 %v1177, %v1217
      %v1219 = vpop.f32.mrb[0].mxu0
      %v1220 = vpop.f32.mrb[0].mxu0
      %1221 = vdwg.mxu0
      %1222 = vmatprep.subr.bf16.mxu0 %v917
      %1223 = vmatpush1.bf16.msra.mxu0 %v916
      %1224 = vmatprep.subr.bf16.mxu0 %v919
      %1225 = vmatpush1.bf16.msra.mxu0 %v918
      %1226 = vmatprep.subr.bf16.mxu0 %v921
      %1227 = vmatpush1.bf16.msra.mxu0 %v920
      %1228 = vmatprep.subr.bf16.mxu0 %v923
      %1229 = vmatpush1.bf16.msra.mxu0 %v922
      %1230 = vmatprep.subr.bf16.mxu0 %v925
      %1231 = vmatpush1.bf16.msra.mxu0 %v924
      %1232 = vmatprep.subr.bf16.mxu0 %v927
      %1233 = vmatpush1.bf16.msra.mxu0 %v926
      %1234 = vmatprep.subr.bf16.mxu0 %v929
      %1235 = vmatpush1.bf16.msra.mxu0 %v928
      %1236 = vmatprep.subr.bf16.mxu0 %v931
      %1237 = vmatpush1.bf16.msra.mxu0 %v930
      %1238 = vmatprep.subr.bf16.mxu0 %v933
      %1239 = vmatpush1.bf16.msra.mxu0 %v932
      %1240 = vmatprep.subr.bf16.mxu0 %v935
      %1241 = vmatpush1.bf16.msra.mxu0 %v934
      %1242 = vmatprep.subr.bf16.mxu0 %v937
      %1243 = vmatpush1.bf16.msra.mxu0 %v936
      %1244 = vmatprep.subr.bf16.mxu0 %v939
      %1245 = vmatpush1.bf16.msra.mxu0 %v938
      %1246 = vmatprep.subr.bf16.mxu0 %v941
      %1247 = vmatpush1.bf16.msra.mxu0 %v940
      %1248 = vmatprep.subr.bf16.mxu0 %v943
      %1249 = vmatpush1.bf16.msra.mxu0 %v942
      %1250 = vmatprep.subr.bf16.mxu0 %v945
      %1251 = vmatpush1.bf16.msra.mxu0 %v944
      %1252 = vmatprep.subr.bf16.mxu0 %v947
      %1253 = vmatpush1.bf16.msra.mxu0 %v946
      %1254 = vmatprep.mubr.bf16.mxu0 %v402
      %1255 = vmatmul.mubr.bf16.gmra.mrb[0].mxu0 %v394
      %v1256 = vpop.f32.mrb[0].mxu0
      %v1257 = vadd.f32 %v1216, %v1256
      %v1258 = vpop.f32.mrb[0].mxu0
      %v1259 = vadd.f32 %v1218, %v1258
      %v1260 = vpop.f32.mrb[0].mxu0
      %v1261 = vpop.f32.mrb[0].mxu0
      %1262 = vdwg.mxu0
      %1263 = vmatprep.subr.bf16.mxu0 %v949
      %1264 = vmatpush1.bf16.msra.mxu0 %v948
      %1265 = vmatprep.subr.bf16.mxu0 %v951
      %1266 = vmatpush1.bf16.msra.mxu0 %v950
      %1267 = vmatprep.subr.bf16.mxu0 %v953
      %1268 = vmatpush1.bf16.msra.mxu0 %v952
      %1269 = vmatprep.subr.bf16.mxu0 %v955
      %1270 = vmatpush1.bf16.msra.mxu0 %v954
      %1271 = vmatprep.subr.bf16.mxu0 %v957
      %1272 = vmatpush1.bf16.msra.mxu0 %v956
      %1273 = vmatprep.subr.bf16.mxu0 %v959
      %1274 = vmatpush1.bf16.msra.mxu0 %v958
      %1275 = vmatprep.subr.bf16.mxu0 %v961
      %1276 = vmatpush1.bf16.msra.mxu0 %v960
      %1277 = vmatprep.subr.bf16.mxu0 %v963
      %1278 = vmatpush1.bf16.msra.mxu0 %v962
      %1279 = vmatprep.subr.bf16.mxu0 %v965
      %1280 = vmatpush1.bf16.msra.mxu0 %v964
      %1281 = vmatprep.subr.bf16.mxu0 %v967
      %1282 = vmatpush1.bf16.msra.mxu0 %v966
      %1283 = vmatprep.subr.bf16.mxu0 %v969
      %1284 = vmatpush1.bf16.msra.mxu0 %v968
      %1285 = vmatprep.subr.bf16.mxu0 %v971
      %1286 = vmatpush1.bf16.msra.mxu0 %v970
      %1287 = vmatprep.subr.bf16.mxu0 %v973
      %1288 = vmatpush1.bf16.msra.mxu0 %v972
      %1289 = vmatprep.subr.bf16.mxu0 %v975
      %1290 = vmatpush1.bf16.msra.mxu0 %v974
      %1291 = vmatprep.subr.bf16.mxu0 %v977
      %1292 = vmatpush1.bf16.msra.mxu0 %v976
      %1293 = vmatprep.subr.bf16.mxu0 %v979
      %1294 = vmatpush1.bf16.msra.mxu0 %v978
      %1295 = vmatprep.mubr.bf16.mxu0 %v403
      %1296 = vmatmul.mubr.bf16.gmra.mrb[0].mxu0 %v401
      %v1297 = vpop.f32.mrb[0].mxu0
      %v1298 = vadd.f32 %v1257, %v1297
      %v1299 = vpop.f32.mrb[0].mxu0
      %v1300 = vadd.f32 %v1259, %v1299
      %v1301 = vpop.f32.mrb[0].mxu0
      %v1302 = vpop.f32.mrb[0].mxu0
      %1303 = vdwg.mxu0
      %1304 = vmatprep.subr.bf16.mxu0 %v981
      %1305 = vmatpush1.bf16.msra.mxu0 %v980
      %1306 = vmatprep.subr.bf16.mxu0 %v983
      %1307 = vmatpush1.bf16.msra.mxu0 %v982
      %1308 = vmatprep.subr.bf16.mxu0 %v985
      %1309 = vmatpush1.bf16.msra.mxu0 %v984
      %1310 = vmatprep.subr.bf16.mxu0 %v987
      %1311 = vmatpush1.bf16.msra.mxu0 %v986
      %1312 = vmatprep.subr.bf16.mxu0 %v989
      %1313 = vmatpush1.bf16.msra.mxu0 %v988
      %1314 = vmatprep.subr.bf16.mxu0 %v991
      %1315 = vmatpush1.bf16.msra.mxu0 %v990
      %1316 = vmatprep.subr.bf16.mxu0 %v993
      %1317 = vmatpush1.bf16.msra.mxu0 %v992
      %1318 = vmatprep.subr.bf16.mxu0 %v995
      %1319 = vmatpush1.bf16.msra.mxu0 %v994
      %1320 = vmatprep.subr.bf16.mxu0 0
      %1321 = vmatpush1.bf16.msra.mxu0 0
      %1322 = vmatprep.subr.bf16.mxu0 0
      %1323 = vmatpush1.bf16.msra.mxu0 0
      %1324 = vmatprep.subr.bf16.mxu0 0
      %1325 = vmatpush1.bf16.msra.mxu0 0
      %1326 = vmatprep.subr.bf16.mxu0 0
      %1327 = vmatpush1.bf16.msra.mxu0 0
      %1328 = vmatprep.subr.bf16.mxu0 0
      %1329 = vmatpush1.bf16.msra.mxu0 0
      %1330 = vmatprep.subr.bf16.mxu0 0
      %1331 = vmatpush1.bf16.msra.mxu0 0
      %1332 = vmatprep.subr.bf16.mxu0 0
      %1333 = vmatpush1.bf16.msra.mxu0 0
      %1334 = vmatprep.subr.bf16.mxu0 0
      %1335 = vmatpush1.bf16.msra.mxu0 0
      %1336 = vmatprep.mubr.bf16.mxu0 0
      %1337 = vmatmul.mubr.bf16.gmra.mrb[0].mxu0 %v410
      %v1338 = vpop.f32.mrb[0].mxu0
      %v1339 = vadd.f32 %v1298, %v1338
      %v1340 = vpop.f32.mrb[0].mxu0
      %v1341 = vadd.f32 %v1300, %v1340
      %v1342 = vpop.f32.mrb[0].mxu0
      %v1343 = vpop.f32.mrb[0].mxu0
      %1344 = vdwg.mxu0
      %v1345 = vmax.f32 %v1339, 0.0
      %v1346 = vmax.f32 %v1341, 0.0
      %v1347 = vpack.c.bf16 %v1345, %v1345
      %v1348 = vpack.c.bf16 %v1346, %v1346
      %v1351 = vcombine.low %v1347, %v1348
      %v1353 = vunpack.c.l.s4 1983009808
      %v1354 = vunpack.c.0.s8 %v1353
      %v1355 = vlaneseq
      %v1356 = vshrl.u32 %v1355, 7
      %v1357 = vsub.s32 %v1354, %v1356
      %v1358 = vrot.slane %v1351, %v1357
      %1360 = vst [vmem:[%s206] sm:$0xf] %v1358
      %p1361 = scmp.lt.s32.totalorder %s18, 1
      %s1362 = scalar_select %p1361, %s18, 1
      %p1363 = scmp.lt.s32.totalorder %s19, 0
      %s1364 = scalar_select %p1363, %s19, 0
      %s1365 = smul.addr %s1364, 2
      %s1366 = smul.addr %s1362, 2
      %s1367 = sadd.s32 %s1365, %s1366
      %s1368 = smul.addr %s1367, 2
      %s1369 = scalar_lea.vmem %s3, %s1368
      // Predicated region
      $region33: #{semantic_encoder_forward.7} parent=31 // pred_check
        %p1370 = pneg %p116
      $region34: #{semantic_encoder_forward.7} parent=31 // pred_check_branch
        %1372 = sbr.rel (%p1370) target = $region36
      $region35: #{semantic_encoder_forward.7} parent=31 // pred_region
        _
      $region36: #{semantic_encoder_forward.7} parent=31 // pred_fallthru
        _
    $region32: #{semantic_encoder_forward.7} parent=5 // pred_fallthru
      _
    %p1373 = scmp.le.s32.totalorder 2, %s9
    // Predicated region
    $region37: #{semantic_encoder_forward.7} parent=5 // pred_check
      %p1374 = pneg %p1373
    $region38: #{semantic_encoder_forward.7} parent=5 // pred_check_branch
      %1376 = sbr.rel (%p1374) target = $region40
    $region39: #{semantic_encoder_forward.7} parent=5 // pred_region
      %s1377 = ssub.s32 %s9, 2
      // Predicated region
      $region41: #{semantic_encoder_forward.7} parent=39 // pred_check
        %p1378 = pneg %p122
      $region42: #{semantic_encoder_forward.7} parent=39 // pred_check_branch
        %1380 = sbr.rel (%p1378) target = $region44
      $region43: #{semantic_encoder_forward.7} parent=39 // pred_region
        %p1381 = scmp.lt.s32.totalorder %s20, 1
        %s1382 = scalar_select %p1381, %s20, 1
        %p1383 = scmp.lt.s32.totalorder %s21, 0
        %s1384 = scalar_select %p1383, %s21, 0
        %s1385 = smul.addr %s1384, 2
        %s1386 = smul.addr %s1382, 2
        %s1387 = sadd.s32 %s1385, %s1386
        %s1388 = smul.addr %s1387, 2
        %s1389 = scalar_lea.vmem %s3, %s1388
      $region44: #{semantic_encoder_forward.7} parent=39 // pred_fallthru
        _
    $region40: #{semantic_encoder_forward.7} parent=5 // pred_fallthru
      _
  $region6: #{semantic_encoder_forward.7} parent=0 // loop_footer
    %s13 = sadd.s32 1, %s9
  $region7: #{semantic_encoder_forward.7} parent=0 // loop_footer_branch
    %8 = sbr.rel target = $region3
  $region8: #{semantic_encoder_forward.7} parent=0 // loop_exit
    _

</llo_original>
